<compile_context>
chip_gen: v5e
topology: v5e:2x2
jax: 0.10.0
libtpu: 0.0.40
codegen_flags: <defaults>
</compile_context>

<pallas_src>
import functools

import jax
import jax.numpy as jnp
from jax.experimental import pallas as pl
from jax.experimental.pallas import tpu as pltpu

CIN, CH, NUM_CLASSES = 4, 32, 10


# ----------------------------------------------------------------------------
# Fused per-image kernel: conv1 -> conv2 -> sum-pool -> projection head
# Grid: (N,)  — one image per grid step, all intermediates stay in VMEM.
# ----------------------------------------------------------------------------
def _fused_dis_kernel(x_ref, w1_ref, b1_ref, w2_ref, b2_ref,
                      wl_ref, bl_ref, yemb_ref, o_ref, xp1, xp2):
    # x_ref   : [1, H, W, Cin]  bf16 input image (NHWC)
    # w1_ref  : [9*Cin, CH]     bf16 tap-major packed conv1 weights
    # b1_ref  : [1, CH]         f32
    # w2_ref  : [9*CH, CH]      bf16 tap-major packed conv2 weights
    # b2_ref  : [1, CH]         f32
    # wl_ref  : [1, CH]         f32 linear-head weight
    # bl_ref  : [1, 1]          f32 linear-head bias
    # yemb_ref: [1, 1, CH]      f32 class embedding for this image (zeros if y=None)
    # o_ref   : [1, 1, 128]     f32 logit broadcast across lanes
    # xp1     : VMEM [(H+2, W+2, Cin)]  bf16 padded-input scratch
    # xp2     : VMEM [(H+2, W+2, CH)]   bf16 padded-h1 scratch
    H, W, Cin = x_ref.shape[1], x_ref.shape[2], x_ref.shape[3]
    Ch = w1_ref.shape[1]

    # Zero-pad borders in VMEM (interiors are fully overwritten each step).
    xp1[...] = jnp.zeros_like(xp1)
    xp2[...] = jnp.zeros_like(xp2)

    # ---- conv1: single im2col matmul (K = 9*Cin) + bias + LeakyReLU(0.2) ----
    xp1[1:H + 1, 1:W + 1, :] = x_ref[0]
    xpad = xp1[...]
    patch1 = jnp.concatenate(
        [xpad[kh:kh + H, kw:kw + W, :] for kh in range(3) for kw in range(3)],
        axis=-1).reshape(H * W, 9 * Cin)                     # [H*W, 36] bf16
    h1 = jnp.dot(patch1, w1_ref[...], preferred_element_type=jnp.float32)
    h1 = h1 + b1_ref[...]
    h1 = jnp.where(h1 >= 0.0, h1, 0.2 * h1)                  # f32 LeakyReLU

    # ---- conv2: single im2col matmul (K = 9*CH = 288) + bias + LeakyReLU ----
    xp2[1:H + 1, 1:W + 1, :] = h1.reshape(H, W, Ch).astype(xp2.dtype)
    hpad = xp2[...]
    patch2 = jnp.concatenate(
        [hpad[kh:kh + H, kw:kw + W, :] for kh in range(3) for kw in range(3)],
        axis=-1).reshape(H * W, 9 * Ch)                      # [H*W, 288] bf16
    h2 = jnp.dot(patch2, w2_ref[...], preferred_element_type=jnp.float32)
    h2 = h2 + b2_ref[...]
    h2 = jnp.where(h2 >= 0.0, h2, 0.2 * h2)                  # [H*W, CH] f32

    # ---- global sum-pool + linear head + projection-conditioning head ----
    pool = jnp.sum(h2, axis=0, keepdims=True)                              # [1, CH]
    lin = jnp.sum(pool * wl_ref[...], axis=-1, keepdims=True) + bl_ref[...]  # [1, 1]
    proj = jnp.sum(pool * yemb_ref[0], axis=-1, keepdims=True)               # [1, 1]
    logit = lin + proj
    o_ref[...] = jnp.broadcast_to(logit.reshape(1, 1, 1), o_ref.shape)


def _fused_discriminator(x_nhwc, params, y_emb):
    n, h, w, cin = x_nhwc.shape
    out = pl.pallas_call(
        _fused_dis_kernel,
        grid=(n,),
        in_specs=[
            pl.BlockSpec((1, h, w, cin), lambda i: (i, 0, 0, 0)),   # x
            pl.BlockSpec((9 * cin, CH), lambda i: (0, 0)),          # w1
            pl.BlockSpec((1, CH), lambda i: (0, 0)),                # b1
            pl.BlockSpec((9 * CH, CH), lambda i: (0, 0)),           # w2
            pl.BlockSpec((1, CH), lambda i: (0, 0)),                # b2
            pl.BlockSpec((1, CH), lambda i: (0, 0)),                # w_lin
            pl.BlockSpec((1, 1), lambda i: (0, 0)),                 # b_lin
            pl.BlockSpec((1, 1, CH), lambda i: (i, 0, 0)),          # y embedding
        ],
        out_specs=pl.BlockSpec((1, 1, 128), lambda i: (i, 0, 0)),
        out_shape=jax.ShapeDtypeStruct((n, 1, 128), jnp.float32),
        scratch_shapes=[
            pltpu.VMEM((h + 2, w + 2, cin), jnp.bfloat16),   # padded input
            pltpu.VMEM((h + 2, w + 2, CH), jnp.bfloat16),    # padded hidden
        ],
        compiler_params=pltpu.CompilerParams(
            dimension_semantics=("parallel",)),
    )(x_nhwc, params["w1"], params["b1"], params["w2"], params["b2"],
      params["w_lin"], params["b_lin"], y_emb)
    return out[:, 0, :1]                                     # [N, 1]


# ----------------------------------------------------------------------------
# Parameters (deterministic init) and the wrapper forward
# ----------------------------------------------------------------------------
def init_params():
    keys = jax.random.split(jax.random.PRNGKey(42), 4)
    # conv weights stored tap-major packed: [3*3*Cin, Cout], bf16 for the MXU
    w1 = (jax.random.normal(keys[0], (9 * CIN, CH), jnp.float32) * 0.05
          ).astype(jnp.bfloat16)
    b1 = jnp.zeros((1, CH), jnp.float32)
    w2 = (jax.random.normal(keys[1], (9 * CH, CH), jnp.float32) * 0.05
          ).astype(jnp.bfloat16)
    b2 = jnp.zeros((1, CH), jnp.float32)
    w_lin = jax.random.normal(keys[2], (1, CH), jnp.float32) * 0.05
    b_lin = jnp.zeros((1, 1), jnp.float32)
    embed = jax.random.normal(keys[3], (NUM_CLASSES, CH), jnp.float32) * 0.05
    return dict(w1=w1, b1=b1, w2=w2, b2=b2, w_lin=w_lin, b_lin=b_lin, embed=embed)


@functools.partial(jax.jit, static_argnames=("aug", "training"))
def discriminator_wrapper_forward(params, x_nchw, y=None, aug=False, training=True):
    """Equivalent of discriminator_wrapper.forward(x, y, aug)."""
    if aug and training:
        # TODO(synk): AugmentWrapper_DIS applies stochastic DiffAugment-style
        # transforms; a deterministic horizontal flip stands in here.
        x_nchw = x_nchw[:, :, :, ::-1]

    x = jnp.transpose(x_nchw, (0, 2, 3, 1)).astype(jnp.bfloat16)  # NCHW -> NHWC
    n = x.shape[0]
    if y is None:
        y_emb = jnp.zeros((n, 1, CH), jnp.float32)                # unconditional
    else:
        y_emb = params["embed"][y].reshape(n, 1, CH).astype(jnp.float32)

    return _fused_discriminator(x, params, y_emb)                 # [N, 1] f32


if __name__ == "__main__":
    key = jax.random.PRNGKey(0)
    kx, ky = jax.random.split(key)
    x = jax.random.normal(kx, (2, CIN, 16, 16), jnp.float32)      # NCHW like PyTorch
    y = jax.random.randint(ky, (2,), 0, NUM_CLASSES)

    params = init_params()
    logits = discriminator_wrapper_forward(params, x, y, aug=False, training=True)
    jax.block_until_ready(logits)
    assert logits.shape == (2, 1) and logits.dtype == jnp.float32
    print("KERNEL_OK")
</pallas_src>

<mosaic_0001>
module attributes {stable_mosaic.version = 11 : i64} {
  func.func @_fused_dis_kernel(%arg0: i32, %arg1: memref<1x16x16x4xbf16, #tpu.memory_space<vmem>>, %arg2: memref<36x32xbf16, #tpu.memory_space<vmem>>, %arg3: memref<1x32xf32, #tpu.memory_space<vmem>>, %arg4: memref<288x32xbf16, #tpu.memory_space<vmem>>, %arg5: memref<1x32xf32, #tpu.memory_space<vmem>>, %arg6: memref<1x32xf32, #tpu.memory_space<vmem>>, %arg7: memref<1x1xf32, #tpu.memory_space<vmem>>, %arg8: memref<1x1x32xf32, #tpu.memory_space<vmem>>, %arg9: memref<1x1x128xf32, #tpu.memory_space<vmem>>, %arg10: memref<18x18x4xbf16, #tpu.memory_space<vmem>>, %arg11: memref<18x18x32xbf16, #tpu.memory_space<vmem>>) attributes {dimension_semantics = [#tpu.dimension_semantics<parallel>], iteration_bounds = array<i64: 2>, scalar_prefetch = 0 : i64, scratch_operands = 2 : i64, tpu.core_type = #tpu.core_type<tc>, window_params = [{transform_indices = @transform_0, window_bounds = array<i64: 1, 16, 16, 4>}, {pipeline_mode = #tpu.pipeline_mode<synchronous>, transform_indices = @transform_1, window_bounds = array<i64: 36, 32>}, {pipeline_mode = #tpu.pipeline_mode<synchronous>, transform_indices = @transform_2, window_bounds = array<i64: 1, 32>}, {pipeline_mode = #tpu.pipeline_mode<synchronous>, transform_indices = @transform_3, window_bounds = array<i64: 288, 32>}, {pipeline_mode = #tpu.pipeline_mode<synchronous>, transform_indices = @transform_4, window_bounds = array<i64: 1, 32>}, {pipeline_mode = #tpu.pipeline_mode<synchronous>, transform_indices = @transform_5, window_bounds = array<i64: 1, 32>}, {pipeline_mode = #tpu.pipeline_mode<synchronous>, transform_indices = @transform_6, window_bounds = array<i64: 1, 1>}, {transform_indices = @transform_7, window_bounds = array<i64: 1, 1, 32>}, {transform_indices = @transform_8, window_bounds = array<i64: 1, 1, 128>}]} {
    %cst = arith.constant 0.000000e+00 : bf16
    %0 = vector.broadcast %cst : bf16 to vector<18x18x4xbf16>
    %c0 = arith.constant 0 : index
    %c0_0 = arith.constant 0 : index
    %c0_1 = arith.constant 0 : index
    %1 = vector.load %arg10[%c0, %c0_0, %c0_1] : memref<18x18x4xbf16, #tpu.memory_space<vmem>>, vector<18x18x4xbf16>
    tpu.vector_store %arg10[%c0, %c0_0, %c0_1], %0 {strides = array<i32>} : memref<18x18x4xbf16, #tpu.memory_space<vmem>>, vector<18x18x4xbf16>,
    %cst_2 = arith.constant 0.000000e+00 : bf16
    %2 = vector.broadcast %cst_2 : bf16 to vector<18x18x32xbf16>
    %c0_3 = arith.constant 0 : index
    %c0_4 = arith.constant 0 : index
    %c0_5 = arith.constant 0 : index
    %3 = vector.load %arg11[%c0_3, %c0_4, %c0_5] : memref<18x18x32xbf16, #tpu.memory_space<vmem>>, vector<18x18x32xbf16>
    tpu.vector_store %arg11[%c0_3, %c0_4, %c0_5], %2 {strides = array<i32>} : memref<18x18x32xbf16, #tpu.memory_space<vmem>>, vector<18x18x32xbf16>,
    %c0_6 = arith.constant 0 : index
    %c0_7 = arith.constant 0 : index
    %c0_8 = arith.constant 0 : index
    %c0_9 = arith.constant 0 : index
    %4 = vector.load %arg1[%c0_6, %c0_7, %c0_8, %c0_9] : memref<1x16x16x4xbf16, #tpu.memory_space<vmem>>, vector<1x16x16x4xbf16>
    %5 = vector.shape_cast %4 : vector<1x16x16x4xbf16> to vector<16x16x4xbf16>
    %c1 = arith.constant 1 : index
    %c1_10 = arith.constant 1 : index
    %c0_11 = arith.constant 0 : index
    %6 = vector.load %arg10[%c1, %c1_10, %c0_11] : memref<18x18x4xbf16, #tpu.memory_space<vmem>>, vector<16x16x4xbf16>
    tpu.vector_store %arg10[%c1, %c1_10, %c0_11], %5 {strides = array<i32>} : memref<18x18x4xbf16, #tpu.memory_space<vmem>>, vector<16x16x4xbf16>,
    %c0_12 = arith.constant 0 : index
    %c0_13 = arith.constant 0 : index
    %c0_14 = arith.constant 0 : index
    %7 = vector.load %arg10[%c0_12, %c0_13, %c0_14] : memref<18x18x4xbf16, #tpu.memory_space<vmem>>, vector<18x18x4xbf16>
    %8 = vector.extract_strided_slice %7 {offsets = [0, 0, 0], sizes = [16, 16, 4], strides = [1, 1, 1]} : vector<18x18x4xbf16> to vector<16x16x4xbf16>
    %9 = vector.extract_strided_slice %7 {offsets = [0, 1, 0], sizes = [16, 16, 4], strides = [1, 1, 1]} : vector<18x18x4xbf16> to vector<16x16x4xbf16>
    %10 = vector.extract_strided_slice %7 {offsets = [0, 2, 0], sizes = [16, 16, 4], strides = [1, 1, 1]} : vector<18x18x4xbf16> to vector<16x16x4xbf16>
    %11 = vector.extract_strided_slice %7 {offsets = [1, 0, 0], sizes = [16, 16, 4], strides = [1, 1, 1]} : vector<18x18x4xbf16> to vector<16x16x4xbf16>
    %12 = vector.extract_strided_slice %7 {offsets = [1, 1, 0], sizes = [16, 16, 4], strides = [1, 1, 1]} : vector<18x18x4xbf16> to vector<16x16x4xbf16>
    %13 = vector.extract_strided_slice %7 {offsets = [1, 2, 0], sizes = [16, 16, 4], strides = [1, 1, 1]} : vector<18x18x4xbf16> to vector<16x16x4xbf16>
    %14 = vector.extract_strided_slice %7 {offsets = [2, 0, 0], sizes = [16, 16, 4], strides = [1, 1, 1]} : vector<18x18x4xbf16> to vector<16x16x4xbf16>
    %15 = vector.extract_strided_slice %7 {offsets = [2, 1, 0], sizes = [16, 16, 4], strides = [1, 1, 1]} : vector<18x18x4xbf16> to vector<16x16x4xbf16>
    %16 = vector.extract_strided_slice %7 {offsets = [2, 2, 0], sizes = [16, 16, 4], strides = [1, 1, 1]} : vector<18x18x4xbf16> to vector<16x16x4xbf16>
    %17 = tpu.concatenate %8, %9, %10, %11, %12, %13, %14, %15, %16 in 2 : vector<16x16x4xbf16>, vector<16x16x4xbf16>, vector<16x16x4xbf16>, vector<16x16x4xbf16>, vector<16x16x4xbf16>, vector<16x16x4xbf16>, vector<16x16x4xbf16>, vector<16x16x4xbf16>, vector<16x16x4xbf16> -> vector<16x16x36xbf16>
    %18 = vector.shape_cast %17 : vector<16x16x36xbf16> to vector<256x36xbf16>
    %c0_15 = arith.constant 0 : index
    %c0_16 = arith.constant 0 : index
    %19 = vector.load %arg2[%c0_15, %c0_16] : memref<36x32xbf16, #tpu.memory_space<vmem>>, vector<36x32xbf16>
    %cst_17 = arith.constant dense<0.000000e+00> : vector<256x32xf32>
    %20 = tpu.matmul %18, %19, %cst_17 {dimension_numbers = #tpu.dot_dimension_numbers<[1], [0], [0], [1], [0, 0, 1, 1], [], []>} : vector<256x36xbf16>, vector<36x32xbf16>, vector<256x32xf32> -> vector<256x32xf32>
    %c0_18 = arith.constant 0 : index
    %c0_19 = arith.constant 0 : index
    %21 = vector.load %arg3[%c0_18, %c0_19] : memref<1x32xf32, #tpu.memory_space<vmem>>, vector<1x32xf32>
    %22 = vector.broadcast %21 : vector<1x32xf32> to vector<256x32xf32>
    %23 = arith.addf %20, %22 : vector<256x32xf32>
    %cst_20 = arith.constant 0.000000e+00 : f32
    %24 = vector.broadcast %cst_20 : f32 to vector<256x32xf32>
    %25 = arith.cmpf oge, %23, %24 : vector<256x32xf32>
    %cst_21 = arith.constant 2.000000e-01 : f32
    %26 = vector.broadcast %cst_21 : f32 to vector<256x32xf32>
    %27 = arith.mulf %26, %23 : vector<256x32xf32>
    %28 = arith.select %25, %23, %27 : vector<256x32xi1>, vector<256x32xf32>
    %29 = vector.shape_cast %28 : vector<256x32xf32> to vector<16x16x32xf32>
    %30 = arith.truncf %29 : vector<16x16x32xf32> to vector<16x16x32xbf16>
    %c1_22 = arith.constant 1 : index
    %c1_23 = arith.constant 1 : index
    %c0_24 = arith.constant 0 : index
    %31 = vector.load %arg11[%c1_22, %c1_23, %c0_24] : memref<18x18x32xbf16, #tpu.memory_space<vmem>>, vector<16x16x32xbf16>
    tpu.vector_store %arg11[%c1_22, %c1_23, %c0_24], %30 {strides = array<i32>} : memref<18x18x32xbf16, #tpu.memory_space<vmem>>, vector<16x16x32xbf16>,
    %c0_25 = arith.constant 0 : index
    %c0_26 = arith.constant 0 : index
    %c0_27 = arith.constant 0 : index
    %32 = vector.load %arg11[%c0_25, %c0_26, %c0_27] : memref<18x18x32xbf16, #tpu.memory_space<vmem>>, vector<18x18x32xbf16>
    %33 = vector.extract_strided_slice %32 {offsets = [0, 0, 0], sizes = [16, 16, 32], strides = [1, 1, 1]} : vector<18x18x32xbf16> to vector<16x16x32xbf16>
    %34 = vector.extract_strided_slice %32 {offsets = [0, 1, 0], sizes = [16, 16, 32], strides = [1, 1, 1]} : vector<18x18x32xbf16> to vector<16x16x32xbf16>
    %35 = vector.extract_strided_slice %32 {offsets = [0, 2, 0], sizes = [16, 16, 32], strides = [1, 1, 1]} : vector<18x18x32xbf16> to vector<16x16x32xbf16>
    %36 = vector.extract_strided_slice %32 {offsets = [1, 0, 0], sizes = [16, 16, 32], strides = [1, 1, 1]} : vector<18x18x32xbf16> to vector<16x16x32xbf16>
    %37 = vector.extract_strided_slice %32 {offsets = [1, 1, 0], sizes = [16, 16, 32], strides = [1, 1, 1]} : vector<18x18x32xbf16> to vector<16x16x32xbf16>
    %38 = vector.extract_strided_slice %32 {offsets = [1, 2, 0], sizes = [16, 16, 32], strides = [1, 1, 1]} : vector<18x18x32xbf16> to vector<16x16x32xbf16>
    %39 = vector.extract_strided_slice %32 {offsets = [2, 0, 0], sizes = [16, 16, 32], strides = [1, 1, 1]} : vector<18x18x32xbf16> to vector<16x16x32xbf16>
    %40 = vector.extract_strided_slice %32 {offsets = [2, 1, 0], sizes = [16, 16, 32], strides = [1, 1, 1]} : vector<18x18x32xbf16> to vector<16x16x32xbf16>
    %41 = vector.extract_strided_slice %32 {offsets = [2, 2, 0], sizes = [16, 16, 32], strides = [1, 1, 1]} : vector<18x18x32xbf16> to vector<16x16x32xbf16>
    %42 = tpu.concatenate %33, %34, %35, %36, %37, %38, %39, %40, %41 in 2 : vector<16x16x32xbf16>, vector<16x16x32xbf16>, vector<16x16x32xbf16>, vector<16x16x32xbf16>, vector<16x16x32xbf16>, vector<16x16x32xbf16>, vector<16x16x32xbf16>, vector<16x16x32xbf16>, vector<16x16x32xbf16> -> vector<16x16x288xbf16>
    %43 = vector.shape_cast %42 : vector<16x16x288xbf16> to vector<256x288xbf16>
    %c0_28 = arith.constant 0 : index
    %c0_29 = arith.constant 0 : index
    %44 = vector.load %arg4[%c0_28, %c0_29] : memref<288x32xbf16, #tpu.memory_space<vmem>>, vector<288x32xbf16>
    %cst_30 = arith.constant dense<0.000000e+00> : vector<256x32xf32>
    %45 = tpu.matmul %43, %44, %cst_30 {dimension_numbers = #tpu.dot_dimension_numbers<[1], [0], [0], [1], [0, 0, 1, 1], [], []>} : vector<256x288xbf16>, vector<288x32xbf16>, vector<256x32xf32> -> vector<256x32xf32>
    %c0_31 = arith.constant 0 : index
    %c0_32 = arith.constant 0 : index
    %46 = vector.load %arg5[%c0_31, %c0_32] : memref<1x32xf32, #tpu.memory_space<vmem>>, vector<1x32xf32>
    %47 = vector.broadcast %46 : vector<1x32xf32> to vector<256x32xf32>
    %48 = arith.addf %45, %47 : vector<256x32xf32>
    %cst_33 = arith.constant 0.000000e+00 : f32
    %49 = vector.broadcast %cst_33 : f32 to vector<256x32xf32>
    %50 = arith.cmpf oge, %48, %49 : vector<256x32xf32>
    %cst_34 = arith.constant 2.000000e-01 : f32
    %51 = vector.broadcast %cst_34 : f32 to vector<256x32xf32>
    %52 = arith.mulf %51, %48 : vector<256x32xf32>
    %53 = arith.select %50, %48, %52 : vector<256x32xi1>, vector<256x32xf32>
    %cst_35 = arith.constant dense<0.000000e+00> : vector<32xf32>
    %54 = vector.multi_reduction <add>, %53, %cst_35 [0] : vector<256x32xf32> to vector<32xf32>
    %55 = vector.shape_cast %54 : vector<32xf32> to vector<1x32xf32>
    %c0_36 = arith.constant 0 : index
    %c0_37 = arith.constant 0 : index
    %56 = vector.load %arg6[%c0_36, %c0_37] : memref<1x32xf32, #tpu.memory_space<vmem>>, vector<1x32xf32>
    %57 = arith.mulf %55, %56 : vector<1x32xf32>
    %cst_38 = arith.constant dense<0.000000e+00> : vector<1xf32>
    %58 = vector.multi_reduction <add>, %57, %cst_38 [1] : vector<1x32xf32> to vector<1xf32>
    %59 = vector.shape_cast %58 : vector<1xf32> to vector<1x1xf32>
    %c0_39 = arith.constant 0 : index
    %c0_40 = arith.constant 0 : index
    %60 = vector.load %arg7[%c0_39, %c0_40] : memref<1x1xf32, #tpu.memory_space<vmem>>, vector<1x1xf32>
    %61 = arith.addf %59, %60 : vector<1x1xf32>
    %c0_41 = arith.constant 0 : index
    %c0_42 = arith.constant 0 : index
    %c0_43 = arith.constant 0 : index
    %62 = vector.load %arg8[%c0_41, %c0_42, %c0_43] : memref<1x1x32xf32, #tpu.memory_space<vmem>>, vector<1x1x32xf32>
    %63 = vector.shape_cast %62 : vector<1x1x32xf32> to vector<1x32xf32>
    %64 = arith.mulf %55, %63 : vector<1x32xf32>
    %cst_44 = arith.constant dense<0.000000e+00> : vector<1xf32>
    %65 = vector.multi_reduction <add>, %64, %cst_44 [1] : vector<1x32xf32> to vector<1xf32>
    %66 = vector.shape_cast %65 : vector<1xf32> to vector<1x1xf32>
    %67 = arith.addf %61, %66 : vector<1x1xf32>
    %68 = vector.shape_cast %67 : vector<1x1xf32> to vector<1x1x1xf32>
    %69 = vector.shape_cast %68 : vector<1x1x1xf32> to vector<1x1x1xf32>
    %70 = vector.broadcast %69 : vector<1x1x1xf32> to vector<1x1x128xf32>
    %c0_45 = arith.constant 0 : index
    %c0_46 = arith.constant 0 : index
    %c0_47 = arith.constant 0 : index
    %71 = vector.load %arg9[%c0_45, %c0_46, %c0_47] : memref<1x1x128xf32, #tpu.memory_space<vmem>>, vector<1x1x128xf32>
    tpu.vector_store %arg9[%c0_45, %c0_46, %c0_47], %70 {strides = array<i32>} : memref<1x1x128xf32, #tpu.memory_space<vmem>>, vector<1x1x128xf32>,
    return
  }
  func.func @transform_0(%arg0: i32) -> (i32, i32, i32, i32) {
    %c0_i32 = arith.constant 0 : i32
    %c0_i32_0 = arith.constant 0 : i32
    %c0_i32_1 = arith.constant 0 : i32
    %c0_i32_2 = arith.constant 0 : i32
    return %arg0, %c0_i32, %c0_i32_0, %c0_i32_1 : i32, i32, i32, i32
  }
  func.func @transform_1(%arg0: i32) -> (i32, i32) {
    %c0_i32 = arith.constant 0 : i32
    %c0_i32_0 = arith.constant 0 : i32
    %c0_i32_1 = arith.constant 0 : i32
    return %c0_i32, %c0_i32_0 : i32, i32
  }
  func.func @transform_2(%arg0: i32) -> (i32, i32) {
    %c0_i32 = arith.constant 0 : i32
    %c0_i32_0 = arith.constant 0 : i32
    %c0_i32_1 = arith.constant 0 : i32
    return %c0_i32, %c0_i32_0 : i32, i32
  }
  func.func @transform_3(%arg0: i32) -> (i32, i32) {
    %c0_i32 = arith.constant 0 : i32
    %c0_i32_0 = arith.constant 0 : i32
    %c0_i32_1 = arith.constant 0 : i32
    return %c0_i32, %c0_i32_0 : i32, i32
  }
  func.func @transform_4(%arg0: i32) -> (i32, i32) {
    %c0_i32 = arith.constant 0 : i32
    %c0_i32_0 = arith.constant 0 : i32
    %c0_i32_1 = arith.constant 0 : i32
    return %c0_i32, %c0_i32_0 : i32, i32
  }
  func.func @transform_5(%arg0: i32) -> (i32, i32) {
    %c0_i32 = arith.constant 0 : i32
    %c0_i32_0 = arith.constant 0 : i32
    %c0_i32_1 = arith.constant 0 : i32
    return %c0_i32, %c0_i32_0 : i32, i32
  }
  func.func @transform_6(%arg0: i32) -> (i32, i32) {
    %c0_i32 = arith.constant 0 : i32
    %c0_i32_0 = arith.constant 0 : i32
    %c0_i32_1 = arith.constant 0 : i32
    return %c0_i32, %c0_i32_0 : i32, i32
  }
  func.func @transform_7(%arg0: i32) -> (i32, i32, i32) {
    %c0_i32 = arith.constant 0 : i32
    %c0_i32_0 = arith.constant 0 : i32
    %c0_i32_1 = arith.constant 0 : i32
    return %arg0, %c0_i32, %c0_i32_0 : i32, i32, i32
  }
  func.func @transform_8(%arg0: i32) -> (i32, i32, i32) {
    %c0_i32 = arith.constant 0 : i32
    %c0_i32_0 = arith.constant 0 : i32
    %c0_i32_1 = arith.constant 0 : i32
    return %arg0, %c0_i32, %c0_i32_0 : i32, i32, i32
  }
}

</mosaic_0001>

<llo_original>
// kernel: discriminator_wrapper_forward.1
$region0: #{discriminator_wrapper_forward.1}
  #allocation0 [shape = 'u32[]', space=smem, size = 0x4, offset = 0x4, fixed_abs, tag = 'smem constant byte address 0x4 - core index']
  #allocation1 [shape = 'u32[72,128]{1,0:T(1,128)}', space=vmem, size = 0x9000, scoped, tag = 'internal scratch']
  #allocation2 [shape = 'bf16[18,18,4]{2,1,0:T(8,128)(2,1)}', space=vmem, size = 0x1b000, scoped, tag = 'scratch operand']
  #allocation3 [shape = 'bf16[18,18,32]{2,1,0:T(8,128)(2,1)}', space=vmem, size = 0x1b000, scoped, tag = 'scratch operand']
  #allocation4 [shape = 'f32[1,1]{1,0:T(1,128)S(1)}', space=vmem, size = 0x200, scoped, tag = 'scoped memory for discriminator_wrapper_forward.1']
  %s0 = inlined_call_operand.vmem [shape: bf16[2,16,16,4], index: 0, kind: input, shape index: {}]
  %s1 = inlined_call_operand.vmem [shape: bf16[36,32], index: 1, kind: input, shape index: {}]
  %s2 = inlined_call_operand.vmem [shape: f32[1,32], index: 2, kind: input, shape index: {}]
  %s3 = inlined_call_operand.vmem [shape: bf16[288,32], index: 3, kind: input, shape index: {}]
  %s4 = inlined_call_operand.vmem [shape: f32[1,32], index: 4, kind: input, shape index: {}]
  %s5 = inlined_call_operand.vmem [shape: f32[1,32], index: 5, kind: input, shape index: {}]
  %s6 = inlined_call_operand.<no memory space> [shape: f32[1,1], index: 6, kind: input, shape index: {}]
  %s7 = inlined_call_operand.vmem [shape: f32[2,1,32], index: 7, kind: input, shape index: {}]
  %s8 = inlined_call_operand.vmem [shape: f32[2,1,128], index: 8, kind: output, shape index: {}]
  %s9 = sld [smem:[#allocation0]]
  $region65: #{discriminator_wrapper_forward.1} parent=0
    _
  %s11 = ssub.s32 1, %s9
  %s12 = scalar_select 0, %s11, %s9
  %v13 = vstv %s6
  %14 = vst [vmem:[#allocation4] sm:$0x1] %v13
  loop: start=0, step=1, limit=4
  $region2: #{discriminator_wrapper_forward.1} parent=0 // loop_pre_header
    _
  $region3: #{discriminator_wrapper_forward.1} parent=0 // loop_header
    %s16 = sphi 0, %s20
    %p17 = scmp.ge.s32.totalorder %s16, 4
    %s26 = sphi 0, %s28
    %s29 = sphi 0, %s26
    %s30 = sphi 0, %s29
    %s46 = sphi 0, %s30
    %s50 = sphi 0, %s50
    %s52 = sphi 0, %s50
    %s53 = sphi 0, %s52
    %s67 = sphi 0, %s53
    %s71 = sphi 0, %s71
    %s73 = sphi 0, %s71
    %s74 = sphi 0, %s73
    %s88 = sphi 0, %s74
    %s92 = sphi 0, %s92
    %s94 = sphi 0, %s92
    %s95 = sphi 0, %s94
    %s109 = sphi 0, %s95
    %s113 = sphi 0, %s113
    %s115 = sphi 0, %s113
    %s116 = sphi 0, %s115
    %s130 = sphi 0, %s116
    %s134 = sphi 0, %s134
    %s136 = sphi 0, %s134
    %s137 = sphi 0, %s136
    %s151 = sphi 0, %s137
    %s155 = sphi 0, %s155
    %s157 = sphi 0, %s155
    %s158 = sphi 0, %s157
    %s172 = sphi 0, %s158
    %s178 = sphi 0, %s180
    %s181 = sphi 0, %s178
    %s182 = sphi 0, %s181
    %s198 = sphi 0, %s182
    %s204 = sphi 0, %s206
    %s207 = sphi 0, %s204
    %s208 = sphi 0, %s207
    %s224 = sphi 0, %s208
  $region4: #{discriminator_wrapper_forward.1} parent=0 // loop_header_branch
    %19 = sbr.rel (%p17) target = $region8
  $region5: #{discriminator_wrapper_forward.1} parent=0 // loop_body
    %s21 = ssub.s32 %s16, 1
    %s22 = ssub.s32 %s16, 2
    %s23 = sadd.s32 %s16, 1
    %s24 = ssub.s32 %s16, %s23
    %p25 = scmp.eq.s32.totalorder %s24, 0
    %s27 = sadd.s32 %s26, 1
    %s28 = scalar_select %p25, %s26, %s27
    %p31 = pneg %p25
    %p32 = scmp.eq.s32.totalorder %s16, 1
    %p33 = por %p31, %p32
    %p34 = scmp.ne.s32.totalorder %s26, %s29
    %p35 = scmp.eq.s32.totalorder %s16, 0
    %p36 = por %p34, %p35
    %p37 = scmp.ne.s32.totalorder %s26, %s29
    %p38 = scmp.eq.s32.totalorder %s21, 1
    %p39 = por %p37, %p38
    %p40 = scmp.ne.s32.totalorder %s29, %s30
    %p41 = scmp.eq.s32.totalorder %s21, 0
    %p42 = por %p40, %p41
    %p43 = scmp.ne.s32.totalorder %s29, %s30
    %p44 = scmp.eq.s32.totalorder %s22, 1
    %p45 = por %p43, %p44
    %p47 = scmp.ne.s32.totalorder %s30, %s46
    %p48 = scmp.eq.s32.totalorder %s22, 0
    %p49 = por %p47, %p48
    %s51 = sadd.s32 %s50, 1
    %p54 = scmp.eq.s32.totalorder %s16, 1
    %p55 = scmp.ne.s32.totalorder %s50, %s52
    %p56 = scmp.eq.s32.totalorder %s16, 0
    %p57 = por %p55, %p56
    %p58 = scmp.ne.s32.totalorder %s50, %s52
    %p59 = scmp.eq.s32.totalorder %s21, 1
    %p60 = por %p58, %p59
    %p61 = scmp.ne.s32.totalorder %s52, %s53
    %p62 = scmp.eq.s32.totalorder %s21, 0
    %p63 = por %p61, %p62
    %p64 = scmp.ne.s32.totalorder %s52, %s53
    %p65 = scmp.eq.s32.totalorder %s22, 1
    %p66 = por %p64, %p65
    %p68 = scmp.ne.s32.totalorder %s53, %s67
    %p69 = scmp.eq.s32.totalorder %s22, 0
    %p70 = por %p68, %p69
    %s72 = sadd.s32 %s71, 1
    %p75 = scmp.eq.s32.totalorder %s16, 1
    %p76 = scmp.ne.s32.totalorder %s71, %s73
    %p77 = scmp.eq.s32.totalorder %s16, 0
    %p78 = por %p76, %p77
    %p79 = scmp.ne.s32.totalorder %s71, %s73
    %p80 = scmp.eq.s32.totalorder %s21, 1
    %p81 = por %p79, %p80
    %p82 = scmp.ne.s32.totalorder %s73, %s74
    %p83 = scmp.eq.s32.totalorder %s21, 0
    %p84 = por %p82, %p83
    %p85 = scmp.ne.s32.totalorder %s73, %s74
    %p86 = scmp.eq.s32.totalorder %s22, 1
    %p87 = por %p85, %p86
    %p89 = scmp.ne.s32.totalorder %s74, %s88
    %p90 = scmp.eq.s32.totalorder %s22, 0
    %p91 = por %p89, %p90
    %s93 = sadd.s32 %s92, 1
    %p96 = scmp.eq.s32.totalorder %s16, 1
    %p97 = scmp.ne.s32.totalorder %s92, %s94
    %p98 = scmp.eq.s32.totalorder %s16, 0
    %p99 = por %p97, %p98
    %p100 = scmp.ne.s32.totalorder %s92, %s94
    %p101 = scmp.eq.s32.totalorder %s21, 1
    %p102 = por %p100, %p101
    %p103 = scmp.ne.s32.totalorder %s94, %s95
    %p104 = scmp.eq.s32.totalorder %s21, 0
    %p105 = por %p103, %p104
    %p106 = scmp.ne.s32.totalorder %s94, %s95
    %p107 = scmp.eq.s32.totalorder %s22, 1
    %p108 = por %p106, %p107
    %p110 = scmp.ne.s32.totalorder %s95, %s109
    %p111 = scmp.eq.s32.totalorder %s22, 0
    %p112 = por %p110, %p111
    %s114 = sadd.s32 %s113, 1
    %p117 = scmp.eq.s32.totalorder %s16, 1
    %p118 = scmp.ne.s32.totalorder %s113, %s115
    %p119 = scmp.eq.s32.totalorder %s16, 0
    %p120 = por %p118, %p119
    %p121 = scmp.ne.s32.totalorder %s113, %s115
    %p122 = scmp.eq.s32.totalorder %s21, 1
    %p123 = por %p121, %p122
    %p124 = scmp.ne.s32.totalorder %s115, %s116
    %p125 = scmp.eq.s32.totalorder %s21, 0
    %p126 = por %p124, %p125
    %p127 = scmp.ne.s32.totalorder %s115, %s116
    %p128 = scmp.eq.s32.totalorder %s22, 1
    %p129 = por %p127, %p128
    %p131 = scmp.ne.s32.totalorder %s116, %s130
    %p132 = scmp.eq.s32.totalorder %s22, 0
    %p133 = por %p131, %p132
    %s135 = sadd.s32 %s134, 1
    %p138 = scmp.eq.s32.totalorder %s16, 1
    %p139 = scmp.ne.s32.totalorder %s134, %s136
    %p140 = scmp.eq.s32.totalorder %s16, 0
    %p141 = por %p139, %p140
    %p142 = scmp.ne.s32.totalorder %s134, %s136
    %p143 = scmp.eq.s32.totalorder %s21, 1
    %p144 = por %p142, %p143
    %p145 = scmp.ne.s32.totalorder %s136, %s137
    %p146 = scmp.eq.s32.totalorder %s21, 0
    %p147 = por %p145, %p146
    %p148 = scmp.ne.s32.totalorder %s136, %s137
    %p149 = scmp.eq.s32.totalorder %s22, 1
    %p150 = por %p148, %p149
    %p152 = scmp.ne.s32.totalorder %s137, %s151
    %p153 = scmp.eq.s32.totalorder %s22, 0
    %p154 = por %p152, %p153
    %s156 = sadd.s32 %s155, 1
    %p159 = scmp.eq.s32.totalorder %s16, 1
    %p160 = scmp.ne.s32.totalorder %s155, %s157
    %p161 = scmp.eq.s32.totalorder %s16, 0
    %p162 = por %p160, %p161
    %p163 = scmp.ne.s32.totalorder %s155, %s157
    %p164 = scmp.eq.s32.totalorder %s21, 1
    %p165 = por %p163, %p164
    %p166 = scmp.ne.s32.totalorder %s157, %s158
    %p167 = scmp.eq.s32.totalorder %s21, 0
    %p168 = por %p166, %p167
    %p169 = scmp.ne.s32.totalorder %s157, %s158
    %p170 = scmp.eq.s32.totalorder %s22, 1
    %p171 = por %p169, %p170
    %p173 = scmp.ne.s32.totalorder %s158, %s172
    %p174 = scmp.eq.s32.totalorder %s22, 0
    %p175 = por %p173, %p174
    %s176 = ssub.s32 %s16, %s23
    %p177 = scmp.eq.s32.totalorder %s176, 0
    %s179 = sadd.s32 %s178, 1
    %s180 = scalar_select %p177, %s178, %s179
    %p183 = pneg %p177
    %p184 = scmp.eq.s32.totalorder %s16, 1
    %p185 = por %p183, %p184
    %p186 = scmp.ne.s32.totalorder %s178, %s181
    %p187 = scmp.eq.s32.totalorder %s16, 0
    %p188 = por %p186, %p187
    %p189 = scmp.ne.s32.totalorder %s178, %s181
    %p190 = scmp.eq.s32.totalorder %s21, 1
    %p191 = por %p189, %p190
    %p192 = scmp.ne.s32.totalorder %s181, %s182
    %p193 = scmp.eq.s32.totalorder %s21, 0
    %p194 = por %p192, %p193
    %p195 = scmp.ne.s32.totalorder %s181, %s182
    %p196 = scmp.eq.s32.totalorder %s22, 1
    %p197 = por %p195, %p196
    %p199 = scmp.ne.s32.totalorder %s182, %s198
    %p200 = scmp.eq.s32.totalorder %s22, 0
    %p201 = por %p199, %p200
    %s202 = ssub.s32 %s16, %s23
    %p203 = scmp.eq.s32.totalorder %s202, 0
    %s205 = sadd.s32 %s204, 1
    %s206 = scalar_select %p203, %s204, %s205
    %p209 = pneg %p203
    %p210 = scmp.eq.s32.totalorder %s16, 1
    %p211 = por %p209, %p210
    %p212 = scmp.ne.s32.totalorder %s204, %s207
    %p213 = scmp.eq.s32.totalorder %s16, 0
    %p214 = por %p212, %p213
    %p215 = scmp.ne.s32.totalorder %s204, %s207
    %p216 = scmp.eq.s32.totalorder %s21, 1
    %p217 = por %p215, %p216
    %p218 = scmp.ne.s32.totalorder %s207, %s208
    %p219 = scmp.eq.s32.totalorder %s21, 0
    %p220 = por %p218, %p219
    %p221 = scmp.ne.s32.totalorder %s207, %s208
    %p222 = scmp.eq.s32.totalorder %s22, 1
    %p223 = por %p221, %p222
    %p225 = scmp.ne.s32.totalorder %s208, %s224
    %p226 = scmp.eq.s32.totalorder %s22, 0
    %p227 = por %p225, %p226
    %p228 = scmp.le.s32.totalorder 1, %s16
    %p229 = scmp.lt.s32.totalorder %s16, 3
    %p230 = pnand %p228, %p229
    %p231 = pneg %p230
    // Predicated region
    $region9: #{discriminator_wrapper_forward.1} parent=5 // pred_check
      _
    $region10: #{discriminator_wrapper_forward.1} parent=5 // pred_check_branch
      %233 = sbr.rel (%p230) target = $region12
    $region11: #{discriminator_wrapper_forward.1} parent=5 // pred_region
      %s234 = ssub.s32 %s16, 1
      // Predicated region
      $region13: #{discriminator_wrapper_forward.1} parent=11 // pred_check
        %p235 = pneg %p63
      $region14: #{discriminator_wrapper_forward.1} parent=11 // pred_check_branch
        %237 = sbr.rel (%p235) target = $region16
      $region15: #{discriminator_wrapper_forward.1} parent=11 // pred_region
        _
      $region16: #{discriminator_wrapper_forward.1} parent=11 // pred_fallthru
        _
      // Predicated region
      $region17: #{discriminator_wrapper_forward.1} parent=11 // pred_check
        %p238 = pneg %p84
      $region18: #{discriminator_wrapper_forward.1} parent=11 // pred_check_branch
        %240 = sbr.rel (%p238) target = $region20
      $region19: #{discriminator_wrapper_forward.1} parent=11 // pred_region
        _
      $region20: #{discriminator_wrapper_forward.1} parent=11 // pred_fallthru
        _
      // Predicated region
      $region21: #{discriminator_wrapper_forward.1} parent=11 // pred_check
        %p241 = pneg %p105
      $region22: #{discriminator_wrapper_forward.1} parent=11 // pred_check_branch
        %243 = sbr.rel (%p241) target = $region24
      $region23: #{discriminator_wrapper_forward.1} parent=11 // pred_region
        _
      $region24: #{discriminator_wrapper_forward.1} parent=11 // pred_fallthru
        _
      // Predicated region
      $region25: #{discriminator_wrapper_forward.1} parent=11 // pred_check
        %p244 = pneg %p126
      $region26: #{discriminator_wrapper_forward.1} parent=11 // pred_check_branch
        %246 = sbr.rel (%p244) target = $region28
      $region27: #{discriminator_wrapper_forward.1} parent=11 // pred_region
        _
      $region28: #{discriminator_wrapper_forward.1} parent=11 // pred_fallthru
        _
      // Predicated region
      $region29: #{discriminator_wrapper_forward.1} parent=11 // pred_check
        %p247 = pneg %p147
      $region30: #{discriminator_wrapper_forward.1} parent=11 // pred_check_branch
        %249 = sbr.rel (%p247) target = $region32
      $region31: #{discriminator_wrapper_forward.1} parent=11 // pred_region
        _
      $region32: #{discriminator_wrapper_forward.1} parent=11 // pred_fallthru
        _
      // Predicated region
      $region33: #{discriminator_wrapper_forward.1} parent=11 // pred_check
        %p250 = pneg %p168
      $region34: #{discriminator_wrapper_forward.1} parent=11 // pred_check_branch
        %252 = sbr.rel (%p250) target = $region36
      $region35: #{discriminator_wrapper_forward.1} parent=11 // pred_region
        _
      $region36: #{discriminator_wrapper_forward.1} parent=11 // pred_fallthru
        _
    $region12: #{discriminator_wrapper_forward.1} parent=5 // pred_fallthru
      _
    %p253 = scmp.lt.s32.totalorder %s16, 2
    // Predicated region
    $region37: #{discriminator_wrapper_forward.1} parent=5 // pred_check
      %p254 = pneg %p253
    $region38: #{discriminator_wrapper_forward.1} parent=5 // pred_check_branch
      %256 = sbr.rel (%p254) target = $region40
    $region39: #{discriminator_wrapper_forward.1} parent=5 // pred_region
      // Predicated region
      $region41: #{discriminator_wrapper_forward.1} parent=39 // pred_check
        %p257 = pneg %p36
      $region42: #{discriminator_wrapper_forward.1} parent=39 // pred_check_branch
        %259 = sbr.rel (%p257) target = $region44
      $region43: #{discriminator_wrapper_forward.1} parent=39 // pred_region
        %p260 = scmp.lt.s32.totalorder %s16, 1
        %s261 = scalar_select %p260, %s16, 1
        %s262 = smul.addr %s261, 32
        %s263 = smul.addr %s262, 4
        %s264 = scalar_lea.vmem %s0, %s263
      $region44: #{discriminator_wrapper_forward.1} parent=39 // pred_fallthru
        _
      // Predicated region
      $region45: #{discriminator_wrapper_forward.1} parent=39 // pred_check
        %p265 = pneg %p188
      $region46: #{discriminator_wrapper_forward.1} parent=39 // pred_check_branch
        %267 = sbr.rel (%p265) target = $region48
      $region47: #{discriminator_wrapper_forward.1} parent=39 // pred_region
        %p268 = scmp.lt.s32.totalorder %s16, 1
        %s269 = scalar_select %p268, %s16, 1
        %s270 = scalar_lea.vmem %s7, %s269
      $region48: #{discriminator_wrapper_forward.1} parent=39 // pred_fallthru
        _
    $region40: #{discriminator_wrapper_forward.1} parent=5 // pred_fallthru
      _
    %p271 = scmp.le.s32.totalorder 1, %s16
    %p272 = scmp.lt.s32.totalorder %s16, 3
    %p273 = pnand %p271, %p272
    %p274 = pneg %p273
    // Predicated region
    $region49: #{discriminator_wrapper_forward.1} parent=5 // pred_check
      _
    $region50: #{discriminator_wrapper_forward.1} parent=5 // pred_check_branch
      %276 = sbr.rel (%p273) target = $region52
    $region51: #{discriminator_wrapper_forward.1} parent=5 // pred_region
      %s277 = ssub.s32 %s16, 1
      %p278 = scmp.lt.s32.totalorder %s21, 1
      %s279 = scalar_select %p278, %s21, 1
      %s280 = smul.addr %s279, 32
      %s281 = smul.addr %s280, 4
      %s282 = scalar_lea.vmem %s0, %s281
      %p283 = pneg %p42
      %p284 = pneg %p39
      %p285 = pneg %p63
      %p286 = pneg %p60
      %p287 = pneg %p84
      %p288 = pneg %p81
      %p289 = pneg %p105
      %p290 = pneg %p102
      %p291 = pneg %p126
      %p292 = pneg %p123
      %p293 = pneg %p147
      %p294 = pneg %p144
      %p295 = pneg %p168
      %p296 = pneg %p165
      %p297 = scmp.lt.s32.totalorder %s21, 1
      %s298 = scalar_select %p297, %s21, 1
      %s299 = scalar_lea.vmem %s7, %s298
      %p300 = pneg %p194
      %p301 = pneg %p191
      %p302 = pneg %p220
      %p303 = pneg %p217
      %p304 = scmp.lt.s32.totalorder %s21, 1
      %s305 = scalar_select %p304, %s21, 1
      %s306 = scalar_lea.vmem %s8, %s305
      %p307 = scmp.lt.s32.totalorder %s21, 1
      %s308 = scalar_select %p307, %s21, 1
      %s309 = smul.addr %s308, 32
      %s310 = smul.addr %s309, 4
      %s311 = scalar_lea.vmem %s0, %s310
      %p312 = scmp.lt.s32.totalorder %s21, 1
      %s313 = scalar_select %p312, %s21, 1
      %s314 = scalar_lea.vmem %s7, %s313
      %p315 = scmp.lt.s32.totalorder %s21, 1
      %s316 = scalar_select %p315, %s21, 1
      %s317 = scalar_lea.vmem %s8, %s316
      %vm319 = vcmask 27648
      %320 = vst.msk [vmem:[#allocation2] sm:$0xf] %vm319, 0
      %321 = vst.msk [vmem:[#allocation2 + $0x4] sm:$0xf] %vm319, 0
      %vm322 = vcmask 24576
      %323 = vst.msk [vmem:[#allocation2 + $0x8] sm:$0x1] %vm322, 0
      %324 = vst.msk [vmem:[#allocation2 + $0xc] sm:$0xf] %vm319, 0
      %325 = vst.msk [vmem:[#allocation2 + $0x10] sm:$0xf] %vm319, 0
      %326 = vst.msk [vmem:[#allocation2 + $0x14] sm:$0x1] %vm322, 0
      %327 = vst.msk [vmem:[#allocation2 + $0x18] sm:$0xf] %vm319, 0
      %328 = vst.msk [vmem:[#allocation2 + $0x1c] sm:$0xf] %vm319, 0
      %329 = vst.msk [vmem:[#allocation2 + $0x20] sm:$0x1] %vm322, 0
      %330 = vst.msk [vmem:[#allocation2 + $0x24] sm:$0xf] %vm319, 0
      %331 = vst.msk [vmem:[#allocation2 + $0x28] sm:$0xf] %vm319, 0
      %332 = vst.msk [vmem:[#allocation2 + $0x2c] sm:$0x1] %vm322, 0
      %333 = vst.msk [vmem:[#allocation2 + $0x30] sm:$0xf] %vm319, 0
      %334 = vst.msk [vmem:[#allocation2 + $0x34] sm:$0xf] %vm319, 0
      %335 = vst.msk [vmem:[#allocation2 + $0x38] sm:$0x1] %vm322, 0
      %336 = vst.msk [vmem:[#allocation2 + $0x3c] sm:$0xf] %vm319, 0
      %337 = vst.msk [vmem:[#allocation2 + $0x40] sm:$0xf] %vm319, 0
      %338 = vst.msk [vmem:[#allocation2 + $0x44] sm:$0x1] %vm322, 0
      %339 = vst.msk [vmem:[#allocation2 + $0x48] sm:$0xf] %vm319, 0
      %340 = vst.msk [vmem:[#allocation2 + $0x4c] sm:$0xf] %vm319, 0
      %341 = vst.msk [vmem:[#allocation2 + $0x50] sm:$0x1] %vm322, 0
      %342 = vst.msk [vmem:[#allocation2 + $0x54] sm:$0xf] %vm319, 0
      %343 = vst.msk [vmem:[#allocation2 + $0x58] sm:$0xf] %vm319, 0
      %344 = vst.msk [vmem:[#allocation2 + $0x5c] sm:$0x1] %vm322, 0
      %345 = vst.msk [vmem:[#allocation2 + $0x60] sm:$0xf] %vm319, 0
      %346 = vst.msk [vmem:[#allocation2 + $0x64] sm:$0xf] %vm319, 0
      %347 = vst.msk [vmem:[#allocation2 + $0x68] sm:$0x1] %vm322, 0
      %348 = vst.msk [vmem:[#allocation2 + $0x6c] sm:$0xf] %vm319, 0
      %349 = vst.msk [vmem:[#allocation2 + $0x70] sm:$0xf] %vm319, 0
      %350 = vst.msk [vmem:[#allocation2 + $0x74] sm:$0x1] %vm322, 0
      %351 = vst.msk [vmem:[#allocation2 + $0x78] sm:$0xf] %vm319, 0
      %352 = vst.msk [vmem:[#allocation2 + $0x7c] sm:$0xf] %vm319, 0
      %353 = vst.msk [vmem:[#allocation2 + $0x80] sm:$0x1] %vm322, 0
      %354 = vst.msk [vmem:[#allocation2 + $0x84] sm:$0xf] %vm319, 0
      %355 = vst.msk [vmem:[#allocation2 + $0x88] sm:$0xf] %vm319, 0
      %356 = vst.msk [vmem:[#allocation2 + $0x8c] sm:$0x1] %vm322, 0
      %357 = vst.msk [vmem:[#allocation2 + $0x90] sm:$0xf] %vm319, 0
      %358 = vst.msk [vmem:[#allocation2 + $0x94] sm:$0xf] %vm319, 0
      %359 = vst.msk [vmem:[#allocation2 + $0x98] sm:$0x1] %vm322, 0
      %360 = vst.msk [vmem:[#allocation2 + $0x9c] sm:$0xf] %vm319, 0
      %361 = vst.msk [vmem:[#allocation2 + $0xa0] sm:$0xf] %vm319, 0
      %362 = vst.msk [vmem:[#allocation2 + $0xa4] sm:$0x1] %vm322, 0
      %363 = vst.msk [vmem:[#allocation2 + $0xa8] sm:$0xf] %vm319, 0
      %364 = vst.msk [vmem:[#allocation2 + $0xac] sm:$0xf] %vm319, 0
      %365 = vst.msk [vmem:[#allocation2 + $0xb0] sm:$0x1] %vm322, 0
      %366 = vst.msk [vmem:[#allocation2 + $0xb4] sm:$0xf] %vm319, 0
      %367 = vst.msk [vmem:[#allocation2 + $0xb8] sm:$0xf] %vm319, 0
      %368 = vst.msk [vmem:[#allocation2 + $0xbc] sm:$0x1] %vm322, 0
      %369 = vst.msk [vmem:[#allocation2 + $0xc0] sm:$0xf] %vm319, 0
      %370 = vst.msk [vmem:[#allocation2 + $0xc4] sm:$0xf] %vm319, 0
      %371 = vst.msk [vmem:[#allocation2 + $0xc8] sm:$0x1] %vm322, 0
      %372 = vst.msk [vmem:[#allocation2 + $0xcc] sm:$0xf] %vm319, 0
      %373 = vst.msk [vmem:[#allocation2 + $0xd0] sm:$0xf] %vm319, 0
      %374 = vst.msk [vmem:[#allocation2 + $0xd4] sm:$0x1] %vm322, 0
      %vm375 = vcmask 257024
      %376 = vst.msk [vmem:[#allocation3] sm:$0xf] %vm375, 0
      %377 = vst.msk [vmem:[#allocation3 + $0x4] sm:$0xf] %vm375, 0
      %vm378 = vcmask 253952
      %379 = vst.msk [vmem:[#allocation3 + $0x8] sm:$0x1] %vm378, 0
      %380 = vst.msk [vmem:[#allocation3 + $0xc] sm:$0xf] %vm375, 0
      %381 = vst.msk [vmem:[#allocation3 + $0x10] sm:$0xf] %vm375, 0
      %382 = vst.msk [vmem:[#allocation3 + $0x14] sm:$0x1] %vm378, 0
      %383 = vst.msk [vmem:[#allocation3 + $0x18] sm:$0xf] %vm375, 0
      %384 = vst.msk [vmem:[#allocation3 + $0x1c] sm:$0xf] %vm375, 0
      %385 = vst.msk [vmem:[#allocation3 + $0x20] sm:$0x1] %vm378, 0
      %386 = vst.msk [vmem:[#allocation3 + $0x24] sm:$0xf] %vm375, 0
      %387 = vst.msk [vmem:[#allocation3 + $0x28] sm:$0xf] %vm375, 0
      %388 = vst.msk [vmem:[#allocation3 + $0x2c] sm:$0x1] %vm378, 0
      %389 = vst.msk [vmem:[#allocation3 + $0x30] sm:$0xf] %vm375, 0
      %390 = vst.msk [vmem:[#allocation3 + $0x34] sm:$0xf] %vm375, 0
      %391 = vst.msk [vmem:[#allocation3 + $0x38] sm:$0x1] %vm378, 0
      %392 = vst.msk [vmem:[#allocation3 + $0x3c] sm:$0xf] %vm375, 0
      %393 = vst.msk [vmem:[#allocation3 + $0x40] sm:$0xf] %vm375, 0
      %394 = vst.msk [vmem:[#allocation3 + $0x44] sm:$0x1] %vm378, 0
      %395 = vst.msk [vmem:[#allocation3 + $0x48] sm:$0xf] %vm375, 0
      %396 = vst.msk [vmem:[#allocation3 + $0x4c] sm:$0xf] %vm375, 0
      %397 = vst.msk [vmem:[#allocation3 + $0x50] sm:$0x1] %vm378, 0
      %398 = vst.msk [vmem:[#allocation3 + $0x54] sm:$0xf] %vm375, 0
      %399 = vst.msk [vmem:[#allocation3 + $0x58] sm:$0xf] %vm375, 0
      %400 = vst.msk [vmem:[#allocation3 + $0x5c] sm:$0x1] %vm378, 0
      %401 = vst.msk [vmem:[#allocation3 + $0x60] sm:$0xf] %vm375, 0
      %402 = vst.msk [vmem:[#allocation3 + $0x64] sm:$0xf] %vm375, 0
      %403 = vst.msk [vmem:[#allocation3 + $0x68] sm:$0x1] %vm378, 0
      %404 = vst.msk [vmem:[#allocation3 + $0x6c] sm:$0xf] %vm375, 0
      %405 = vst.msk [vmem:[#allocation3 + $0x70] sm:$0xf] %vm375, 0
      %406 = vst.msk [vmem:[#allocation3 + $0x74] sm:$0x1] %vm378, 0
      %407 = vst.msk [vmem:[#allocation3 + $0x78] sm:$0xf] %vm375, 0
      %408 = vst.msk [vmem:[#allocation3 + $0x7c] sm:$0xf] %vm375, 0
      %409 = vst.msk [vmem:[#allocation3 + $0x80] sm:$0x1] %vm378, 0
      %410 = vst.msk [vmem:[#allocation3 + $0x84] sm:$0xf] %vm375, 0
      %411 = vst.msk [vmem:[#allocation3 + $0x88] sm:$0xf] %vm375, 0
      %412 = vst.msk [vmem:[#allocation3 + $0x8c] sm:$0x1] %vm378, 0
      %413 = vst.msk [vmem:[#allocation3 + $0x90] sm:$0xf] %vm375, 0
      %414 = vst.msk [vmem:[#allocation3 + $0x94] sm:$0xf] %vm375, 0
      %415 = vst.msk [vmem:[#allocation3 + $0x98] sm:$0x1] %vm378, 0
      %416 = vst.msk [vmem:[#allocation3 + $0x9c] sm:$0xf] %vm375, 0
      %417 = vst.msk [vmem:[#allocation3 + $0xa0] sm:$0xf] %vm375, 0
      %418 = vst.msk [vmem:[#allocation3 + $0xa4] sm:$0x1] %vm378, 0
      %419 = vst.msk [vmem:[#allocation3 + $0xa8] sm:$0xf] %vm375, 0
      %420 = vst.msk [vmem:[#allocation3 + $0xac] sm:$0xf] %vm375, 0
      %421 = vst.msk [vmem:[#allocation3 + $0xb0] sm:$0x1] %vm378, 0
      %422 = vst.msk [vmem:[#allocation3 + $0xb4] sm:$0xf] %vm375, 0
      %423 = vst.msk [vmem:[#allocation3 + $0xb8] sm:$0xf] %vm375, 0
      %424 = vst.msk [vmem:[#allocation3 + $0xbc] sm:$0x1] %vm378, 0
      %425 = vst.msk [vmem:[#allocation3 + $0xc0] sm:$0xf] %vm375, 0
      %426 = vst.msk [vmem:[#allocation3 + $0xc4] sm:$0xf] %vm375, 0
      %427 = vst.msk [vmem:[#allocation3 + $0xc8] sm:$0x1] %vm378, 0
      %428 = vst.msk [vmem:[#allocation3 + $0xcc] sm:$0xf] %vm375, 0
      %429 = vst.msk [vmem:[#allocation3 + $0xd0] sm:$0xf] %vm375, 0
      %430 = vst.msk [vmem:[#allocation3 + $0xd4] sm:$0x1] %vm378, 0
      %v431 = vld [vmem:[%s311] sm:$0xf]
      %v432 = vld [vmem:[%s311 + $0x4] sm:$0xf]
      %v433 = vld [vmem:[%s311 + $0x8] sm:$0xf]
      %v434 = vld [vmem:[%s311 + $0xc] sm:$0xf]
      %v435 = vld [vmem:[%s311 + $0x10] sm:$0xf]
      %v436 = vld [vmem:[%s311 + $0x14] sm:$0xf]
      %v437 = vld [vmem:[%s311 + $0x18] sm:$0xf]
      %v438 = vld [vmem:[%s311 + $0x1c] sm:$0xf]
      %v439 = vld [vmem:[%s311 + $0x20] sm:$0xf]
      %v440 = vld [vmem:[%s311 + $0x24] sm:$0xf]
      %v441 = vld [vmem:[%s311 + $0x28] sm:$0xf]
      %v442 = vld [vmem:[%s311 + $0x2c] sm:$0xf]
      %v443 = vld [vmem:[%s311 + $0x30] sm:$0xf]
      %v444 = vld [vmem:[%s311 + $0x34] sm:$0xf]
      %v445 = vld [vmem:[%s311 + $0x38] sm:$0xf]
      %v446 = vld [vmem:[%s311 + $0x3c] sm:$0xf]
      %v447 = vld [vmem:[%s311 + $0x40] sm:$0xf]
      %v448 = vld [vmem:[%s311 + $0x44] sm:$0xf]
      %v449 = vld [vmem:[%s311 + $0x48] sm:$0xf]
      %v450 = vld [vmem:[%s311 + $0x4c] sm:$0xf]
      %v451 = vld [vmem:[%s311 + $0x50] sm:$0xf]
      %v452 = vld [vmem:[%s311 + $0x54] sm:$0xf]
      %v453 = vld [vmem:[%s311 + $0x58] sm:$0xf]
      %v454 = vld [vmem:[%s311 + $0x5c] sm:$0xf]
      %v455 = vld [vmem:[%s311 + $0x60] sm:$0xf]
      %v456 = vld [vmem:[%s311 + $0x64] sm:$0xf]
      %v457 = vld [vmem:[%s311 + $0x68] sm:$0xf]
      %v458 = vld [vmem:[%s311 + $0x6c] sm:$0xf]
      %v459 = vld [vmem:[%s311 + $0x70] sm:$0xf]
      %v460 = vld [vmem:[%s311 + $0x74] sm:$0xf]
      %v461 = vld [vmem:[%s311 + $0x78] sm:$0xf]
      %v462 = vld [vmem:[%s311 + $0x7c] sm:$0xf]
      %vm463 = vsmask.f32 256
      %vm464 = vsmask.f32 4368
      %vm465 = vmor %vm463, %vm464
      %v467 = vshrl.u32 %v431, 16
      %v469 = vrot.slane %v467, 7
      %v470 = vshll.u32 %v431, 16
      %v472 = vor.u32 %v469, %v470
      %v473 = vrot.slane %v469, 4
      %v475 = vshrl.u32 %v432, 16
      %v477 = vrot.slane %v475, 7
      %v478 = vshll.u32 %v432, 16
      %v480 = vor.u32 %v477, %v478
      %v481 = vsel %vm465, %v473, %v480
      %v482 = vrot.slane %v477, 4
      %v484 = vshrl.u32 %v433, 16
      %v486 = vrot.slane %v484, 7
      %v487 = vshll.u32 %v433, 16
      %v489 = vor.u32 %v486, %v487
      %v490 = vrot.slane %v486, 4
      %v492 = vshrl.u32 %v434, 16
      %v494 = vrot.slane %v492, 7
      %v495 = vshll.u32 %v434, 16
      %v497 = vor.u32 %v494, %v495
      %v498 = vsel %vm465, %v490, %v497
      %v499 = vrot.slane %v494, 4
      %v501 = vshrl.u32 %v435, 16
      %v503 = vrot.slane %v501, 7
      %v504 = vshll.u32 %v435, 16
      %v506 = vor.u32 %v503, %v504
      %v507 = vrot.slane %v503, 4
      %v509 = vshrl.u32 %v436, 16
      %v511 = vrot.slane %v509, 7
      %v512 = vshll.u32 %v436, 16
      %v514 = vor.u32 %v511, %v512
      %v515 = vsel %vm465, %v507, %v514
      %v516 = vrot.slane %v511, 4
      %v518 = vshrl.u32 %v437, 16
      %v520 = vrot.slane %v518, 7
      %v521 = vshll.u32 %v437, 16
      %v523 = vor.u32 %v520, %v521
      %v524 = vrot.slane %v520, 4
      %v526 = vshrl.u32 %v438, 16
      %v528 = vrot.slane %v526, 7
      %v529 = vshll.u32 %v438, 16
      %v531 = vor.u32 %v528, %v529
      %v532 = vsel %vm465, %v524, %v531
      %v533 = vrot.slane %v528, 4
      %v535 = vshrl.u32 %v439, 16
      %v537 = vrot.slane %v535, 7
      %v538 = vshll.u32 %v439, 16
      %v540 = vor.u32 %v537, %v538
      %v541 = vrot.slane %v537, 4
      %v543 = vshrl.u32 %v440, 16
      %v545 = vrot.slane %v543, 7
      %v546 = vshll.u32 %v440, 16
      %v548 = vor.u32 %v545, %v546
      %v549 = vsel %vm465, %v541, %v548
      %v550 = vrot.slane %v545, 4
      %v552 = vshrl.u32 %v441, 16
      %v554 = vrot.slane %v552, 7
      %v555 = vshll.u32 %v441, 16
      %v557 = vor.u32 %v554, %v555
      %v558 = vrot.slane %v554, 4
      %v560 = vshrl.u32 %v442, 16
      %v562 = vrot.slane %v560, 7
      %v563 = vshll.u32 %v442, 16
      %v565 = vor.u32 %v562, %v563
      %v566 = vsel %vm465, %v558, %v565
      %v567 = vrot.slane %v562, 4
      %v569 = vshrl.u32 %v443, 16
      %v571 = vrot.slane %v569, 7
      %v572 = vshll.u32 %v443, 16
      %v574 = vor.u32 %v571, %v572
      %v575 = vrot.slane %v571, 4
      %v577 = vshrl.u32 %v444, 16
      %v579 = vrot.slane %v577, 7
      %v580 = vshll.u32 %v444, 16
      %v582 = vor.u32 %v579, %v580
      %v583 = vsel %vm465, %v575, %v582
      %v584 = vrot.slane %v579, 4
      %v586 = vshrl.u32 %v445, 16
      %v588 = vrot.slane %v586, 7
      %v589 = vshll.u32 %v445, 16
      %v591 = vor.u32 %v588, %v589
      %v592 = vrot.slane %v588, 4
      %v594 = vshrl.u32 %v446, 16
      %v596 = vrot.slane %v594, 7
      %v597 = vshll.u32 %v446, 16
      %v599 = vor.u32 %v596, %v597
      %v600 = vsel %vm465, %v592, %v599
      %v601 = vrot.slane %v596, 4
      %v603 = vshrl.u32 %v447, 16
      %v605 = vrot.slane %v603, 7
      %v606 = vshll.u32 %v447, 16
      %v608 = vor.u32 %v605, %v606
      %v609 = vrot.slane %v605, 4
      %v611 = vshrl.u32 %v448, 16
      %v613 = vrot.slane %v611, 7
      %v614 = vshll.u32 %v448, 16
      %v616 = vor.u32 %v613, %v614
      %v617 = vsel %vm465, %v609, %v616
      %v618 = vrot.slane %v613, 4
      %v620 = vshrl.u32 %v449, 16
      %v622 = vrot.slane %v620, 7
      %v623 = vshll.u32 %v449, 16
      %v625 = vor.u32 %v622, %v623
      %v626 = vrot.slane %v622, 4
      %v628 = vshrl.u32 %v450, 16
      %v630 = vrot.slane %v628, 7
      %v631 = vshll.u32 %v450, 16
      %v633 = vor.u32 %v630, %v631
      %v634 = vsel %vm465, %v626, %v633
      %v635 = vrot.slane %v630, 4
      %v637 = vshrl.u32 %v451, 16
      %v639 = vrot.slane %v637, 7
      %v640 = vshll.u32 %v451, 16
      %v642 = vor.u32 %v639, %v640
      %v643 = vrot.slane %v639, 4
      %v645 = vshrl.u32 %v452, 16
      %v647 = vrot.slane %v645, 7
      %v648 = vshll.u32 %v452, 16
      %v650 = vor.u32 %v647, %v648
      %v651 = vsel %vm465, %v643, %v650
      %v652 = vrot.slane %v647, 4
      %v654 = vshrl.u32 %v453, 16
      %v656 = vrot.slane %v654, 7
      %v657 = vshll.u32 %v453, 16
      %v659 = vor.u32 %v656, %v657
      %v660 = vrot.slane %v656, 4
      %v662 = vshrl.u32 %v454, 16
      %v664 = vrot.slane %v662, 7
      %v665 = vshll.u32 %v454, 16
      %v667 = vor.u32 %v664, %v665
      %v668 = vsel %vm465, %v660, %v667
      %v669 = vrot.slane %v664, 4
      %v671 = vshrl.u32 %v455, 16
      %v673 = vrot.slane %v671, 7
      %v674 = vshll.u32 %v455, 16
      %v676 = vor.u32 %v673, %v674
      %v677 = vrot.slane %v673, 4
      %v679 = vshrl.u32 %v456, 16
      %v681 = vrot.slane %v679, 7
      %v682 = vshll.u32 %v456, 16
      %v684 = vor.u32 %v681, %v682
      %v685 = vsel %vm465, %v677, %v684
      %v686 = vrot.slane %v681, 4
      %v688 = vshrl.u32 %v457, 16
      %v690 = vrot.slane %v688, 7
      %v691 = vshll.u32 %v457, 16
      %v693 = vor.u32 %v690, %v691
      %v694 = vrot.slane %v690, 4
      %v696 = vshrl.u32 %v458, 16
      %v698 = vrot.slane %v696, 7
      %v699 = vshll.u32 %v458, 16
      %v701 = vor.u32 %v698, %v699
      %v702 = vsel %vm465, %v694, %v701
      %v703 = vrot.slane %v698, 4
      %v705 = vshrl.u32 %v459, 16
      %v707 = vrot.slane %v705, 7
      %v708 = vshll.u32 %v459, 16
      %v710 = vor.u32 %v707, %v708
      %v711 = vrot.slane %v707, 4
      %v713 = vshrl.u32 %v460, 16
      %v715 = vrot.slane %v713, 7
      %v716 = vshll.u32 %v460, 16
      %v718 = vor.u32 %v715, %v716
      %v719 = vsel %vm465, %v711, %v718
      %v720 = vrot.slane %v715, 4
      %v722 = vshrl.u32 %v461, 16
      %v724 = vrot.slane %v722, 7
      %v725 = vshll.u32 %v461, 16
      %v727 = vor.u32 %v724, %v725
      %v728 = vrot.slane %v724, 4
      %v730 = vshrl.u32 %v462, 16
      %v732 = vrot.slane %v730, 7
      %v733 = vshll.u32 %v462, 16
      %v735 = vor.u32 %v732, %v733
      %v736 = vsel %vm465, %v728, %v735
      %v737 = vrot.slane %v732, 4
      %s786 = scalar_lea.vmem [#allocation2], 12
      %vm787 = vcmask 27648
      %vm788 = vsmask.f32 7938
      %vm789 = vmand %vm787, %vm788
      %v790 = vld [vmem:[%s786] sm:$0xf]
      %v791 = vsel %vm789, %v472, %v790
      %792 = vst [vmem:[%s786] sm:$0xf] %v791
      %793 = vst.msk [vmem:[%s786 + $0x4] sm:$0xf] %vm319, %v481
      %vm794 = vcmask 24576
      %vm795 = vmand %vm794, %vm463
      %v796 = vld [vmem:[%s786 + $0x8] sm:$0x1]
      %v797 = vsel %vm795, %v482, %v796
      %798 = vst [vmem:[%s786 + $0x8] sm:$0x1] %v797
      %v799 = vld [vmem:[%s786 + $0xc] sm:$0xf]
      %v800 = vsel %vm789, %v489, %v799
      %801 = vst [vmem:[%s786 + $0xc] sm:$0xf] %v800
      %802 = vst.msk [vmem:[%s786 + $0x10] sm:$0xf] %vm319, %v498
      %v803 = vld [vmem:[%s786 + $0x14] sm:$0x1]
      %v804 = vsel %vm795, %v499, %v803
      %805 = vst [vmem:[%s786 + $0x14] sm:$0x1] %v804
      %v806 = vld [vmem:[%s786 + $0x18] sm:$0xf]
      %v807 = vsel %vm789, %v506, %v806
      %808 = vst [vmem:[%s786 + $0x18] sm:$0xf] %v807
      %809 = vst.msk [vmem:[%s786 + $0x1c] sm:$0xf] %vm319, %v515
      %v810 = vld [vmem:[%s786 + $0x20] sm:$0x1]
      %v811 = vsel %vm795, %v516, %v810
      %812 = vst [vmem:[%s786 + $0x20] sm:$0x1] %v811
      %v813 = vld [vmem:[%s786 + $0x24] sm:$0xf]
      %v814 = vsel %vm789, %v523, %v813
      %815 = vst [vmem:[%s786 + $0x24] sm:$0xf] %v814
      %816 = vst.msk [vmem:[%s786 + $0x28] sm:$0xf] %vm319, %v532
      %v817 = vld [vmem:[%s786 + $0x2c] sm:$0x1]
      %v818 = vsel %vm795, %v533, %v817
      %819 = vst [vmem:[%s786 + $0x2c] sm:$0x1] %v818
      %v820 = vld [vmem:[%s786 + $0x30] sm:$0xf]
      %v821 = vsel %vm789, %v540, %v820
      %822 = vst [vmem:[%s786 + $0x30] sm:$0xf] %v821
      %823 = vst.msk [vmem:[%s786 + $0x34] sm:$0xf] %vm319, %v549
      %v824 = vld [vmem:[%s786 + $0x38] sm:$0x1]
      %v825 = vsel %vm795, %v550, %v824
      %826 = vst [vmem:[%s786 + $0x38] sm:$0x1] %v825
      %v827 = vld [vmem:[%s786 + $0x3c] sm:$0xf]
      %v828 = vsel %vm789, %v557, %v827
      %829 = vst [vmem:[%s786 + $0x3c] sm:$0xf] %v828
      %830 = vst.msk [vmem:[%s786 + $0x40] sm:$0xf] %vm319, %v566
      %v831 = vld [vmem:[%s786 + $0x44] sm:$0x1]
      %v832 = vsel %vm795, %v567, %v831
      %833 = vst [vmem:[%s786 + $0x44] sm:$0x1] %v832
      %v834 = vld [vmem:[%s786 + $0x48] sm:$0xf]
      %v835 = vsel %vm789, %v574, %v834
      %836 = vst [vmem:[%s786 + $0x48] sm:$0xf] %v835
      %837 = vst.msk [vmem:[%s786 + $0x4c] sm:$0xf] %vm319, %v583
      %v838 = vld [vmem:[%s786 + $0x50] sm:$0x1]
      %v839 = vsel %vm795, %v584, %v838
      %840 = vst [vmem:[%s786 + $0x50] sm:$0x1] %v839
      %v841 = vld [vmem:[%s786 + $0x54] sm:$0xf]
      %v842 = vsel %vm789, %v591, %v841
      %843 = vst [vmem:[%s786 + $0x54] sm:$0xf] %v842
      %844 = vst.msk [vmem:[%s786 + $0x58] sm:$0xf] %vm319, %v600
      %v845 = vld [vmem:[%s786 + $0x5c] sm:$0x1]
      %v846 = vsel %vm795, %v601, %v845
      %847 = vst [vmem:[%s786 + $0x5c] sm:$0x1] %v846
      %v848 = vld [vmem:[%s786 + $0x60] sm:$0xf]
      %v849 = vsel %vm789, %v608, %v848
      %850 = vst [vmem:[%s786 + $0x60] sm:$0xf] %v849
      %851 = vst.msk [vmem:[%s786 + $0x64] sm:$0xf] %vm319, %v617
      %v852 = vld [vmem:[%s786 + $0x68] sm:$0x1]
      %v853 = vsel %vm795, %v618, %v852
      %854 = vst [vmem:[%s786 + $0x68] sm:$0x1] %v853
      %v855 = vld [vmem:[%s786 + $0x6c] sm:$0xf]
      %v856 = vsel %vm789, %v625, %v855
      %857 = vst [vmem:[%s786 + $0x6c] sm:$0xf] %v856
      %858 = vst.msk [vmem:[%s786 + $0x70] sm:$0xf] %vm319, %v634
      %v859 = vld [vmem:[%s786 + $0x74] sm:$0x1]
      %v860 = vsel %vm795, %v635, %v859
      %861 = vst [vmem:[%s786 + $0x74] sm:$0x1] %v860
      %v862 = vld [vmem:[%s786 + $0x78] sm:$0xf]
      %v863 = vsel %vm789, %v642, %v862
      %864 = vst [vmem:[%s786 + $0x78] sm:$0xf] %v863
      %865 = vst.msk [vmem:[%s786 + $0x7c] sm:$0xf] %vm319, %v651
      %v866 = vld [vmem:[%s786 + $0x80] sm:$0x1]
      %v867 = vsel %vm795, %v652, %v866
      %868 = vst [vmem:[%s786 + $0x80] sm:$0x1] %v867
      %v869 = vld [vmem:[%s786 + $0x84] sm:$0xf]
      %v870 = vsel %vm789, %v659, %v869
      %871 = vst [vmem:[%s786 + $0x84] sm:$0xf] %v870
      %872 = vst.msk [vmem:[%s786 + $0x88] sm:$0xf] %vm319, %v668
      %v873 = vld [vmem:[%s786 + $0x8c] sm:$0x1]
      %v874 = vsel %vm795, %v669, %v873
      %875 = vst [vmem:[%s786 + $0x8c] sm:$0x1] %v874
      %v876 = vld [vmem:[%s786 + $0x90] sm:$0xf]
      %v877 = vsel %vm789, %v676, %v876
      %878 = vst [vmem:[%s786 + $0x90] sm:$0xf] %v877
      %879 = vst.msk [vmem:[%s786 + $0x94] sm:$0xf] %vm319, %v685
      %v880 = vld [vmem:[%s786 + $0x98] sm:$0x1]
      %v881 = vsel %vm795, %v686, %v880
      %882 = vst [vmem:[%s786 + $0x98] sm:$0x1] %v881
      %v883 = vld [vmem:[%s786 + $0x9c] sm:$0xf]
      %v884 = vsel %vm789, %v693, %v883
      %885 = vst [vmem:[%s786 + $0x9c] sm:$0xf] %v884
      %886 = vst.msk [vmem:[%s786 + $0xa0] sm:$0xf] %vm319, %v702
      %v887 = vld [vmem:[%s786 + $0xa4] sm:$0x1]
      %v888 = vsel %vm795, %v703, %v887
      %889 = vst [vmem:[%s786 + $0xa4] sm:$0x1] %v888
      %v890 = vld [vmem:[%s786 + $0xa8] sm:$0xf]
      %v891 = vsel %vm789, %v710, %v890
      %892 = vst [vmem:[%s786 + $0xa8] sm:$0xf] %v891
      %893 = vst.msk [vmem:[%s786 + $0xac] sm:$0xf] %vm319, %v719
      %v894 = vld [vmem:[%s786 + $0xb0] sm:$0x1]
      %v895 = vsel %vm795, %v720, %v894
      %896 = vst [vmem:[%s786 + $0xb0] sm:$0x1] %v895
      %v897 = vld [vmem:[%s786 + $0xb4] sm:$0xf]
      %v898 = vsel %vm789, %v727, %v897
      %899 = vst [vmem:[%s786 + $0xb4] sm:$0xf] %v898
      %900 = vst.msk [vmem:[%s786 + $0xb8] sm:$0xf] %vm319, %v736
      %v901 = vld [vmem:[%s786 + $0xbc] sm:$0x1]
      %v902 = vsel %vm795, %v737, %v901
      %903 = vst [vmem:[%s786 + $0xbc] sm:$0x1] %v902
      %v904 = vld [vmem:[#allocation2] sm:$0xf]
      %v905 = vld [vmem:[#allocation2 + $0x4] sm:$0xf]
      %v906 = vld [vmem:[#allocation2 + $0x8] sm:$0x1]
      %v907 = vld [vmem:[#allocation2 + $0xc] sm:$0xf]
      %v908 = vld [vmem:[#allocation2 + $0x10] sm:$0xf]
      %v909 = vld [vmem:[#allocation2 + $0x14] sm:$0x1]
      %v910 = vld [vmem:[#allocation2 + $0x18] sm:$0xf]
      %v911 = vld [vmem:[#allocation2 + $0x1c] sm:$0xf]
      %v912 = vld [vmem:[#allocation2 + $0x20] sm:$0x1]
      %v913 = vld [vmem:[#allocation2 + $0x24] sm:$0xf]
      %v914 = vld [vmem:[#allocation2 + $0x28] sm:$0xf]
      %v915 = vld [vmem:[#allocation2 + $0x2c] sm:$0x1]
      %v916 = vld [vmem:[#allocation2 + $0x30] sm:$0xf]
      %v917 = vld [vmem:[#allocation2 + $0x34] sm:$0xf]
      %v918 = vld [vmem:[#allocation2 + $0x38] sm:$0x1]
      %v919 = vld [vmem:[#allocation2 + $0x3c] sm:$0xf]
      %v920 = vld [vmem:[#allocation2 + $0x40] sm:$0xf]
      %v921 = vld [vmem:[#allocation2 + $0x44] sm:$0x1]
      %v922 = vld [vmem:[#allocation2 + $0x48] sm:$0xf]
      %v923 = vld [vmem:[#allocation2 + $0x4c] sm:$0xf]
      %v924 = vld [vmem:[#allocation2 + $0x50] sm:$0x1]
      %v925 = vld [vmem:[#allocation2 + $0x54] sm:$0xf]
      %v926 = vld [vmem:[#allocation2 + $0x58] sm:$0xf]
      %v927 = vld [vmem:[#allocation2 + $0x5c] sm:$0x1]
      %v928 = vld [vmem:[#allocation2 + $0x60] sm:$0xf]
      %v929 = vld [vmem:[#allocation2 + $0x64] sm:$0xf]
      %v930 = vld [vmem:[#allocation2 + $0x68] sm:$0x1]
      %v931 = vld [vmem:[#allocation2 + $0x6c] sm:$0xf]
      %v932 = vld [vmem:[#allocation2 + $0x70] sm:$0xf]
      %v933 = vld [vmem:[#allocation2 + $0x74] sm:$0x1]
      %v934 = vld [vmem:[#allocation2 + $0x78] sm:$0xf]
      %v935 = vld [vmem:[#allocation2 + $0x7c] sm:$0xf]
      %v936 = vld [vmem:[#allocation2 + $0x80] sm:$0x1]
      %v937 = vld [vmem:[#allocation2 + $0x84] sm:$0xf]
      %v938 = vld [vmem:[#allocation2 + $0x88] sm:$0xf]
      %v939 = vld [vmem:[#allocation2 + $0x8c] sm:$0x1]
      %v940 = vld [vmem:[#allocation2 + $0x90] sm:$0xf]
      %v941 = vld [vmem:[#allocation2 + $0x94] sm:$0xf]
      %v942 = vld [vmem:[#allocation2 + $0x98] sm:$0x1]
      %v943 = vld [vmem:[#allocation2 + $0x9c] sm:$0xf]
      %v944 = vld [vmem:[#allocation2 + $0xa0] sm:$0xf]
      %v945 = vld [vmem:[#allocation2 + $0xa4] sm:$0x1]
      %v946 = vld [vmem:[#allocation2 + $0xa8] sm:$0xf]
      %v947 = vld [vmem:[#allocation2 + $0xac] sm:$0xf]
      %v948 = vld [vmem:[#allocation2 + $0xb0] sm:$0x1]
      %v949 = vld [vmem:[#allocation2 + $0xb4] sm:$0xf]
      %v950 = vld [vmem:[#allocation2 + $0xb8] sm:$0xf]
      %v951 = vld [vmem:[#allocation2 + $0xbc] sm:$0x1]
      %v952 = vld [vmem:[#allocation2 + $0xc0] sm:$0xf]
      %v953 = vld [vmem:[#allocation2 + $0xc4] sm:$0xf]
      %v954 = vld [vmem:[#allocation2 + $0xc8] sm:$0x1]
      %v955 = vld [vmem:[#allocation2 + $0xcc] sm:$0xf]
      %v956 = vld [vmem:[#allocation2 + $0xd0] sm:$0xf]
      %v957 = vld [vmem:[#allocation2 + $0xd4] sm:$0x1]
      %v990 = vunpack.c.l.b16 %v904
      %v991 = vunpack.c.l.b16 %v905
      %v992 = vunpack.c.l.b16 %v907
      %v993 = vunpack.c.l.b16 %v908
      %v994 = vunpack.c.l.b16 %v910
      %v995 = vunpack.c.l.b16 %v911
      %v996 = vunpack.c.l.b16 %v913
      %v997 = vunpack.c.l.b16 %v914
      %v998 = vunpack.c.l.b16 %v916
      %v999 = vunpack.c.l.b16 %v917
      %v1000 = vunpack.c.l.b16 %v919
      %v1001 = vunpack.c.l.b16 %v920
      %v1002 = vunpack.c.l.b16 %v922
      %v1003 = vunpack.c.l.b16 %v923
      %v1004 = vunpack.c.l.b16 %v925
      %v1005 = vunpack.c.l.b16 %v926
      %v1006 = vunpack.c.l.b16 %v928
      %v1007 = vunpack.c.l.b16 %v929
      %v1008 = vunpack.c.l.b16 %v931
      %v1009 = vunpack.c.l.b16 %v932
      %v1010 = vunpack.c.l.b16 %v934
      %v1011 = vunpack.c.l.b16 %v935
      %v1012 = vunpack.c.l.b16 %v937
      %v1013 = vunpack.c.l.b16 %v938
      %v1014 = vunpack.c.l.b16 %v940
      %v1015 = vunpack.c.l.b16 %v941
      %v1016 = vunpack.c.l.b16 %v943
      %v1017 = vunpack.c.l.b16 %v944
      %v1018 = vunpack.c.l.b16 %v946
      %v1019 = vunpack.c.l.b16 %v947
      %v1020 = vunpack.c.l.b16 %v949
      %v1021 = vunpack.c.l.b16 %v950
      %v1022 = vpack.c.b16 %v991, %v990
      %v1023 = vpack.c.b16 %v993, %v992
      %v1024 = vpack.c.b16 %v995, %v994
      %v1025 = vpack.c.b16 %v997, %v996
      %v1026 = vpack.c.b16 %v999, %v998
      %v1027 = vpack.c.b16 %v1001, %v1000
      %v1028 = vpack.c.b16 %v1003, %v1002
      %v1029 = vpack.c.b16 %v1005, %v1004
      %v1030 = vpack.c.b16 %v1007, %v1006
      %v1031 = vpack.c.b16 %v1009, %v1008
      %v1032 = vpack.c.b16 %v1011, %v1010
      %v1033 = vpack.c.b16 %v1013, %v1012
      %v1034 = vpack.c.b16 %v1015, %v1014
      %v1035 = vpack.c.b16 %v1017, %v1016
      %v1036 = vpack.c.b16 %v1019, %v1018
      %v1037 = vpack.c.b16 %v1021, %v1020
      %v1054 = vunpack.c.l.b16 %v906
      %v1055 = vunpack.c.l.b16 %v909
      %v1056 = vunpack.c.l.b16 %v912
      %v1057 = vunpack.c.l.b16 %v915
      %v1058 = vunpack.c.l.b16 %v918
      %v1059 = vunpack.c.l.b16 %v921
      %v1060 = vunpack.c.l.b16 %v924
      %v1061 = vunpack.c.l.b16 %v927
      %v1062 = vunpack.c.l.b16 %v930
      %v1063 = vunpack.c.l.b16 %v933
      %v1064 = vunpack.c.l.b16 %v936
      %v1065 = vunpack.c.l.b16 %v939
      %v1066 = vunpack.c.l.b16 %v942
      %v1067 = vunpack.c.l.b16 %v945
      %v1068 = vunpack.c.l.b16 %v948
      %v1069 = vunpack.c.l.b16 %v951
      %v1070 = vpack.c.b16 %v1054, %v1054
      %v1071 = vpack.c.b16 %v1055, %v1055
      %v1072 = vpack.c.b16 %v1056, %v1056
      %v1073 = vpack.c.b16 %v1057, %v1057
      %v1074 = vpack.c.b16 %v1058, %v1058
      %v1075 = vpack.c.b16 %v1059, %v1059
      %v1076 = vpack.c.b16 %v1060, %v1060
      %v1077 = vpack.c.b16 %v1061, %v1061
      %v1078 = vpack.c.b16 %v1062, %v1062
      %v1079 = vpack.c.b16 %v1063, %v1063
      %v1080 = vpack.c.b16 %v1064, %v1064
      %v1081 = vpack.c.b16 %v1065, %v1065
      %v1082 = vpack.c.b16 %v1066, %v1066
      %v1083 = vpack.c.b16 %v1067, %v1067
      %v1084 = vpack.c.b16 %v1068, %v1068
      %v1085 = vpack.c.b16 %v1069, %v1069
      %vm1086 = vsmask.f32 7424
      %v1088 = vshrl.u32 %v1022, 16
      %v1090 = vshll.u32 %v1022, 16
      %v1092 = vrot.slane %v1090, 1
      %v1093 = vor.u32 %v1088, %v1092
      %v1095 = vshll.u32 %v1070, 16
      %v1097 = vrot.slane %v1095, 1
      %v1098 = vsel %vm1086, %v1093, %v1097
      %v1100 = vshrl.u32 %v1023, 16
      %v1102 = vshll.u32 %v1023, 16
      %v1104 = vrot.slane %v1102, 1
      %v1105 = vor.u32 %v1100, %v1104
      %v1107 = vshll.u32 %v1071, 16
      %v1109 = vrot.slane %v1107, 1
      %v1110 = vsel %vm1086, %v1105, %v1109
      %v1112 = vshrl.u32 %v1024, 16
      %v1114 = vshll.u32 %v1024, 16
      %v1116 = vrot.slane %v1114, 1
      %v1117 = vor.u32 %v1112, %v1116
      %v1119 = vshll.u32 %v1072, 16
      %v1121 = vrot.slane %v1119, 1
      %v1122 = vsel %vm1086, %v1117, %v1121
      %v1124 = vshrl.u32 %v1025, 16
      %v1126 = vshll.u32 %v1025, 16
      %v1128 = vrot.slane %v1126, 1
      %v1129 = vor.u32 %v1124, %v1128
      %v1131 = vshll.u32 %v1073, 16
      %v1133 = vrot.slane %v1131, 1
      %v1134 = vsel %vm1086, %v1129, %v1133
      %v1136 = vshrl.u32 %v1026, 16
      %v1138 = vshll.u32 %v1026, 16
      %v1140 = vrot.slane %v1138, 1
      %v1141 = vor.u32 %v1136, %v1140
      %v1143 = vshll.u32 %v1074, 16
      %v1145 = vrot.slane %v1143, 1
      %v1146 = vsel %vm1086, %v1141, %v1145
      %v1148 = vshrl.u32 %v1027, 16
      %v1150 = vshll.u32 %v1027, 16
      %v1152 = vrot.slane %v1150, 1
      %v1153 = vor.u32 %v1148, %v1152
      %v1155 = vshll.u32 %v1075, 16
      %v1157 = vrot.slane %v1155, 1
      %v1158 = vsel %vm1086, %v1153, %v1157
      %v1160 = vshrl.u32 %v1028, 16
      %v1162 = vshll.u32 %v1028, 16
      %v1164 = vrot.slane %v1162, 1
      %v1165 = vor.u32 %v1160, %v1164
      %v1167 = vshll.u32 %v1076, 16
      %v1169 = vrot.slane %v1167, 1
      %v1170 = vsel %vm1086, %v1165, %v1169
      %v1172 = vshrl.u32 %v1029, 16
      %v1174 = vshll.u32 %v1029, 16
      %v1176 = vrot.slane %v1174, 1
      %v1177 = vor.u32 %v1172, %v1176
      %v1179 = vshll.u32 %v1077, 16
      %v1181 = vrot.slane %v1179, 1
      %v1182 = vsel %vm1086, %v1177, %v1181
      %v1184 = vshrl.u32 %v1030, 16
      %v1186 = vshll.u32 %v1030, 16
      %v1188 = vrot.slane %v1186, 1
      %v1189 = vor.u32 %v1184, %v1188
      %v1191 = vshll.u32 %v1078, 16
      %v1193 = vrot.slane %v1191, 1
      %v1194 = vsel %vm1086, %v1189, %v1193
      %v1196 = vshrl.u32 %v1031, 16
      %v1198 = vshll.u32 %v1031, 16
      %v1200 = vrot.slane %v1198, 1
      %v1201 = vor.u32 %v1196, %v1200
      %v1203 = vshll.u32 %v1079, 16
      %v1205 = vrot.slane %v1203, 1
      %v1206 = vsel %vm1086, %v1201, %v1205
      %v1208 = vshrl.u32 %v1032, 16
      %v1210 = vshll.u32 %v1032, 16
      %v1212 = vrot.slane %v1210, 1
      %v1213 = vor.u32 %v1208, %v1212
      %v1215 = vshll.u32 %v1080, 16
      %v1217 = vrot.slane %v1215, 1
      %v1218 = vsel %vm1086, %v1213, %v1217
      %v1220 = vshrl.u32 %v1033, 16
      %v1222 = vshll.u32 %v1033, 16
      %v1224 = vrot.slane %v1222, 1
      %v1225 = vor.u32 %v1220, %v1224
      %v1227 = vshll.u32 %v1081, 16
      %v1229 = vrot.slane %v1227, 1
      %v1230 = vsel %vm1086, %v1225, %v1229
      %v1232 = vshrl.u32 %v1034, 16
      %v1234 = vshll.u32 %v1034, 16
      %v1236 = vrot.slane %v1234, 1
      %v1237 = vor.u32 %v1232, %v1236
      %v1239 = vshll.u32 %v1082, 16
      %v1241 = vrot.slane %v1239, 1
      %v1242 = vsel %vm1086, %v1237, %v1241
      %v1244 = vshrl.u32 %v1035, 16
      %v1246 = vshll.u32 %v1035, 16
      %v1248 = vrot.slane %v1246, 1
      %v1249 = vor.u32 %v1244, %v1248
      %v1251 = vshll.u32 %v1083, 16
      %v1253 = vrot.slane %v1251, 1
      %v1254 = vsel %vm1086, %v1249, %v1253
      %v1256 = vshrl.u32 %v1036, 16
      %v1258 = vshll.u32 %v1036, 16
      %v1260 = vrot.slane %v1258, 1
      %v1261 = vor.u32 %v1256, %v1260
      %v1263 = vshll.u32 %v1084, 16
      %v1265 = vrot.slane %v1263, 1
      %v1266 = vsel %vm1086, %v1261, %v1265
      %v1268 = vshrl.u32 %v1037, 16
      %v1270 = vshll.u32 %v1037, 16
      %v1272 = vrot.slane %v1270, 1
      %v1273 = vor.u32 %v1268, %v1272
      %v1275 = vshll.u32 %v1085, 16
      %v1277 = vrot.slane %v1275, 1
      %v1278 = vsel %vm1086, %v1273, %v1277
      %1279 = vrot.lane.b32.xlu0 %v1098, 4
      %v1280 = vpop.permute.xlu0 %1279
      %1281 = vrot.lane.b32.xlu0 %v1110, 4
      %v1282 = vpop.permute.xlu0 %1281
      %1283 = vrot.lane.b32.xlu0 %v1122, 4
      %v1284 = vpop.permute.xlu0 %1283
      %1285 = vrot.lane.b32.xlu0 %v1134, 4
      %v1286 = vpop.permute.xlu0 %1285
      %1287 = vrot.lane.b32.xlu0 %v1146, 4
      %v1288 = vpop.permute.xlu0 %1287
      %1289 = vrot.lane.b32.xlu0 %v1158, 4
      %v1290 = vpop.permute.xlu0 %1289
      %1291 = vrot.lane.b32.xlu0 %v1170, 4
      %v1292 = vpop.permute.xlu0 %1291
      %1293 = vrot.lane.b32.xlu0 %v1182, 4
      %v1294 = vpop.permute.xlu0 %1293
      %1295 = vrot.lane.b32.xlu0 %v1194, 4
      %v1296 = vpop.permute.xlu0 %1295
      %1297 = vrot.lane.b32.xlu0 %v1206, 4
      %v1298 = vpop.permute.xlu0 %1297
      %1299 = vrot.lane.b32.xlu0 %v1218, 4
      %v1300 = vpop.permute.xlu0 %1299
      %1301 = vrot.lane.b32.xlu0 %v1230, 4
      %v1302 = vpop.permute.xlu0 %1301
      %1303 = vrot.lane.b32.xlu0 %v1242, 4
      %v1304 = vpop.permute.xlu0 %1303
      %1305 = vrot.lane.b32.xlu0 %v1254, 4
      %v1306 = vpop.permute.xlu0 %1305
      %1307 = vrot.lane.b32.xlu0 %v1266, 4
      %v1308 = vpop.permute.xlu0 %1307
      %1309 = vrot.lane.b32.xlu0 %v1278, 4
      %v1310 = vpop.permute.xlu0 %1309
      %vm1311 = vcmask 1046528
      %v1312 = vrot.slane %v1022, 1
      %v1313 = vrot.slane %v1070, 1
      %v1314 = vsel %vm1311, %v1312, %v1313
      %v1315 = vrot.slane %v1023, 1
      %v1316 = vrot.slane %v1071, 1
      %v1317 = vsel %vm1311, %v1315, %v1316
      %v1318 = vrot.slane %v1024, 1
      %v1319 = vrot.slane %v1072, 1
      %v1320 = vsel %vm1311, %v1318, %v1319
      %v1321 = vrot.slane %v1025, 1
      %v1322 = vrot.slane %v1073, 1
      %v1323 = vsel %vm1311, %v1321, %v1322
      %v1324 = vrot.slane %v1026, 1
      %v1325 = vrot.slane %v1074, 1
      %v1326 = vsel %vm1311, %v1324, %v1325
      %v1327 = vrot.slane %v1027, 1
      %v1328 = vrot.slane %v1075, 1
      %v1329 = vsel %vm1311, %v1327, %v1328
      %v1330 = vrot.slane %v1028, 1
      %v1331 = vrot.slane %v1076, 1
      %v1332 = vsel %vm1311, %v1330, %v1331
      %v1333 = vrot.slane %v1029, 1
      %v1334 = vrot.slane %v1077, 1
      %v1335 = vsel %vm1311, %v1333, %v1334
      %v1336 = vrot.slane %v1030, 1
      %v1337 = vrot.slane %v1078, 1
      %v1338 = vsel %vm1311, %v1336, %v1337
      %v1339 = vrot.slane %v1031, 1
      %v1340 = vrot.slane %v1079, 1
      %v1341 = vsel %vm1311, %v1339, %v1340
      %v1342 = vrot.slane %v1032, 1
      %v1343 = vrot.slane %v1080, 1
      %v1344 = vsel %vm1311, %v1342, %v1343
      %v1345 = vrot.slane %v1033, 1
      %v1346 = vrot.slane %v1081, 1
      %v1347 = vsel %vm1311, %v1345, %v1346
      %v1348 = vrot.slane %v1034, 1
      %v1349 = vrot.slane %v1082, 1
      %v1350 = vsel %vm1311, %v1348, %v1349
      %v1351 = vrot.slane %v1035, 1
      %v1352 = vrot.slane %v1083, 1
      %v1353 = vsel %vm1311, %v1351, %v1352
      %v1354 = vrot.slane %v1036, 1
      %v1355 = vrot.slane %v1084, 1
      %v1356 = vsel %vm1311, %v1354, %v1355
      %v1357 = vrot.slane %v1037, 1
      %v1358 = vrot.slane %v1085, 1
      %v1359 = vsel %vm1311, %v1357, %v1358
      %1360 = vrot.lane.b32.xlu0 %v1314, 8
      %v1361 = vpop.permute.xlu0 %1360
      %1362 = vrot.lane.b32.xlu0 %v1317, 8
      %v1363 = vpop.permute.xlu0 %1362
      %1364 = vrot.lane.b32.xlu0 %v1320, 8
      %v1365 = vpop.permute.xlu0 %1364
      %1366 = vrot.lane.b32.xlu0 %v1323, 8
      %v1367 = vpop.permute.xlu0 %1366
      %1368 = vrot.lane.b32.xlu0 %v1326, 8
      %v1369 = vpop.permute.xlu0 %1368
      %1370 = vrot.lane.b32.xlu0 %v1329, 8
      %v1371 = vpop.permute.xlu0 %1370
      %1372 = vrot.lane.b32.xlu0 %v1332, 8
      %v1373 = vpop.permute.xlu0 %1372
      %1374 = vrot.lane.b32.xlu0 %v1335, 8
      %v1375 = vpop.permute.xlu0 %1374
      %1376 = vrot.lane.b32.xlu0 %v1338, 8
      %v1377 = vpop.permute.xlu0 %1376
      %1378 = vrot.lane.b32.xlu0 %v1341, 8
      %v1379 = vpop.permute.xlu0 %1378
      %1380 = vrot.lane.b32.xlu0 %v1344, 8
      %v1381 = vpop.permute.xlu0 %1380
      %1382 = vrot.lane.b32.xlu0 %v1347, 8
      %v1383 = vpop.permute.xlu0 %1382
      %1384 = vrot.lane.b32.xlu0 %v1350, 8
      %v1385 = vpop.permute.xlu0 %1384
      %1386 = vrot.lane.b32.xlu0 %v1353, 8
      %v1387 = vpop.permute.xlu0 %1386
      %1388 = vrot.lane.b32.xlu0 %v1356, 8
      %v1389 = vpop.permute.xlu0 %1388
      %1390 = vrot.lane.b32.xlu0 %v1359, 8
      %v1391 = vpop.permute.xlu0 %1390
      %v1394 = vunpack.c.l.b16 %v952
      %v1395 = vunpack.c.l.b16 %v953
      %v1396 = vpack.c.b16 %v1395, %v1394
      %1397 = vrot.lane.b32.xlu0 %v1023, 12
      %v1398 = vpop.permute.xlu0 %1397
      %1399 = vrot.lane.b32.xlu0 %v1024, 12
      %v1400 = vpop.permute.xlu0 %1399
      %1401 = vrot.lane.b32.xlu0 %v1025, 12
      %v1402 = vpop.permute.xlu0 %1401
      %1403 = vrot.lane.b32.xlu0 %v1026, 12
      %v1404 = vpop.permute.xlu0 %1403
      %1405 = vrot.lane.b32.xlu0 %v1027, 12
      %v1406 = vpop.permute.xlu0 %1405
      %1407 = vrot.lane.b32.xlu0 %v1028, 12
      %v1408 = vpop.permute.xlu0 %1407
      %1409 = vrot.lane.b32.xlu0 %v1029, 12
      %v1410 = vpop.permute.xlu0 %1409
      %1411 = vrot.lane.b32.xlu0 %v1030, 12
      %v1412 = vpop.permute.xlu0 %1411
      %1413 = vrot.lane.b32.xlu0 %v1031, 12
      %v1414 = vpop.permute.xlu0 %1413
      %1415 = vrot.lane.b32.xlu0 %v1032, 12
      %v1416 = vpop.permute.xlu0 %1415
      %1417 = vrot.lane.b32.xlu0 %v1033, 12
      %v1418 = vpop.permute.xlu0 %1417
      %1419 = vrot.lane.b32.xlu0 %v1034, 12
      %v1420 = vpop.permute.xlu0 %1419
      %1421 = vrot.lane.b32.xlu0 %v1035, 12
      %v1422 = vpop.permute.xlu0 %1421
      %1423 = vrot.lane.b32.xlu0 %v1036, 12
      %v1424 = vpop.permute.xlu0 %1423
      %1425 = vrot.lane.b32.xlu0 %v1037, 12
      %v1426 = vpop.permute.xlu0 %1425
      %1427 = vrot.lane.b32.xlu0 %v1396, 12
      %v1428 = vpop.permute.xlu0 %1427
      %v1430 = vunpack.c.l.b16 %v954
      %v1431 = vpack.c.b16 %v1430, %v1430
      %v1433 = vshrl.u32 %v1396, 16
      %v1435 = vshll.u32 %v1396, 16
      %v1437 = vrot.slane %v1435, 1
      %v1438 = vor.u32 %v1433, %v1437
      %v1440 = vshll.u32 %v1431, 16
      %v1442 = vrot.slane %v1440, 1
      %v1443 = vsel %vm1086, %v1438, %v1442
      %1444 = vrot.lane.b32.xlu0 %v1110, 16
      %v1445 = vpop.permute.xlu0 %1444
      %1446 = vrot.lane.b32.xlu0 %v1122, 16
      %v1447 = vpop.permute.xlu0 %1446
      %1448 = vrot.lane.b32.xlu0 %v1134, 16
      %v1449 = vpop.permute.xlu0 %1448
      %1450 = vrot.lane.b32.xlu0 %v1146, 16
      %v1451 = vpop.permute.xlu0 %1450
      %1452 = vrot.lane.b32.xlu0 %v1158, 16
      %v1453 = vpop.permute.xlu0 %1452
      %1454 = vrot.lane.b32.xlu0 %v1170, 16
      %v1455 = vpop.permute.xlu0 %1454
      %1456 = vrot.lane.b32.xlu0 %v1182, 16
      %v1457 = vpop.permute.xlu0 %1456
      %1458 = vrot.lane.b32.xlu0 %v1194, 16
      %v1459 = vpop.permute.xlu0 %1458
      %1460 = vrot.lane.b32.xlu0 %v1206, 16
      %v1461 = vpop.permute.xlu0 %1460
      %1462 = vrot.lane.b32.xlu0 %v1218, 16
      %v1463 = vpop.permute.xlu0 %1462
      %1464 = vrot.lane.b32.xlu0 %v1230, 16
      %v1465 = vpop.permute.xlu0 %1464
      %1466 = vrot.lane.b32.xlu0 %v1242, 16
      %v1467 = vpop.permute.xlu0 %1466
      %1468 = vrot.lane.b32.xlu0 %v1254, 16
      %v1469 = vpop.permute.xlu0 %1468
      %1470 = vrot.lane.b32.xlu0 %v1266, 16
      %v1471 = vpop.permute.xlu0 %1470
      %1472 = vrot.lane.b32.xlu0 %v1278, 16
      %v1473 = vpop.permute.xlu0 %1472
      %1474 = vrot.lane.b32.xlu0 %v1443, 16
      %v1475 = vpop.permute.xlu0 %1474
      %v1476 = vrot.slane %v1396, 1
      %v1477 = vrot.slane %v1431, 1
      %v1478 = vsel %vm1311, %v1476, %v1477
      %1479 = vrot.lane.b32.xlu0 %v1317, 20
      %v1480 = vpop.permute.xlu0 %1479
      %1481 = vrot.lane.b32.xlu0 %v1320, 20
      %v1482 = vpop.permute.xlu0 %1481
      %1483 = vrot.lane.b32.xlu0 %v1323, 20
      %v1484 = vpop.permute.xlu0 %1483
      %1485 = vrot.lane.b32.xlu0 %v1326, 20
      %v1486 = vpop.permute.xlu0 %1485
      %1487 = vrot.lane.b32.xlu0 %v1329, 20
      %v1488 = vpop.permute.xlu0 %1487
      %1489 = vrot.lane.b32.xlu0 %v1332, 20
      %v1490 = vpop.permute.xlu0 %1489
      %1491 = vrot.lane.b32.xlu0 %v1335, 20
      %v1492 = vpop.permute.xlu0 %1491
      %1493 = vrot.lane.b32.xlu0 %v1338, 20
      %v1494 = vpop.permute.xlu0 %1493
      %1495 = vrot.lane.b32.xlu0 %v1341, 20
      %v1496 = vpop.permute.xlu0 %1495
      %1497 = vrot.lane.b32.xlu0 %v1344, 20
      %v1498 = vpop.permute.xlu0 %1497
      %1499 = vrot.lane.b32.xlu0 %v1347, 20
      %v1500 = vpop.permute.xlu0 %1499
      %1501 = vrot.lane.b32.xlu0 %v1350, 20
      %v1502 = vpop.permute.xlu0 %1501
      %1503 = vrot.lane.b32.xlu0 %v1353, 20
      %v1504 = vpop.permute.xlu0 %1503
      %1505 = vrot.lane.b32.xlu0 %v1356, 20
      %v1506 = vpop.permute.xlu0 %1505
      %1507 = vrot.lane.b32.xlu0 %v1359, 20
      %v1508 = vpop.permute.xlu0 %1507
      %1509 = vrot.lane.b32.xlu0 %v1478, 20
      %v1510 = vpop.permute.xlu0 %1509
      %v1513 = vunpack.c.l.b16 %v955
      %v1514 = vunpack.c.l.b16 %v956
      %v1515 = vpack.c.b16 %v1514, %v1513
      %1516 = vrot.lane.b32.xlu0 %v1024, 24
      %v1517 = vpop.permute.xlu0 %1516
      %1518 = vrot.lane.b32.xlu0 %v1025, 24
      %v1519 = vpop.permute.xlu0 %1518
      %1520 = vrot.lane.b32.xlu0 %v1026, 24
      %v1521 = vpop.permute.xlu0 %1520
      %1522 = vrot.lane.b32.xlu0 %v1027, 24
      %v1523 = vpop.permute.xlu0 %1522
      %1524 = vrot.lane.b32.xlu0 %v1028, 24
      %v1525 = vpop.permute.xlu0 %1524
      %1526 = vrot.lane.b32.xlu0 %v1029, 24
      %v1527 = vpop.permute.xlu0 %1526
      %1528 = vrot.lane.b32.xlu0 %v1030, 24
      %v1529 = vpop.permute.xlu0 %1528
      %1530 = vrot.lane.b32.xlu0 %v1031, 24
      %v1531 = vpop.permute.xlu0 %1530
      %1532 = vrot.lane.b32.xlu0 %v1032, 24
      %v1533 = vpop.permute.xlu0 %1532
      %1534 = vrot.lane.b32.xlu0 %v1033, 24
      %v1535 = vpop.permute.xlu0 %1534
      %1536 = vrot.lane.b32.xlu0 %v1034, 24
      %v1537 = vpop.permute.xlu0 %1536
      %1538 = vrot.lane.b32.xlu0 %v1035, 24
      %v1539 = vpop.permute.xlu0 %1538
      %1540 = vrot.lane.b32.xlu0 %v1036, 24
      %v1541 = vpop.permute.xlu0 %1540
      %1542 = vrot.lane.b32.xlu0 %v1037, 24
      %v1543 = vpop.permute.xlu0 %1542
      %1544 = vrot.lane.b32.xlu0 %v1396, 24
      %v1545 = vpop.permute.xlu0 %1544
      %1546 = vrot.lane.b32.xlu0 %v1515, 24
      %v1547 = vpop.permute.xlu0 %1546
      %v1549 = vunpack.c.l.b16 %v957
      %v1550 = vpack.c.b16 %v1549, %v1549
      %v1552 = vshrl.u32 %v1515, 16
      %v1554 = vshll.u32 %v1515, 16
      %v1556 = vrot.slane %v1554, 1
      %v1557 = vor.u32 %v1552, %v1556
      %v1559 = vshll.u32 %v1550, 16
      %v1561 = vrot.slane %v1559, 1
      %v1562 = vsel %vm1086, %v1557, %v1561
      %1563 = vrot.lane.b32.xlu0 %v1122, 28
      %v1564 = vpop.permute.xlu0 %1563
      %1565 = vrot.lane.b32.xlu0 %v1134, 28
      %v1566 = vpop.permute.xlu0 %1565
      %1567 = vrot.lane.b32.xlu0 %v1146, 28
      %v1568 = vpop.permute.xlu0 %1567
      %1569 = vrot.lane.b32.xlu0 %v1158, 28
      %v1570 = vpop.permute.xlu0 %1569
      %1571 = vrot.lane.b32.xlu0 %v1170, 28
      %v1572 = vpop.permute.xlu0 %1571
      %1573 = vrot.lane.b32.xlu0 %v1182, 28
      %v1574 = vpop.permute.xlu0 %1573
      %1575 = vrot.lane.b32.xlu0 %v1194, 28
      %v1576 = vpop.permute.xlu0 %1575
      %1577 = vrot.lane.b32.xlu0 %v1206, 28
      %v1578 = vpop.permute.xlu0 %1577
      %1579 = vrot.lane.b32.xlu0 %v1218, 28
      %v1580 = vpop.permute.xlu0 %1579
      %1581 = vrot.lane.b32.xlu0 %v1230, 28
      %v1582 = vpop.permute.xlu0 %1581
      %1583 = vrot.lane.b32.xlu0 %v1242, 28
      %v1584 = vpop.permute.xlu0 %1583
      %1585 = vrot.lane.b32.xlu0 %v1254, 28
      %v1586 = vpop.permute.xlu0 %1585
      %1587 = vrot.lane.b32.xlu0 %v1266, 28
      %v1588 = vpop.permute.xlu0 %1587
      %1589 = vrot.lane.b32.xlu0 %v1278, 28
      %v1590 = vpop.permute.xlu0 %1589
      %1591 = vrot.lane.b32.xlu0 %v1443, 28
      %v1592 = vpop.permute.xlu0 %1591
      %1593 = vrot.lane.b32.xlu0 %v1562, 28
      %v1594 = vpop.permute.xlu0 %1593
      %v1595 = vrot.slane %v1515, 1
      %v1596 = vrot.slane %v1550, 1
      %v1597 = vsel %vm1311, %v1595, %v1596
      %1598 = vrot.lane.b32.xlu0 %v1320, 32
      %v1599 = vpop.permute.xlu0 %1598
      %1600 = vrot.lane.b32.xlu0 %v1323, 32
      %v1601 = vpop.permute.xlu0 %1600
      %1602 = vrot.lane.b32.xlu0 %v1326, 32
      %v1603 = vpop.permute.xlu0 %1602
      %1604 = vrot.lane.b32.xlu0 %v1329, 32
      %v1605 = vpop.permute.xlu0 %1604
      %1606 = vrot.lane.b32.xlu0 %v1332, 32
      %v1607 = vpop.permute.xlu0 %1606
      %1608 = vrot.lane.b32.xlu0 %v1335, 32
      %v1609 = vpop.permute.xlu0 %1608
      %1610 = vrot.lane.b32.xlu0 %v1338, 32
      %v1611 = vpop.permute.xlu0 %1610
      %1612 = vrot.lane.b32.xlu0 %v1341, 32
      %v1613 = vpop.permute.xlu0 %1612
      %1614 = vrot.lane.b32.xlu0 %v1344, 32
      %v1615 = vpop.permute.xlu0 %1614
      %1616 = vrot.lane.b32.xlu0 %v1347, 32
      %v1617 = vpop.permute.xlu0 %1616
      %1618 = vrot.lane.b32.xlu0 %v1350, 32
      %v1619 = vpop.permute.xlu0 %1618
      %1620 = vrot.lane.b32.xlu0 %v1353, 32
      %v1621 = vpop.permute.xlu0 %1620
      %1622 = vrot.lane.b32.xlu0 %v1356, 32
      %v1623 = vpop.permute.xlu0 %1622
      %1624 = vrot.lane.b32.xlu0 %v1359, 32
      %v1625 = vpop.permute.xlu0 %1624
      %1626 = vrot.lane.b32.xlu0 %v1478, 32
      %v1627 = vpop.permute.xlu0 %1626
      %1628 = vrot.lane.b32.xlu0 %v1597, 32
      %v1629 = vpop.permute.xlu0 %1628
      %vm1630 = vcmask 31744
      %v1632 = vsel %vm1630, %v1022, %v1280
      %v1634 = vsel %vm1630, %v1023, %v1282
      %v1636 = vsel %vm1630, %v1024, %v1284
      %v1638 = vsel %vm1630, %v1025, %v1286
      %v1640 = vsel %vm1630, %v1026, %v1288
      %v1642 = vsel %vm1630, %v1027, %v1290
      %v1644 = vsel %vm1630, %v1028, %v1292
      %v1646 = vsel %vm1630, %v1029, %v1294
      %v1648 = vsel %vm1630, %v1030, %v1296
      %v1650 = vsel %vm1630, %v1031, %v1298
      %v1652 = vsel %vm1630, %v1032, %v1300
      %v1654 = vsel %vm1630, %v1033, %v1302
      %v1656 = vsel %vm1630, %v1034, %v1304
      %v1658 = vsel %vm1630, %v1035, %v1306
      %v1660 = vsel %vm1630, %v1036, %v1308
      %v1662 = vsel %vm1630, %v1037, %v1310
      %vm1663 = vcmask 64512
      %v1665 = vsel %vm1663, %v1632, %v1361
      %v1667 = vsel %vm1663, %v1634, %v1363
      %v1669 = vsel %vm1663, %v1636, %v1365
      %v1671 = vsel %vm1663, %v1638, %v1367
      %v1673 = vsel %vm1663, %v1640, %v1369
      %v1675 = vsel %vm1663, %v1642, %v1371
      %v1677 = vsel %vm1663, %v1644, %v1373
      %v1679 = vsel %vm1663, %v1646, %v1375
      %v1681 = vsel %vm1663, %v1648, %v1377
      %v1683 = vsel %vm1663, %v1650, %v1379
      %v1685 = vsel %vm1663, %v1652, %v1381
      %v1687 = vsel %vm1663, %v1654, %v1383
      %v1689 = vsel %vm1663, %v1656, %v1385
      %v1691 = vsel %vm1663, %v1658, %v1387
      %v1693 = vsel %vm1663, %v1660, %v1389
      %v1695 = vsel %vm1663, %v1662, %v1391
      %vm1696 = vcmask 97280
      %v1698 = vsel %vm1696, %v1665, %v1398
      %v1700 = vsel %vm1696, %v1667, %v1400
      %v1702 = vsel %vm1696, %v1669, %v1402
      %v1704 = vsel %vm1696, %v1671, %v1404
      %v1706 = vsel %vm1696, %v1673, %v1406
      %v1708 = vsel %vm1696, %v1675, %v1408
      %v1710 = vsel %vm1696, %v1677, %v1410
      %v1712 = vsel %vm1696, %v1679, %v1412
      %v1714 = vsel %vm1696, %v1681, %v1414
      %v1716 = vsel %vm1696, %v1683, %v1416
      %v1718 = vsel %vm1696, %v1685, %v1418
      %v1720 = vsel %vm1696, %v1687, %v1420
      %v1722 = vsel %vm1696, %v1689, %v1422
      %v1724 = vsel %vm1696, %v1691, %v1424
      %v1726 = vsel %vm1696, %v1693, %v1426
      %v1728 = vsel %vm1696, %v1695, %v1428
      %vm1729 = vcmask 130048
      %v1731 = vsel %vm1729, %v1698, %v1445
      %v1733 = vsel %vm1729, %v1700, %v1447
      %v1735 = vsel %vm1729, %v1702, %v1449
      %v1737 = vsel %vm1729, %v1704, %v1451
      %v1739 = vsel %vm1729, %v1706, %v1453
      %v1741 = vsel %vm1729, %v1708, %v1455
      %v1743 = vsel %vm1729, %v1710, %v1457
      %v1745 = vsel %vm1729, %v1712, %v1459
      %v1747 = vsel %vm1729, %v1714, %v1461
      %v1749 = vsel %vm1729, %v1716, %v1463
      %v1751 = vsel %vm1729, %v1718, %v1465
      %v1753 = vsel %vm1729, %v1720, %v1467
      %v1755 = vsel %vm1729, %v1722, %v1469
      %v1757 = vsel %vm1729, %v1724, %v1471
      %v1759 = vsel %vm1729, %v1726, %v1473
      %v1761 = vsel %vm1729, %v1728, %v1475
      %vm1762 = vcmask 162816
      %v1764 = vsel %vm1762, %v1731, %v1480
      %v1766 = vsel %vm1762, %v1733, %v1482
      %v1768 = vsel %vm1762, %v1735, %v1484
      %v1770 = vsel %vm1762, %v1737, %v1486
      %v1772 = vsel %vm1762, %v1739, %v1488
      %v1774 = vsel %vm1762, %v1741, %v1490
      %v1776 = vsel %vm1762, %v1743, %v1492
      %v1778 = vsel %vm1762, %v1745, %v1494
      %v1780 = vsel %vm1762, %v1747, %v1496
      %v1782 = vsel %vm1762, %v1749, %v1498
      %v1784 = vsel %vm1762, %v1751, %v1500
      %v1786 = vsel %vm1762, %v1753, %v1502
      %v1788 = vsel %vm1762, %v1755, %v1504
      %v1790 = vsel %vm1762, %v1757, %v1506
      %v1792 = vsel %vm1762, %v1759, %v1508
      %v1794 = vsel %vm1762, %v1761, %v1510
      %vm1795 = vcmask 195584
      %v1797 = vsel %vm1795, %v1764, %v1517
      %v1799 = vsel %vm1795, %v1766, %v1519
      %v1801 = vsel %vm1795, %v1768, %v1521
      %v1803 = vsel %vm1795, %v1770, %v1523
      %v1805 = vsel %vm1795, %v1772, %v1525
      %v1807 = vsel %vm1795, %v1774, %v1527
      %v1809 = vsel %vm1795, %v1776, %v1529
      %v1811 = vsel %vm1795, %v1778, %v1531
      %v1813 = vsel %vm1795, %v1780, %v1533
      %v1815 = vsel %vm1795, %v1782, %v1535
      %v1817 = vsel %vm1795, %v1784, %v1537
      %v1819 = vsel %vm1795, %v1786, %v1539
      %v1821 = vsel %vm1795, %v1788, %v1541
      %v1823 = vsel %vm1795, %v1790, %v1543
      %v1825 = vsel %vm1795, %v1792, %v1545
      %v1827 = vsel %vm1795, %v1794, %v1547
      %vm1828 = vcmask 228352
      %v1830 = vsel %vm1828, %v1797, %v1564
      %v1832 = vsel %vm1828, %v1799, %v1566
      %v1834 = vsel %vm1828, %v1801, %v1568
      %v1836 = vsel %vm1828, %v1803, %v1570
      %v1838 = vsel %vm1828, %v1805, %v1572
      %v1840 = vsel %vm1828, %v1807, %v1574
      %v1842 = vsel %vm1828, %v1809, %v1576
      %v1844 = vsel %vm1828, %v1811, %v1578
      %v1846 = vsel %vm1828, %v1813, %v1580
      %v1848 = vsel %vm1828, %v1815, %v1582
      %v1850 = vsel %vm1828, %v1817, %v1584
      %v1852 = vsel %vm1828, %v1819, %v1586
      %v1854 = vsel %vm1828, %v1821, %v1588
      %v1856 = vsel %vm1828, %v1823, %v1590
      %v1858 = vsel %vm1828, %v1825, %v1592
      %v1860 = vsel %vm1828, %v1827, %v1594
      %vm1861 = vcmask 261120
      %v1863 = vsel %vm1861, %v1830, %v1599
      %v1865 = vsel %vm1861, %v1832, %v1601
      %v1867 = vsel %vm1861, %v1834, %v1603
      %v1869 = vsel %vm1861, %v1836, %v1605
      %v1871 = vsel %vm1861, %v1838, %v1607
      %v1873 = vsel %vm1861, %v1840, %v1609
      %v1875 = vsel %vm1861, %v1842, %v1611
      %v1877 = vsel %vm1861, %v1844, %v1613
      %v1879 = vsel %vm1861, %v1846, %v1615
      %v1881 = vsel %vm1861, %v1848, %v1617
      %v1883 = vsel %vm1861, %v1850, %v1619
      %v1885 = vsel %vm1861, %v1852, %v1621
      %v1887 = vsel %vm1861, %v1854, %v1623
      %v1889 = vsel %vm1861, %v1856, %v1625
      %v1891 = vsel %vm1861, %v1858, %v1627
      %v1893 = vsel %vm1861, %v1860, %v1629
      %v1894 = vld [vmem:[%s1] sm:$0xf]
      %v1895 = vld [vmem:[%s1 + $0x4] sm:$0xf]
      %v1896 = vld [vmem:[%s1 + $0x8] sm:$0xf]
      %v1897 = vld [vmem:[%s1 + $0xc] sm:$0xf]
      %v1898 = vld [vmem:[%s1 + $0x10] sm:$0x3]
      %v1899 = vld [vmem:[%s2] sm:$0x1]
      %v1901 = vperm.slane %v1899, 0
      %v1908 = vunpack.c.l.b16 %v1894
      %v1909 = vunpack.c.l.b16 %v1895
      %v1910 = vunpack.c.l.b16 %v1896
      %v1911 = vunpack.c.l.b16 %v1897
      %v1912 = vunpack.c.l.b16 %v1898
      %v1913 = vpack.c.b16 %v1909, %v1908
      %v1914 = vpack.c.b16 %v1911, %v1910
      %v1915 = vpack.c.b16 %v1912, %v1912
      %vm1918 = vcmask 293888
      %v1919 = vsel %vm1918, %v1863, 0
      %v1921 = vsel %vm1918, %v1865, 0
      %v1923 = vsel %vm1918, %v1867, 0
      %v1925 = vsel %vm1918, %v1869, 0
      %v1927 = vsel %vm1918, %v1871, 0
      %v1929 = vsel %vm1918, %v1873, 0
      %v1931 = vsel %vm1918, %v1875, 0
      %v1933 = vsel %vm1918, %v1877, 0
      %v1935 = vsel %vm1918, %v1879, 0
      %v1937 = vsel %vm1918, %v1881, 0
      %v1939 = vsel %vm1918, %v1883, 0
      %v1941 = vsel %vm1918, %v1885, 0
      %v1943 = vsel %vm1918, %v1887, 0
      %v1945 = vsel %vm1918, %v1889, 0
      %v1947 = vsel %vm1918, %v1891, 0
      %v1949 = vsel %vm1918, %v1893, 0
      %vm1951 = vcmask 1041408
      %v1953 = vsel %vm1951, %v1915, 0
      %1955 = vmatpush.bf16.msra.mxu0 0
      %1956 = vmatpush.bf16.msra.mxu0 0
      %1957 = vmatpush.bf16.msra.mxu0 0
      %1958 = vmatpush.bf16.msra.mxu0 0
      %1959 = vmatpush.bf16.msra.mxu0 0
      %1960 = vmatpush.bf16.msra.mxu0 %v1953
      %1961 = vmatpush.bf16.msra.mxu0 %v1914
      %1962 = vmatpush.bf16.msra.mxu0 %v1913
      %1963 = vmatmul.bf16.gmra.mxu0 %v1919
      %v1964 = vpop.f32.mrf.mxu0
      %v1965 = vadd.f32 %v1901, %v1964
      %v1966 = vpop.f32.mrf.mxu0
      %v1967 = vadd.f32 %v1901, %v1966
      %1968 = vmatmul.bf16.gmra.mxu0 %v1921
      %v1969 = vpop.f32.mrf.mxu0
      %v1970 = vadd.f32 %v1901, %v1969
      %v1971 = vpop.f32.mrf.mxu0
      %v1972 = vadd.f32 %v1901, %v1971
      %1973 = vmatmul.bf16.gmra.mxu0 %v1923
      %v1974 = vpop.f32.mrf.mxu0
      %v1975 = vadd.f32 %v1901, %v1974
      %v1976 = vpop.f32.mrf.mxu0
      %v1977 = vadd.f32 %v1901, %v1976
      %1978 = vmatmul.bf16.gmra.mxu0 %v1925
      %v1979 = vpop.f32.mrf.mxu0
      %v1980 = vadd.f32 %v1901, %v1979
      %v1981 = vpop.f32.mrf.mxu0
      %v1982 = vadd.f32 %v1901, %v1981
      %1983 = vmatmul.bf16.gmra.mxu0 %v1927
      %v1984 = vpop.f32.mrf.mxu0
      %v1985 = vadd.f32 %v1901, %v1984
      %v1986 = vpop.f32.mrf.mxu0
      %v1987 = vadd.f32 %v1901, %v1986
      %1988 = vmatmul.bf16.gmra.mxu0 %v1929
      %v1989 = vpop.f32.mrf.mxu0
      %v1990 = vadd.f32 %v1901, %v1989
      %v1991 = vpop.f32.mrf.mxu0
      %v1992 = vadd.f32 %v1901, %v1991
      %1993 = vmatmul.bf16.gmra.mxu0 %v1931
      %v1994 = vpop.f32.mrf.mxu0
      %v1995 = vadd.f32 %v1901, %v1994
      %v1996 = vpop.f32.mrf.mxu0
      %v1997 = vadd.f32 %v1901, %v1996
      %1998 = vmatmul.bf16.gmra.mxu0 %v1933
      %v1999 = vpop.f32.mrf.mxu0
      %v2000 = vadd.f32 %v1901, %v1999
      %v2001 = vpop.f32.mrf.mxu0
      %v2002 = vadd.f32 %v1901, %v2001
      %2003 = vmatmul.bf16.gmra.mxu0 %v1935
      %v2004 = vpop.f32.mrf.mxu0
      %v2005 = vadd.f32 %v1901, %v2004
      %v2006 = vpop.f32.mrf.mxu0
      %v2007 = vadd.f32 %v1901, %v2006
      %2008 = vmatmul.bf16.gmra.mxu0 %v1937
      %v2009 = vpop.f32.mrf.mxu0
      %v2010 = vadd.f32 %v1901, %v2009
      %v2011 = vpop.f32.mrf.mxu0
      %v2012 = vadd.f32 %v1901, %v2011
      %2013 = vmatmul.bf16.gmra.mxu0 %v1939
      %v2014 = vpop.f32.mrf.mxu0
      %v2015 = vadd.f32 %v1901, %v2014
      %v2016 = vpop.f32.mrf.mxu0
      %v2017 = vadd.f32 %v1901, %v2016
      %2018 = vmatmul.bf16.gmra.mxu0 %v1941
      %v2019 = vpop.f32.mrf.mxu0
      %v2020 = vadd.f32 %v1901, %v2019
      %v2021 = vpop.f32.mrf.mxu0
      %v2022 = vadd.f32 %v1901, %v2021
      %2023 = vmatmul.bf16.gmra.mxu0 %v1943
      %v2024 = vpop.f32.mrf.mxu0
      %v2025 = vadd.f32 %v1901, %v2024
      %v2026 = vpop.f32.mrf.mxu0
      %v2027 = vadd.f32 %v1901, %v2026
      %2028 = vmatmul.bf16.gmra.mxu0 %v1945
      %v2029 = vpop.f32.mrf.mxu0
      %v2030 = vadd.f32 %v1901, %v2029
      %v2031 = vpop.f32.mrf.mxu0
      %v2032 = vadd.f32 %v1901, %v2031
      %2033 = vmatmul.bf16.gmra.mxu0 %v1947
      %v2034 = vpop.f32.mrf.mxu0
      %v2035 = vadd.f32 %v1901, %v2034
      %v2036 = vpop.f32.mrf.mxu0
      %v2037 = vadd.f32 %v1901, %v2036
      %2038 = vmatmul.bf16.gmra.mxu0 %v1949
      %v2039 = vpop.f32.mrf.mxu0
      %v2040 = vadd.f32 %v1901, %v2039
      %v2041 = vpop.f32.mrf.mxu0
      %v2042 = vadd.f32 %v1901, %v2041
      %2043 = vdwg.mxu0
      %vm2044 = vcmp.ge.f32.partialorder %v1965, 0.0
      %vm2045 = vcmp.ge.f32.partialorder %v1967, 0.0
      %vm2046 = vcmp.ge.f32.partialorder %v1970, 0.0
      %vm2047 = vcmp.ge.f32.partialorder %v1972, 0.0
      %vm2048 = vcmp.ge.f32.partialorder %v1975, 0.0
      %vm2049 = vcmp.ge.f32.partialorder %v1977, 0.0
      %vm2050 = vcmp.ge.f32.partialorder %v1980, 0.0
      %vm2051 = vcmp.ge.f32.partialorder %v1982, 0.0
      %vm2052 = vcmp.ge.f32.partialorder %v1985, 0.0
      %vm2053 = vcmp.ge.f32.partialorder %v1987, 0.0
      %vm2054 = vcmp.ge.f32.partialorder %v1990, 0.0
      %vm2055 = vcmp.ge.f32.partialorder %v1992, 0.0
      %vm2056 = vcmp.ge.f32.partialorder %v1995, 0.0
      %vm2057 = vcmp.ge.f32.partialorder %v1997, 0.0
      %vm2058 = vcmp.ge.f32.partialorder %v2000, 0.0
      %vm2059 = vcmp.ge.f32.partialorder %v2002, 0.0
      %vm2060 = vcmp.ge.f32.partialorder %v2005, 0.0
      %vm2061 = vcmp.ge.f32.partialorder %v2007, 0.0
      %vm2062 = vcmp.ge.f32.partialorder %v2010, 0.0
      %vm2063 = vcmp.ge.f32.partialorder %v2012, 0.0
      %vm2064 = vcmp.ge.f32.partialorder %v2015, 0.0
      %vm2065 = vcmp.ge.f32.partialorder %v2017, 0.0
      %vm2066 = vcmp.ge.f32.partialorder %v2020, 0.0
      %vm2067 = vcmp.ge.f32.partialorder %v2022, 0.0
      %vm2068 = vcmp.ge.f32.partialorder %v2025, 0.0
      %vm2069 = vcmp.ge.f32.partialorder %v2027, 0.0
      %vm2070 = vcmp.ge.f32.partialorder %v2030, 0.0
      %vm2071 = vcmp.ge.f32.partialorder %v2032, 0.0
      %vm2072 = vcmp.ge.f32.partialorder %v2035, 0.0
      %vm2073 = vcmp.ge.f32.partialorder %v2037, 0.0
      %vm2074 = vcmp.ge.f32.partialorder %v2040, 0.0
      %vm2075 = vcmp.ge.f32.partialorder %v2042, 0.0
      %v2076 = vmul.f32 %v1965, 0.2
      %v2077 = vmul.f32 %v1967, 0.2
      %v2078 = vmul.f32 %v1970, 0.2
      %v2079 = vmul.f32 %v1972, 0.2
      %v2080 = vmul.f32 %v1975, 0.2
      %v2081 = vmul.f32 %v1977, 0.2
      %v2082 = vmul.f32 %v1980, 0.2
      %v2083 = vmul.f32 %v1982, 0.2
      %v2084 = vmul.f32 %v1985, 0.2
      %v2085 = vmul.f32 %v1987, 0.2
      %v2086 = vmul.f32 %v1990, 0.2
      %v2087 = vmul.f32 %v1992, 0.2
      %v2088 = vmul.f32 %v1995, 0.2
      %v2089 = vmul.f32 %v1997, 0.2
      %v2090 = vmul.f32 %v2000, 0.2
      %v2091 = vmul.f32 %v2002, 0.2
      %v2092 = vmul.f32 %v2005, 0.2
      %v2093 = vmul.f32 %v2007, 0.2
      %v2094 = vmul.f32 %v2010, 0.2
      %v2095 = vmul.f32 %v2012, 0.2
      %v2096 = vmul.f32 %v2015, 0.2
      %v2097 = vmul.f32 %v2017, 0.2
      %v2098 = vmul.f32 %v2020, 0.2
      %v2099 = vmul.f32 %v2022, 0.2
      %v2100 = vmul.f32 %v2025, 0.2
      %v2101 = vmul.f32 %v2027, 0.2
      %v2102 = vmul.f32 %v2030, 0.2
      %v2103 = vmul.f32 %v2032, 0.2
      %v2104 = vmul.f32 %v2035, 0.2
      %v2105 = vmul.f32 %v2037, 0.2
      %v2106 = vmul.f32 %v2040, 0.2
      %v2107 = vmul.f32 %v2042, 0.2
      %v2108 = vsel %vm2044, %v1965, %v2076
      %v2109 = vsel %vm2045, %v1967, %v2077
      %v2110 = vsel %vm2046, %v1970, %v2078
      %v2111 = vsel %vm2047, %v1972, %v2079
      %v2112 = vsel %vm2048, %v1975, %v2080
      %v2113 = vsel %vm2049, %v1977, %v2081
      %v2114 = vsel %vm2050, %v1980, %v2082
      %v2115 = vsel %vm2051, %v1982, %v2083
      %v2116 = vsel %vm2052, %v1985, %v2084
      %v2117 = vsel %vm2053, %v1987, %v2085
      %v2118 = vsel %vm2054, %v1990, %v2086
      %v2119 = vsel %vm2055, %v1992, %v2087
      %v2120 = vsel %vm2056, %v1995, %v2088
      %v2121 = vsel %vm2057, %v1997, %v2089
      %v2122 = vsel %vm2058, %v2000, %v2090
      %v2123 = vsel %vm2059, %v2002, %v2091
      %v2124 = vsel %vm2060, %v2005, %v2092
      %v2125 = vsel %vm2061, %v2007, %v2093
      %v2126 = vsel %vm2062, %v2010, %v2094
      %v2127 = vsel %vm2063, %v2012, %v2095
      %v2128 = vsel %vm2064, %v2015, %v2096
      %v2129 = vsel %vm2065, %v2017, %v2097
      %v2130 = vsel %vm2066, %v2020, %v2098
      %v2131 = vsel %vm2067, %v2022, %v2099
      %v2132 = vsel %vm2068, %v2025, %v2100
      %v2133 = vsel %vm2069, %v2027, %v2101
      %v2134 = vsel %vm2070, %v2030, %v2102
      %v2135 = vsel %vm2071, %v2032, %v2103
      %v2136 = vsel %vm2072, %v2035, %v2104
      %v2137 = vsel %vm2073, %v2037, %v2105
      %v2138 = vsel %vm2074, %v2040, %v2106
      %v2139 = vsel %vm2075, %v2042, %v2107
      %v2140 = vpack.c.bf16 %v2108, %v2108
      %v2141 = vpack.c.bf16 %v2109, %v2109
      %v2142 = vpack.c.bf16 %v2110, %v2110
      %v2143 = vpack.c.bf16 %v2111, %v2111
      %v2144 = vpack.c.bf16 %v2112, %v2112
      %v2145 = vpack.c.bf16 %v2113, %v2113
      %v2146 = vpack.c.bf16 %v2114, %v2114
      %v2147 = vpack.c.bf16 %v2115, %v2115
      %v2148 = vpack.c.bf16 %v2116, %v2116
      %v2149 = vpack.c.bf16 %v2117, %v2117
      %v2150 = vpack.c.bf16 %v2118, %v2118
      %v2151 = vpack.c.bf16 %v2119, %v2119
      %v2152 = vpack.c.bf16 %v2120, %v2120
      %v2153 = vpack.c.bf16 %v2121, %v2121
      %v2154 = vpack.c.bf16 %v2122, %v2122
      %v2155 = vpack.c.bf16 %v2123, %v2123
      %v2156 = vpack.c.bf16 %v2124, %v2124
      %v2157 = vpack.c.bf16 %v2125, %v2125
      %v2158 = vpack.c.bf16 %v2126, %v2126
      %v2159 = vpack.c.bf16 %v2127, %v2127
      %v2160 = vpack.c.bf16 %v2128, %v2128
      %v2161 = vpack.c.bf16 %v2129, %v2129
      %v2162 = vpack.c.bf16 %v2130, %v2130
      %v2163 = vpack.c.bf16 %v2131, %v2131
      %v2164 = vpack.c.bf16 %v2132, %v2132
      %v2165 = vpack.c.bf16 %v2133, %v2133
      %v2166 = vpack.c.bf16 %v2134, %v2134
      %v2167 = vpack.c.bf16 %v2135, %v2135
      %v2168 = vpack.c.bf16 %v2136, %v2136
      %v2169 = vpack.c.bf16 %v2137, %v2137
      %v2170 = vpack.c.bf16 %v2138, %v2138
      %v2171 = vpack.c.bf16 %v2139, %v2139
      %v2173 = vshrl.u32 %v2140, 16
      %v2175 = vrot.slane %v2173, 7
      %v2176 = vshll.u32 %v2140, 16
      %v2178 = vor.u32 %v2175, %v2176
      %v2179 = vrot.slane %v2175, 4
      %v2181 = vshrl.u32 %v2141, 16
      %v2183 = vrot.slane %v2181, 7
      %v2184 = vshll.u32 %v2141, 16
      %v2186 = vor.u32 %v2183, %v2184
      %v2187 = vsel %vm465, %v2179, %v2186
      %v2188 = vrot.slane %v2183, 4
      %v2190 = vshrl.u32 %v2142, 16
      %v2192 = vrot.slane %v2190, 7
      %v2193 = vshll.u32 %v2142, 16
      %v2195 = vor.u32 %v2192, %v2193
      %v2196 = vrot.slane %v2192, 4
      %v2198 = vshrl.u32 %v2143, 16
      %v2200 = vrot.slane %v2198, 7
      %v2201 = vshll.u32 %v2143, 16
      %v2203 = vor.u32 %v2200, %v2201
      %v2204 = vsel %vm465, %v2196, %v2203
      %v2205 = vrot.slane %v2200, 4
      %v2207 = vshrl.u32 %v2144, 16
      %v2209 = vrot.slane %v2207, 7
      %v2210 = vshll.u32 %v2144, 16
      %v2212 = vor.u32 %v2209, %v2210
      %v2213 = vrot.slane %v2209, 4
      %v2215 = vshrl.u32 %v2145, 16
      %v2217 = vrot.slane %v2215, 7
      %v2218 = vshll.u32 %v2145, 16
      %v2220 = vor.u32 %v2217, %v2218
      %v2221 = vsel %vm465, %v2213, %v2220
      %v2222 = vrot.slane %v2217, 4
      %v2224 = vshrl.u32 %v2146, 16
      %v2226 = vrot.slane %v2224, 7
      %v2227 = vshll.u32 %v2146, 16
      %v2229 = vor.u32 %v2226, %v2227
      %v2230 = vrot.slane %v2226, 4
      %v2232 = vshrl.u32 %v2147, 16
      %v2234 = vrot.slane %v2232, 7
      %v2235 = vshll.u32 %v2147, 16
      %v2237 = vor.u32 %v2234, %v2235
      %v2238 = vsel %vm465, %v2230, %v2237
      %v2239 = vrot.slane %v2234, 4
      %v2241 = vshrl.u32 %v2148, 16
      %v2243 = vrot.slane %v2241, 7
      %v2244 = vshll.u32 %v2148, 16
      %v2246 = vor.u32 %v2243, %v2244
      %v2247 = vrot.slane %v2243, 4
      %v2249 = vshrl.u32 %v2149, 16
      %v2251 = vrot.slane %v2249, 7
      %v2252 = vshll.u32 %v2149, 16
      %v2254 = vor.u32 %v2251, %v2252
      %v2255 = vsel %vm465, %v2247, %v2254
      %v2256 = vrot.slane %v2251, 4
      %v2258 = vshrl.u32 %v2150, 16
      %v2260 = vrot.slane %v2258, 7
      %v2261 = vshll.u32 %v2150, 16
      %v2263 = vor.u32 %v2260, %v2261
      %v2264 = vrot.slane %v2260, 4
      %v2266 = vshrl.u32 %v2151, 16
      %v2268 = vrot.slane %v2266, 7
      %v2269 = vshll.u32 %v2151, 16
      %v2271 = vor.u32 %v2268, %v2269
      %v2272 = vsel %vm465, %v2264, %v2271
      %v2273 = vrot.slane %v2268, 4
      %v2275 = vshrl.u32 %v2152, 16
      %v2277 = vrot.slane %v2275, 7
      %v2278 = vshll.u32 %v2152, 16
      %v2280 = vor.u32 %v2277, %v2278
      %v2281 = vrot.slane %v2277, 4
      %v2283 = vshrl.u32 %v2153, 16
      %v2285 = vrot.slane %v2283, 7
      %v2286 = vshll.u32 %v2153, 16
      %v2288 = vor.u32 %v2285, %v2286
      %v2289 = vsel %vm465, %v2281, %v2288
      %v2290 = vrot.slane %v2285, 4
      %v2292 = vshrl.u32 %v2154, 16
      %v2294 = vrot.slane %v2292, 7
      %v2295 = vshll.u32 %v2154, 16
      %v2297 = vor.u32 %v2294, %v2295
      %v2298 = vrot.slane %v2294, 4
      %v2300 = vshrl.u32 %v2155, 16
      %v2302 = vrot.slane %v2300, 7
      %v2303 = vshll.u32 %v2155, 16
      %v2305 = vor.u32 %v2302, %v2303
      %v2306 = vsel %vm465, %v2298, %v2305
      %v2307 = vrot.slane %v2302, 4
      %v2309 = vshrl.u32 %v2156, 16
      %v2311 = vrot.slane %v2309, 7
      %v2312 = vshll.u32 %v2156, 16
      %v2314 = vor.u32 %v2311, %v2312
      %v2315 = vrot.slane %v2311, 4
      %v2317 = vshrl.u32 %v2157, 16
      %v2319 = vrot.slane %v2317, 7
      %v2320 = vshll.u32 %v2157, 16
      %v2322 = vor.u32 %v2319, %v2320
      %v2323 = vsel %vm465, %v2315, %v2322
      %v2324 = vrot.slane %v2319, 4
      %v2326 = vshrl.u32 %v2158, 16
      %v2328 = vrot.slane %v2326, 7
      %v2329 = vshll.u32 %v2158, 16
      %v2331 = vor.u32 %v2328, %v2329
      %v2332 = vrot.slane %v2328, 4
      %v2334 = vshrl.u32 %v2159, 16
      %v2336 = vrot.slane %v2334, 7
      %v2337 = vshll.u32 %v2159, 16
      %v2339 = vor.u32 %v2336, %v2337
      %v2340 = vsel %vm465, %v2332, %v2339
      %v2341 = vrot.slane %v2336, 4
      %v2343 = vshrl.u32 %v2160, 16
      %v2345 = vrot.slane %v2343, 7
      %v2346 = vshll.u32 %v2160, 16
      %v2348 = vor.u32 %v2345, %v2346
      %v2349 = vrot.slane %v2345, 4
      %v2351 = vshrl.u32 %v2161, 16
      %v2353 = vrot.slane %v2351, 7
      %v2354 = vshll.u32 %v2161, 16
      %v2356 = vor.u32 %v2353, %v2354
      %v2357 = vsel %vm465, %v2349, %v2356
      %v2358 = vrot.slane %v2353, 4
      %v2360 = vshrl.u32 %v2162, 16
      %v2362 = vrot.slane %v2360, 7
      %v2363 = vshll.u32 %v2162, 16
      %v2365 = vor.u32 %v2362, %v2363
      %v2366 = vrot.slane %v2362, 4
      %v2368 = vshrl.u32 %v2163, 16
      %v2370 = vrot.slane %v2368, 7
      %v2371 = vshll.u32 %v2163, 16
      %v2373 = vor.u32 %v2370, %v2371
      %v2374 = vsel %vm465, %v2366, %v2373
      %v2375 = vrot.slane %v2370, 4
      %v2377 = vshrl.u32 %v2164, 16
      %v2379 = vrot.slane %v2377, 7
      %v2380 = vshll.u32 %v2164, 16
      %v2382 = vor.u32 %v2379, %v2380
      %v2383 = vrot.slane %v2379, 4
      %v2385 = vshrl.u32 %v2165, 16
      %v2387 = vrot.slane %v2385, 7
      %v2388 = vshll.u32 %v2165, 16
      %v2390 = vor.u32 %v2387, %v2388
      %v2391 = vsel %vm465, %v2383, %v2390
      %v2392 = vrot.slane %v2387, 4
      %v2394 = vshrl.u32 %v2166, 16
      %v2396 = vrot.slane %v2394, 7
      %v2397 = vshll.u32 %v2166, 16
      %v2399 = vor.u32 %v2396, %v2397
      %v2400 = vrot.slane %v2396, 4
      %v2402 = vshrl.u32 %v2167, 16
      %v2404 = vrot.slane %v2402, 7
      %v2405 = vshll.u32 %v2167, 16
      %v2407 = vor.u32 %v2404, %v2405
      %v2408 = vsel %vm465, %v2400, %v2407
      %v2409 = vrot.slane %v2404, 4
      %v2411 = vshrl.u32 %v2168, 16
      %v2413 = vrot.slane %v2411, 7
      %v2414 = vshll.u32 %v2168, 16
      %v2416 = vor.u32 %v2413, %v2414
      %v2417 = vrot.slane %v2413, 4
      %v2419 = vshrl.u32 %v2169, 16
      %v2421 = vrot.slane %v2419, 7
      %v2422 = vshll.u32 %v2169, 16
      %v2424 = vor.u32 %v2421, %v2422
      %v2425 = vsel %vm465, %v2417, %v2424
      %v2426 = vrot.slane %v2421, 4
      %v2428 = vshrl.u32 %v2170, 16
      %v2430 = vrot.slane %v2428, 7
      %v2431 = vshll.u32 %v2170, 16
      %v2433 = vor.u32 %v2430, %v2431
      %v2434 = vrot.slane %v2430, 4
      %v2436 = vshrl.u32 %v2171, 16
      %v2438 = vrot.slane %v2436, 7
      %v2439 = vshll.u32 %v2171, 16
      %v2441 = vor.u32 %v2438, %v2439
      %v2442 = vsel %vm465, %v2434, %v2441
      %v2443 = vrot.slane %v2438, 4
      %s2492 = scalar_lea.vmem [#allocation3], 12
      %vm2493 = vcmask 257024
      %vm2494 = vmand %vm2493, %vm788
      %v2495 = vld [vmem:[%s2492] sm:$0xf]
      %v2496 = vsel %vm2494, %v2178, %v2495
      %2497 = vst [vmem:[%s2492] sm:$0xf] %v2496
      %2498 = vst.msk [vmem:[%s2492 + $0x4] sm:$0xf] %vm375, %v2187
      %vm2499 = vcmask 253952
      %vm2500 = vmand %vm2499, %vm463
      %v2501 = vld [vmem:[%s2492 + $0x8] sm:$0x1]
      %v2502 = vsel %vm2500, %v2188, %v2501
      %2503 = vst [vmem:[%s2492 + $0x8] sm:$0x1] %v2502
      %v2504 = vld [vmem:[%s2492 + $0xc] sm:$0xf]
      %v2505 = vsel %vm2494, %v2195, %v2504
      %2506 = vst [vmem:[%s2492 + $0xc] sm:$0xf] %v2505
      %2507 = vst.msk [vmem:[%s2492 + $0x10] sm:$0xf] %vm375, %v2204
      %v2508 = vld [vmem:[%s2492 + $0x14] sm:$0x1]
      %v2509 = vsel %vm2500, %v2205, %v2508
      %2510 = vst [vmem:[%s2492 + $0x14] sm:$0x1] %v2509
      %v2511 = vld [vmem:[%s2492 + $0x18] sm:$0xf]
      %v2512 = vsel %vm2494, %v2212, %v2511
      %2513 = vst [vmem:[%s2492 + $0x18] sm:$0xf] %v2512
      %2514 = vst.msk [vmem:[%s2492 + $0x1c] sm:$0xf] %vm375, %v2221
      %v2515 = vld [vmem:[%s2492 + $0x20] sm:$0x1]
      %v2516 = vsel %vm2500, %v2222, %v2515
      %2517 = vst [vmem:[%s2492 + $0x20] sm:$0x1] %v2516
      %v2518 = vld [vmem:[%s2492 + $0x24] sm:$0xf]
      %v2519 = vsel %vm2494, %v2229, %v2518
      %2520 = vst [vmem:[%s2492 + $0x24] sm:$0xf] %v2519
      %2521 = vst.msk [vmem:[%s2492 + $0x28] sm:$0xf] %vm375, %v2238
      %v2522 = vld [vmem:[%s2492 + $0x2c] sm:$0x1]
      %v2523 = vsel %vm2500, %v2239, %v2522
      %2524 = vst [vmem:[%s2492 + $0x2c] sm:$0x1] %v2523
      %v2525 = vld [vmem:[%s2492 + $0x30] sm:$0xf]
      %v2526 = vsel %vm2494, %v2246, %v2525
      %2527 = vst [vmem:[%s2492 + $0x30] sm:$0xf] %v2526
      %2528 = vst.msk [vmem:[%s2492 + $0x34] sm:$0xf] %vm375, %v2255
      %v2529 = vld [vmem:[%s2492 + $0x38] sm:$0x1]
      %v2530 = vsel %vm2500, %v2256, %v2529
      %2531 = vst [vmem:[%s2492 + $0x38] sm:$0x1] %v2530
      %v2532 = vld [vmem:[%s2492 + $0x3c] sm:$0xf]
      %v2533 = vsel %vm2494, %v2263, %v2532
      %2534 = vst [vmem:[%s2492 + $0x3c] sm:$0xf] %v2533
      %2535 = vst.msk [vmem:[%s2492 + $0x40] sm:$0xf] %vm375, %v2272
      %v2536 = vld [vmem:[%s2492 + $0x44] sm:$0x1]
      %v2537 = vsel %vm2500, %v2273, %v2536
      %2538 = vst [vmem:[%s2492 + $0x44] sm:$0x1] %v2537
      %v2539 = vld [vmem:[%s2492 + $0x48] sm:$0xf]
      %v2540 = vsel %vm2494, %v2280, %v2539
      %2541 = vst [vmem:[%s2492 + $0x48] sm:$0xf] %v2540
      %2542 = vst.msk [vmem:[%s2492 + $0x4c] sm:$0xf] %vm375, %v2289
      %v2543 = vld [vmem:[%s2492 + $0x50] sm:$0x1]
      %v2544 = vsel %vm2500, %v2290, %v2543
      %2545 = vst [vmem:[%s2492 + $0x50] sm:$0x1] %v2544
      %v2546 = vld [vmem:[%s2492 + $0x54] sm:$0xf]
      %v2547 = vsel %vm2494, %v2297, %v2546
      %2548 = vst [vmem:[%s2492 + $0x54] sm:$0xf] %v2547
      %2549 = vst.msk [vmem:[%s2492 + $0x58] sm:$0xf] %vm375, %v2306
      %v2550 = vld [vmem:[%s2492 + $0x5c] sm:$0x1]
      %v2551 = vsel %vm2500, %v2307, %v2550
      %2552 = vst [vmem:[%s2492 + $0x5c] sm:$0x1] %v2551
      %v2553 = vld [vmem:[%s2492 + $0x60] sm:$0xf]
      %v2554 = vsel %vm2494, %v2314, %v2553
      %2555 = vst [vmem:[%s2492 + $0x60] sm:$0xf] %v2554
      %2556 = vst.msk [vmem:[%s2492 + $0x64] sm:$0xf] %vm375, %v2323
      %v2557 = vld [vmem:[%s2492 + $0x68] sm:$0x1]
      %v2558 = vsel %vm2500, %v2324, %v2557
      %2559 = vst [vmem:[%s2492 + $0x68] sm:$0x1] %v2558
      %v2560 = vld [vmem:[%s2492 + $0x6c] sm:$0xf]
      %v2561 = vsel %vm2494, %v2331, %v2560
      %2562 = vst [vmem:[%s2492 + $0x6c] sm:$0xf] %v2561
      %2563 = vst.msk [vmem:[%s2492 + $0x70] sm:$0xf] %vm375, %v2340
      %v2564 = vld [vmem:[%s2492 + $0x74] sm:$0x1]
      %v2565 = vsel %vm2500, %v2341, %v2564
      %2566 = vst [vmem:[%s2492 + $0x74] sm:$0x1] %v2565
      %v2567 = vld [vmem:[%s2492 + $0x78] sm:$0xf]
      %v2568 = vsel %vm2494, %v2348, %v2567
      %2569 = vst [vmem:[%s2492 + $0x78] sm:$0xf] %v2568
      %2570 = vst.msk [vmem:[%s2492 + $0x7c] sm:$0xf] %vm375, %v2357
      %v2571 = vld [vmem:[%s2492 + $0x80] sm:$0x1]
      %v2572 = vsel %vm2500, %v2358, %v2571
      %2573 = vst [vmem:[%s2492 + $0x80] sm:$0x1] %v2572
      %v2574 = vld [vmem:[%s2492 + $0x84] sm:$0xf]
      %v2575 = vsel %vm2494, %v2365, %v2574
      %2576 = vst [vmem:[%s2492 + $0x84] sm:$0xf] %v2575
      %2577 = vst.msk [vmem:[%s2492 + $0x88] sm:$0xf] %vm375, %v2374
      %v2578 = vld [vmem:[%s2492 + $0x8c] sm:$0x1]
      %v2579 = vsel %vm2500, %v2375, %v2578
      %2580 = vst [vmem:[%s2492 + $0x8c] sm:$0x1] %v2579
      %v2581 = vld [vmem:[%s2492 + $0x90] sm:$0xf]
      %v2582 = vsel %vm2494, %v2382, %v2581
      %2583 = vst [vmem:[%s2492 + $0x90] sm:$0xf] %v2582
      %2584 = vst.msk [vmem:[%s2492 + $0x94] sm:$0xf] %vm375, %v2391
      %v2585 = vld [vmem:[%s2492 + $0x98] sm:$0x1]
      %v2586 = vsel %vm2500, %v2392, %v2585
      %2587 = vst [vmem:[%s2492 + $0x98] sm:$0x1] %v2586
      %v2588 = vld [vmem:[%s2492 + $0x9c] sm:$0xf]
      %v2589 = vsel %vm2494, %v2399, %v2588
      %2590 = vst [vmem:[%s2492 + $0x9c] sm:$0xf] %v2589
      %2591 = vst.msk [vmem:[%s2492 + $0xa0] sm:$0xf] %vm375, %v2408
      %v2592 = vld [vmem:[%s2492 + $0xa4] sm:$0x1]
      %v2593 = vsel %vm2500, %v2409, %v2592
      %2594 = vst [vmem:[%s2492 + $0xa4] sm:$0x1] %v2593
      %v2595 = vld [vmem:[%s2492 + $0xa8] sm:$0xf]
      %v2596 = vsel %vm2494, %v2416, %v2595
      %2597 = vst [vmem:[%s2492 + $0xa8] sm:$0xf] %v2596
      %2598 = vst.msk [vmem:[%s2492 + $0xac] sm:$0xf] %vm375, %v2425
      %v2599 = vld [vmem:[%s2492 + $0xb0] sm:$0x1]
      %v2600 = vsel %vm2500, %v2426, %v2599
      %2601 = vst [vmem:[%s2492 + $0xb0] sm:$0x1] %v2600
      %v2602 = vld [vmem:[%s2492 + $0xb4] sm:$0xf]
      %v2603 = vsel %vm2494, %v2433, %v2602
      %2604 = vst [vmem:[%s2492 + $0xb4] sm:$0xf] %v2603
      %2605 = vst.msk [vmem:[%s2492 + $0xb8] sm:$0xf] %vm375, %v2442
      %v2606 = vld [vmem:[%s2492 + $0xbc] sm:$0x1]
      %v2607 = vsel %vm2500, %v2443, %v2606
      %2608 = vst [vmem:[%s2492 + $0xbc] sm:$0x1] %v2607
      %v2609 = vld [vmem:[#allocation3] sm:$0xf]
      %v2610 = vld [vmem:[#allocation3 + $0x4] sm:$0xf]
      %v2611 = vld [vmem:[#allocation3 + $0x8] sm:$0x1]
      %v2612 = vld [vmem:[#allocation3 + $0xc] sm:$0xf]
      %v2613 = vld [vmem:[#allocation3 + $0x10] sm:$0xf]
      %v2614 = vld [vmem:[#allocation3 + $0x14] sm:$0x1]
      %v2615 = vld [vmem:[#allocation3 + $0x18] sm:$0xf]
      %v2616 = vld [vmem:[#allocation3 + $0x1c] sm:$0xf]
      %v2617 = vld [vmem:[#allocation3 + $0x20] sm:$0x1]
      %v2618 = vld [vmem:[#allocation3 + $0x24] sm:$0xf]
      %v2619 = vld [vmem:[#allocation3 + $0x28] sm:$0xf]
      %v2620 = vld [vmem:[#allocation3 + $0x2c] sm:$0x1]
      %v2621 = vld [vmem:[#allocation3 + $0x30] sm:$0xf]
      %v2622 = vld [vmem:[#allocation3 + $0x34] sm:$0xf]
      %v2623 = vld [vmem:[#allocation3 + $0x38] sm:$0x1]
      %v2624 = vld [vmem:[#allocation3 + $0x3c] sm:$0xf]
      %v2625 = vld [vmem:[#allocation3 + $0x40] sm:$0xf]
      %v2626 = vld [vmem:[#allocation3 + $0x44] sm:$0x1]
      %v2627 = vld [vmem:[#allocation3 + $0x48] sm:$0xf]
      %v2628 = vld [vmem:[#allocation3 + $0x4c] sm:$0xf]
      %v2629 = vld [vmem:[#allocation3 + $0x50] sm:$0x1]
      %v2630 = vld [vmem:[#allocation3 + $0x54] sm:$0xf]
      %v2631 = vld [vmem:[#allocation3 + $0x58] sm:$0xf]
      %v2632 = vld [vmem:[#allocation3 + $0x5c] sm:$0x1]
      %v2633 = vld [vmem:[#allocation3 + $0x60] sm:$0xf]
      %v2634 = vld [vmem:[#allocation3 + $0x64] sm:$0xf]
      %v2635 = vld [vmem:[#allocation3 + $0x68] sm:$0x1]
      %v2636 = vld [vmem:[#allocation3 + $0x6c] sm:$0xf]
      %v2637 = vld [vmem:[#allocation3 + $0x70] sm:$0xf]
      %v2638 = vld [vmem:[#allocation3 + $0x74] sm:$0x1]
      %v2639 = vld [vmem:[#allocation3 + $0x78] sm:$0xf]
      %v2640 = vld [vmem:[#allocation3 + $0x7c] sm:$0xf]
      %v2641 = vld [vmem:[#allocation3 + $0x80] sm:$0x1]
      %v2642 = vld [vmem:[#allocation3 + $0x84] sm:$0xf]
      %v2643 = vld [vmem:[#allocation3 + $0x88] sm:$0xf]
      %v2644 = vld [vmem:[#allocation3 + $0x8c] sm:$0x1]
      %v2645 = vld [vmem:[#allocation3 + $0x90] sm:$0xf]
      %v2646 = vld [vmem:[#allocation3 + $0x94] sm:$0xf]
      %v2647 = vld [vmem:[#allocation3 + $0x98] sm:$0x1]
      %v2648 = vld [vmem:[#allocation3 + $0x9c] sm:$0xf]
      %v2649 = vld [vmem:[#allocation3 + $0xa0] sm:$0xf]
      %v2650 = vld [vmem:[#allocation3 + $0xa4] sm:$0x1]
      %v2651 = vld [vmem:[#allocation3 + $0xa8] sm:$0xf]
      %v2652 = vld [vmem:[#allocation3 + $0xac] sm:$0xf]
      %v2653 = vld [vmem:[#allocation3 + $0xb0] sm:$0x1]
      %v2654 = vld [vmem:[#allocation3 + $0xb4] sm:$0xf]
      %v2655 = vld [vmem:[#allocation3 + $0xb8] sm:$0xf]
      %v2656 = vld [vmem:[#allocation3 + $0xbc] sm:$0x1]
      %v2657 = vld [vmem:[#allocation3 + $0xc0] sm:$0xf]
      %v2658 = vld [vmem:[#allocation3 + $0xc4] sm:$0xf]
      %v2659 = vld [vmem:[#allocation3 + $0xc8] sm:$0x1]
      %v2660 = vld [vmem:[#allocation3 + $0xcc] sm:$0xf]
      %v2661 = vld [vmem:[#allocation3 + $0xd0] sm:$0xf]
      %v2662 = vld [vmem:[#allocation3 + $0xd4] sm:$0x1]
      %v2695 = vunpack.c.l.b16 %v2609
      %v2696 = vunpack.c.l.b16 %v2610
      %v2697 = vunpack.c.l.b16 %v2612
      %v2698 = vunpack.c.l.b16 %v2613
      %v2699 = vunpack.c.l.b16 %v2615
      %v2700 = vunpack.c.l.b16 %v2616
      %v2701 = vunpack.c.l.b16 %v2618
      %v2702 = vunpack.c.l.b16 %v2619
      %v2703 = vunpack.c.l.b16 %v2621
      %v2704 = vunpack.c.l.b16 %v2622
      %v2705 = vunpack.c.l.b16 %v2624
      %v2706 = vunpack.c.l.b16 %v2625
      %v2707 = vunpack.c.l.b16 %v2627
      %v2708 = vunpack.c.l.b16 %v2628
      %v2709 = vunpack.c.l.b16 %v2630
      %v2710 = vunpack.c.l.b16 %v2631
      %v2711 = vunpack.c.l.b16 %v2633
      %v2712 = vunpack.c.l.b16 %v2634
      %v2713 = vunpack.c.l.b16 %v2636
      %v2714 = vunpack.c.l.b16 %v2637
      %v2715 = vunpack.c.l.b16 %v2639
      %v2716 = vunpack.c.l.b16 %v2640
      %v2717 = vunpack.c.l.b16 %v2642
      %v2718 = vunpack.c.l.b16 %v2643
      %v2719 = vunpack.c.l.b16 %v2645
      %v2720 = vunpack.c.l.b16 %v2646
      %v2721 = vunpack.c.l.b16 %v2648
      %v2722 = vunpack.c.l.b16 %v2649
      %v2723 = vunpack.c.l.b16 %v2651
      %v2724 = vunpack.c.l.b16 %v2652
      %v2725 = vunpack.c.l.b16 %v2654
      %v2726 = vunpack.c.l.b16 %v2655
      %v2727 = vpack.c.b16 %v2696, %v2695
      %v2728 = vpack.c.b16 %v2698, %v2697
      %v2729 = vpack.c.b16 %v2700, %v2699
      %v2730 = vpack.c.b16 %v2702, %v2701
      %v2731 = vpack.c.b16 %v2704, %v2703
      %v2732 = vpack.c.b16 %v2706, %v2705
      %v2733 = vpack.c.b16 %v2708, %v2707
      %v2734 = vpack.c.b16 %v2710, %v2709
      %v2735 = vpack.c.b16 %v2712, %v2711
      %v2736 = vpack.c.b16 %v2714, %v2713
      %v2737 = vpack.c.b16 %v2716, %v2715
      %v2738 = vpack.c.b16 %v2718, %v2717
      %v2739 = vpack.c.b16 %v2720, %v2719
      %v2740 = vpack.c.b16 %v2722, %v2721
      %v2741 = vpack.c.b16 %v2724, %v2723
      %v2742 = vpack.c.b16 %v2726, %v2725
      %v2759 = vunpack.c.l.b16 %v2611
      %v2760 = vunpack.c.l.b16 %v2614
      %v2761 = vunpack.c.l.b16 %v2617
      %v2762 = vunpack.c.l.b16 %v2620
      %v2763 = vunpack.c.l.b16 %v2623
      %v2764 = vunpack.c.l.b16 %v2626
      %v2765 = vunpack.c.l.b16 %v2629
      %v2766 = vunpack.c.l.b16 %v2632
      %v2767 = vunpack.c.l.b16 %v2635
      %v2768 = vunpack.c.l.b16 %v2638
      %v2769 = vunpack.c.l.b16 %v2641
      %v2770 = vunpack.c.l.b16 %v2644
      %v2771 = vunpack.c.l.b16 %v2647
      %v2772 = vunpack.c.l.b16 %v2650
      %v2773 = vunpack.c.l.b16 %v2653
      %v2774 = vunpack.c.l.b16 %v2656
      %v2775 = vpack.c.b16 %v2759, %v2759
      %v2776 = vpack.c.b16 %v2760, %v2760
      %v2777 = vpack.c.b16 %v2761, %v2761
      %v2778 = vpack.c.b16 %v2762, %v2762
      %v2779 = vpack.c.b16 %v2763, %v2763
      %v2780 = vpack.c.b16 %v2764, %v2764
      %v2781 = vpack.c.b16 %v2765, %v2765
      %v2782 = vpack.c.b16 %v2766, %v2766
      %v2783 = vpack.c.b16 %v2767, %v2767
      %v2784 = vpack.c.b16 %v2768, %v2768
      %v2785 = vpack.c.b16 %v2769, %v2769
      %v2786 = vpack.c.b16 %v2770, %v2770
      %v2787 = vpack.c.b16 %v2771, %v2771
      %v2788 = vpack.c.b16 %v2772, %v2772
      %v2789 = vpack.c.b16 %v2773, %v2773
      %v2790 = vpack.c.b16 %v2774, %v2774
      %v2792 = vshrl.u32 %v2727, 16
      %v2794 = vshll.u32 %v2727, 16
      %v2796 = vrot.slane %v2794, 1
      %v2797 = vor.u32 %v2792, %v2796
      %v2799 = vshll.u32 %v2775, 16
      %v2801 = vrot.slane %v2799, 1
      %v2802 = vsel %vm1086, %v2797, %v2801
      %v2804 = vshrl.u32 %v2728, 16
      %v2806 = vshll.u32 %v2728, 16
      %v2808 = vrot.slane %v2806, 1
      %v2809 = vor.u32 %v2804, %v2808
      %v2811 = vshll.u32 %v2776, 16
      %v2813 = vrot.slane %v2811, 1
      %v2814 = vsel %vm1086, %v2809, %v2813
      %v2816 = vshrl.u32 %v2729, 16
      %v2818 = vshll.u32 %v2729, 16
      %v2820 = vrot.slane %v2818, 1
      %v2821 = vor.u32 %v2816, %v2820
      %v2823 = vshll.u32 %v2777, 16
      %v2825 = vrot.slane %v2823, 1
      %v2826 = vsel %vm1086, %v2821, %v2825
      %v2828 = vshrl.u32 %v2730, 16
      %v2830 = vshll.u32 %v2730, 16
      %v2832 = vrot.slane %v2830, 1
      %v2833 = vor.u32 %v2828, %v2832
      %v2835 = vshll.u32 %v2778, 16
      %v2837 = vrot.slane %v2835, 1
      %v2838 = vsel %vm1086, %v2833, %v2837
      %v2840 = vshrl.u32 %v2731, 16
      %v2842 = vshll.u32 %v2731, 16
      %v2844 = vrot.slane %v2842, 1
      %v2845 = vor.u32 %v2840, %v2844
      %v2847 = vshll.u32 %v2779, 16
      %v2849 = vrot.slane %v2847, 1
      %v2850 = vsel %vm1086, %v2845, %v2849
      %v2852 = vshrl.u32 %v2732, 16
      %v2854 = vshll.u32 %v2732, 16
      %v2856 = vrot.slane %v2854, 1
      %v2857 = vor.u32 %v2852, %v2856
      %v2859 = vshll.u32 %v2780, 16
      %v2861 = vrot.slane %v2859, 1
      %v2862 = vsel %vm1086, %v2857, %v2861
      %v2864 = vshrl.u32 %v2733, 16
      %v2866 = vshll.u32 %v2733, 16
      %v2868 = vrot.slane %v2866, 1
      %v2869 = vor.u32 %v2864, %v2868
      %v2871 = vshll.u32 %v2781, 16
      %v2873 = vrot.slane %v2871, 1
      %v2874 = vsel %vm1086, %v2869, %v2873
      %v2876 = vshrl.u32 %v2734, 16
      %v2878 = vshll.u32 %v2734, 16
      %v2880 = vrot.slane %v2878, 1
      %v2881 = vor.u32 %v2876, %v2880
      %v2883 = vshll.u32 %v2782, 16
      %v2885 = vrot.slane %v2883, 1
      %v2886 = vsel %vm1086, %v2881, %v2885
      %v2888 = vshrl.u32 %v2735, 16
      %v2890 = vshll.u32 %v2735, 16
      %v2892 = vrot.slane %v2890, 1
      %v2893 = vor.u32 %v2888, %v2892
      %v2895 = vshll.u32 %v2783, 16
      %v2897 = vrot.slane %v2895, 1
      %v2898 = vsel %vm1086, %v2893, %v2897
      %v2900 = vshrl.u32 %v2736, 16
      %v2902 = vshll.u32 %v2736, 16
      %v2904 = vrot.slane %v2902, 1
      %v2905 = vor.u32 %v2900, %v2904
      %v2907 = vshll.u32 %v2784, 16
      %v2909 = vrot.slane %v2907, 1
      %v2910 = vsel %vm1086, %v2905, %v2909
      %v2912 = vshrl.u32 %v2737, 16
      %v2914 = vshll.u32 %v2737, 16
      %v2916 = vrot.slane %v2914, 1
      %v2917 = vor.u32 %v2912, %v2916
      %v2919 = vshll.u32 %v2785, 16
      %v2921 = vrot.slane %v2919, 1
      %v2922 = vsel %vm1086, %v2917, %v2921
      %v2924 = vshrl.u32 %v2738, 16
      %v2926 = vshll.u32 %v2738, 16
      %v2928 = vrot.slane %v2926, 1
      %v2929 = vor.u32 %v2924, %v2928
      %v2931 = vshll.u32 %v2786, 16
      %v2933 = vrot.slane %v2931, 1
      %v2934 = vsel %vm1086, %v2929, %v2933
      %v2936 = vshrl.u32 %v2739, 16
      %v2938 = vshll.u32 %v2739, 16
      %v2940 = vrot.slane %v2938, 1
      %v2941 = vor.u32 %v2936, %v2940
      %v2943 = vshll.u32 %v2787, 16
      %v2945 = vrot.slane %v2943, 1
      %v2946 = vsel %vm1086, %v2941, %v2945
      %v2948 = vshrl.u32 %v2740, 16
      %v2950 = vshll.u32 %v2740, 16
      %v2952 = vrot.slane %v2950, 1
      %v2953 = vor.u32 %v2948, %v2952
      %v2955 = vshll.u32 %v2788, 16
      %v2957 = vrot.slane %v2955, 1
      %v2958 = vsel %vm1086, %v2953, %v2957
      %v2960 = vshrl.u32 %v2741, 16
      %v2962 = vshll.u32 %v2741, 16
      %v2964 = vrot.slane %v2962, 1
      %v2965 = vor.u32 %v2960, %v2964
      %v2967 = vshll.u32 %v2789, 16
      %v2969 = vrot.slane %v2967, 1
      %v2970 = vsel %vm1086, %v2965, %v2969
      %v2972 = vshrl.u32 %v2742, 16
      %v2974 = vshll.u32 %v2742, 16
      %v2976 = vrot.slane %v2974, 1
      %v2977 = vor.u32 %v2972, %v2976
      %v2979 = vshll.u32 %v2790, 16
      %v2981 = vrot.slane %v2979, 1
      %v2982 = vsel %vm1086, %v2977, %v2981
      %2983 = vrot.lane.b32.xlu0 %v2802, 32
      %v2984 = vpop.permute.xlu0 %2983
      %2985 = vrot.lane.b32.xlu0 %v2814, 32
      %v2986 = vpop.permute.xlu0 %2985
      %2987 = vrot.lane.b32.xlu0 %v2826, 32
      %v2988 = vpop.permute.xlu0 %2987
      %2989 = vrot.lane.b32.xlu0 %v2838, 32
      %v2990 = vpop.permute.xlu0 %2989
      %2991 = vrot.lane.b32.xlu0 %v2850, 32
      %v2992 = vpop.permute.xlu0 %2991
      %2993 = vrot.lane.b32.xlu0 %v2862, 32
      %v2994 = vpop.permute.xlu0 %2993
      %2995 = vrot.lane.b32.xlu0 %v2874, 32
      %v2996 = vpop.permute.xlu0 %2995
      %2997 = vrot.lane.b32.xlu0 %v2886, 32
      %v2998 = vpop.permute.xlu0 %2997
      %2999 = vrot.lane.b32.xlu0 %v2898, 32
      %v3000 = vpop.permute.xlu0 %2999
      %3001 = vrot.lane.b32.xlu0 %v2910, 32
      %v3002 = vpop.permute.xlu0 %3001
      %3003 = vrot.lane.b32.xlu0 %v2922, 32
      %v3004 = vpop.permute.xlu0 %3003
      %3005 = vrot.lane.b32.xlu0 %v2934, 32
      %v3006 = vpop.permute.xlu0 %3005
      %3007 = vrot.lane.b32.xlu0 %v2946, 32
      %v3008 = vpop.permute.xlu0 %3007
      %3009 = vrot.lane.b32.xlu0 %v2958, 32
      %v3010 = vpop.permute.xlu0 %3009
      %3011 = vrot.lane.b32.xlu0 %v2970, 32
      %v3012 = vpop.permute.xlu0 %3011
      %3013 = vrot.lane.b32.xlu0 %v2982, 32
      %v3014 = vpop.permute.xlu0 %3013
      %v3015 = vrot.slane %v2727, 1
      %v3016 = vrot.slane %v2775, 1
      %v3017 = vsel %vm1311, %v3015, %v3016
      %v3018 = vrot.slane %v2728, 1
      %v3019 = vrot.slane %v2776, 1
      %v3020 = vsel %vm1311, %v3018, %v3019
      %v3021 = vrot.slane %v2729, 1
      %v3022 = vrot.slane %v2777, 1
      %v3023 = vsel %vm1311, %v3021, %v3022
      %v3024 = vrot.slane %v2730, 1
      %v3025 = vrot.slane %v2778, 1
      %v3026 = vsel %vm1311, %v3024, %v3025
      %v3027 = vrot.slane %v2731, 1
      %v3028 = vrot.slane %v2779, 1
      %v3029 = vsel %vm1311, %v3027, %v3028
      %v3030 = vrot.slane %v2732, 1
      %v3031 = vrot.slane %v2780, 1
      %v3032 = vsel %vm1311, %v3030, %v3031
      %v3033 = vrot.slane %v2733, 1
      %v3034 = vrot.slane %v2781, 1
      %v3035 = vsel %vm1311, %v3033, %v3034
      %v3036 = vrot.slane %v2734, 1
      %v3037 = vrot.slane %v2782, 1
      %v3038 = vsel %vm1311, %v3036, %v3037
      %v3039 = vrot.slane %v2735, 1
      %v3040 = vrot.slane %v2783, 1
      %v3041 = vsel %vm1311, %v3039, %v3040
      %v3042 = vrot.slane %v2736, 1
      %v3043 = vrot.slane %v2784, 1
      %v3044 = vsel %vm1311, %v3042, %v3043
      %v3045 = vrot.slane %v2737, 1
      %v3046 = vrot.slane %v2785, 1
      %v3047 = vsel %vm1311, %v3045, %v3046
      %v3048 = vrot.slane %v2738, 1
      %v3049 = vrot.slane %v2786, 1
      %v3050 = vsel %vm1311, %v3048, %v3049
      %v3051 = vrot.slane %v2739, 1
      %v3052 = vrot.slane %v2787, 1
      %v3053 = vsel %vm1311, %v3051, %v3052
      %v3054 = vrot.slane %v2740, 1
      %v3055 = vrot.slane %v2788, 1
      %v3056 = vsel %vm1311, %v3054, %v3055
      %v3057 = vrot.slane %v2741, 1
      %v3058 = vrot.slane %v2789, 1
      %v3059 = vsel %vm1311, %v3057, %v3058
      %v3060 = vrot.slane %v2742, 1
      %v3061 = vrot.slane %v2790, 1
      %v3062 = vsel %vm1311, %v3060, %v3061
      %3063 = vrot.lane.b32.xlu0 %v3017, 64
      %v3064 = vpop.permute.xlu0 %3063
      %3065 = vrot.lane.b32.xlu0 %v3020, 64
      %v3066 = vpop.permute.xlu0 %3065
      %3067 = vrot.lane.b32.xlu0 %v3023, 64
      %v3068 = vpop.permute.xlu0 %3067
      %3069 = vrot.lane.b32.xlu0 %v3026, 64
      %v3070 = vpop.permute.xlu0 %3069
      %3071 = vrot.lane.b32.xlu0 %v3029, 64
      %v3072 = vpop.permute.xlu0 %3071
      %3073 = vrot.lane.b32.xlu0 %v3032, 64
      %v3074 = vpop.permute.xlu0 %3073
      %3075 = vrot.lane.b32.xlu0 %v3035, 64
      %v3076 = vpop.permute.xlu0 %3075
      %3077 = vrot.lane.b32.xlu0 %v3038, 64
      %v3078 = vpop.permute.xlu0 %3077
      %3079 = vrot.lane.b32.xlu0 %v3041, 64
      %v3080 = vpop.permute.xlu0 %3079
      %3081 = vrot.lane.b32.xlu0 %v3044, 64
      %v3082 = vpop.permute.xlu0 %3081
      %3083 = vrot.lane.b32.xlu0 %v3047, 64
      %v3084 = vpop.permute.xlu0 %3083
      %3085 = vrot.lane.b32.xlu0 %v3050, 64
      %v3086 = vpop.permute.xlu0 %3085
      %3087 = vrot.lane.b32.xlu0 %v3053, 64
      %v3088 = vpop.permute.xlu0 %3087
      %3089 = vrot.lane.b32.xlu0 %v3056, 64
      %v3090 = vpop.permute.xlu0 %3089
      %3091 = vrot.lane.b32.xlu0 %v3059, 64
      %v3092 = vpop.permute.xlu0 %3091
      %3093 = vrot.lane.b32.xlu0 %v3062, 64
      %v3094 = vpop.permute.xlu0 %3093
      %v3097 = vunpack.c.l.b16 %v2657
      %v3098 = vunpack.c.l.b16 %v2658
      %v3099 = vpack.c.b16 %v3098, %v3097
      %3100 = vrot.lane.b32.xlu0 %v2728, 96
      %v3101 = vpop.permute.xlu0 %3100
      %3102 = vrot.lane.b32.xlu0 %v2729, 96
      %v3103 = vpop.permute.xlu0 %3102
      %3104 = vrot.lane.b32.xlu0 %v2730, 96
      %v3105 = vpop.permute.xlu0 %3104
      %3106 = vrot.lane.b32.xlu0 %v2731, 96
      %v3107 = vpop.permute.xlu0 %3106
      %3108 = vrot.lane.b32.xlu0 %v2732, 96
      %v3109 = vpop.permute.xlu0 %3108
      %3110 = vrot.lane.b32.xlu0 %v2733, 96
      %v3111 = vpop.permute.xlu0 %3110
      %3112 = vrot.lane.b32.xlu0 %v2734, 96
      %v3113 = vpop.permute.xlu0 %3112
      %3114 = vrot.lane.b32.xlu0 %v2735, 96
      %v3115 = vpop.permute.xlu0 %3114
      %3116 = vrot.lane.b32.xlu0 %v2736, 96
      %v3117 = vpop.permute.xlu0 %3116
      %3118 = vrot.lane.b32.xlu0 %v2737, 96
      %v3119 = vpop.permute.xlu0 %3118
      %3120 = vrot.lane.b32.xlu0 %v2738, 96
      %v3121 = vpop.permute.xlu0 %3120
      %3122 = vrot.lane.b32.xlu0 %v2739, 96
      %v3123 = vpop.permute.xlu0 %3122
      %3124 = vrot.lane.b32.xlu0 %v2740, 96
      %v3125 = vpop.permute.xlu0 %3124
      %3126 = vrot.lane.b32.xlu0 %v2741, 96
      %v3127 = vpop.permute.xlu0 %3126
      %3128 = vrot.lane.b32.xlu0 %v2742, 96
      %v3129 = vpop.permute.xlu0 %3128
      %3130 = vrot.lane.b32.xlu0 %v3099, 96
      %v3131 = vpop.permute.xlu0 %3130
      %v3133 = vunpack.c.l.b16 %v2659
      %v3134 = vpack.c.b16 %v3133, %v3133
      %v3136 = vshrl.u32 %v3099, 16
      %v3138 = vshll.u32 %v3099, 16
      %v3140 = vrot.slane %v3138, 1
      %v3141 = vor.u32 %v3136, %v3140
      %v3143 = vshll.u32 %v3134, 16
      %v3145 = vrot.slane %v3143, 1
      %v3146 = vsel %vm1086, %v3141, %v3145
      %v3147 = vrot.slane %v3099, 1
      %v3148 = vrot.slane %v3134, 1
      %v3149 = vsel %vm1311, %v3147, %v3148
      %3150 = vrot.lane.b32.xlu0 %v3020, 32
      %v3151 = vpop.permute.xlu0 %3150
      %3152 = vrot.lane.b32.xlu0 %v3023, 32
      %v3153 = vpop.permute.xlu0 %3152
      %3154 = vrot.lane.b32.xlu0 %v3026, 32
      %v3155 = vpop.permute.xlu0 %3154
      %3156 = vrot.lane.b32.xlu0 %v3029, 32
      %v3157 = vpop.permute.xlu0 %3156
      %3158 = vrot.lane.b32.xlu0 %v3032, 32
      %v3159 = vpop.permute.xlu0 %3158
      %3160 = vrot.lane.b32.xlu0 %v3035, 32
      %v3161 = vpop.permute.xlu0 %3160
      %3162 = vrot.lane.b32.xlu0 %v3038, 32
      %v3163 = vpop.permute.xlu0 %3162
      %3164 = vrot.lane.b32.xlu0 %v3041, 32
      %v3165 = vpop.permute.xlu0 %3164
      %3166 = vrot.lane.b32.xlu0 %v3044, 32
      %v3167 = vpop.permute.xlu0 %3166
      %3168 = vrot.lane.b32.xlu0 %v3047, 32
      %v3169 = vpop.permute.xlu0 %3168
      %3170 = vrot.lane.b32.xlu0 %v3050, 32
      %v3171 = vpop.permute.xlu0 %3170
      %3172 = vrot.lane.b32.xlu0 %v3053, 32
      %v3173 = vpop.permute.xlu0 %3172
      %3174 = vrot.lane.b32.xlu0 %v3056, 32
      %v3175 = vpop.permute.xlu0 %3174
      %3176 = vrot.lane.b32.xlu0 %v3059, 32
      %v3177 = vpop.permute.xlu0 %3176
      %3178 = vrot.lane.b32.xlu0 %v3062, 32
      %v3179 = vpop.permute.xlu0 %3178
      %3180 = vrot.lane.b32.xlu0 %v3149, 32
      %v3181 = vpop.permute.xlu0 %3180
      %v3184 = vunpack.c.l.b16 %v2660
      %v3185 = vunpack.c.l.b16 %v2661
      %v3186 = vpack.c.b16 %v3185, %v3184
      %3187 = vrot.lane.b32.xlu0 %v2729, 64
      %v3188 = vpop.permute.xlu0 %3187
      %3189 = vrot.lane.b32.xlu0 %v2730, 64
      %v3190 = vpop.permute.xlu0 %3189
      %3191 = vrot.lane.b32.xlu0 %v2731, 64
      %v3192 = vpop.permute.xlu0 %3191
      %3193 = vrot.lane.b32.xlu0 %v2732, 64
      %v3194 = vpop.permute.xlu0 %3193
      %3195 = vrot.lane.b32.xlu0 %v2733, 64
      %v3196 = vpop.permute.xlu0 %3195
      %3197 = vrot.lane.b32.xlu0 %v2734, 64
      %v3198 = vpop.permute.xlu0 %3197
      %3199 = vrot.lane.b32.xlu0 %v2735, 64
      %v3200 = vpop.permute.xlu0 %3199
      %3201 = vrot.lane.b32.xlu0 %v2736, 64
      %v3202 = vpop.permute.xlu0 %3201
      %3203 = vrot.lane.b32.xlu0 %v2737, 64
      %v3204 = vpop.permute.xlu0 %3203
      %3205 = vrot.lane.b32.xlu0 %v2738, 64
      %v3206 = vpop.permute.xlu0 %3205
      %3207 = vrot.lane.b32.xlu0 %v2739, 64
      %v3208 = vpop.permute.xlu0 %3207
      %3209 = vrot.lane.b32.xlu0 %v2740, 64
      %v3210 = vpop.permute.xlu0 %3209
      %3211 = vrot.lane.b32.xlu0 %v2741, 64
      %v3212 = vpop.permute.xlu0 %3211
      %3213 = vrot.lane.b32.xlu0 %v2742, 64
      %v3214 = vpop.permute.xlu0 %3213
      %3215 = vrot.lane.b32.xlu0 %v3099, 64
      %v3216 = vpop.permute.xlu0 %3215
      %3217 = vrot.lane.b32.xlu0 %v3186, 64
      %v3218 = vpop.permute.xlu0 %3217
      %v3220 = vunpack.c.l.b16 %v2662
      %v3221 = vpack.c.b16 %v3220, %v3220
      %v3223 = vshrl.u32 %v3186, 16
      %v3225 = vshll.u32 %v3186, 16
      %v3227 = vrot.slane %v3225, 1
      %v3228 = vor.u32 %v3223, %v3227
      %v3230 = vshll.u32 %v3221, 16
      %v3232 = vrot.slane %v3230, 1
      %v3233 = vsel %vm1086, %v3228, %v3232
      %3234 = vrot.lane.b32.xlu0 %v2826, 96
      %v3235 = vpop.permute.xlu0 %3234
      %3236 = vrot.lane.b32.xlu0 %v2838, 96
      %v3237 = vpop.permute.xlu0 %3236
      %3238 = vrot.lane.b32.xlu0 %v2850, 96
      %v3239 = vpop.permute.xlu0 %3238
      %3240 = vrot.lane.b32.xlu0 %v2862, 96
      %v3241 = vpop.permute.xlu0 %3240
      %3242 = vrot.lane.b32.xlu0 %v2874, 96
      %v3243 = vpop.permute.xlu0 %3242
      %3244 = vrot.lane.b32.xlu0 %v2886, 96
      %v3245 = vpop.permute.xlu0 %3244
      %3246 = vrot.lane.b32.xlu0 %v2898, 96
      %v3247 = vpop.permute.xlu0 %3246
      %3248 = vrot.lane.b32.xlu0 %v2910, 96
      %v3249 = vpop.permute.xlu0 %3248
      %3250 = vrot.lane.b32.xlu0 %v2922, 96
      %v3251 = vpop.permute.xlu0 %3250
      %3252 = vrot.lane.b32.xlu0 %v2934, 96
      %v3253 = vpop.permute.xlu0 %3252
      %3254 = vrot.lane.b32.xlu0 %v2946, 96
      %v3255 = vpop.permute.xlu0 %3254
      %3256 = vrot.lane.b32.xlu0 %v2958, 96
      %v3257 = vpop.permute.xlu0 %3256
      %3258 = vrot.lane.b32.xlu0 %v2970, 96
      %v3259 = vpop.permute.xlu0 %3258
      %3260 = vrot.lane.b32.xlu0 %v2982, 96
      %v3261 = vpop.permute.xlu0 %3260
      %3262 = vrot.lane.b32.xlu0 %v3146, 96
      %v3263 = vpop.permute.xlu0 %3262
      %3264 = vrot.lane.b32.xlu0 %v3233, 96
      %v3265 = vpop.permute.xlu0 %3264
      %v3266 = vrot.slane %v3186, 1
      %v3267 = vrot.slane %v3221, 1
      %v3268 = vsel %vm1311, %v3266, %v3267
      %v3270 = vsel %vm1861, %v2727, %v2984
      %v3272 = vsel %vm1861, %v2728, %v2986
      %v3274 = vsel %vm1861, %v2729, %v2988
      %v3276 = vsel %vm1861, %v2730, %v2990
      %v3278 = vsel %vm1861, %v2731, %v2992
      %v3280 = vsel %vm1861, %v2732, %v2994
      %v3282 = vsel %vm1861, %v2733, %v2996
      %v3284 = vsel %vm1861, %v2734, %v2998
      %v3286 = vsel %vm1861, %v2735, %v3000
      %v3288 = vsel %vm1861, %v2736, %v3002
      %v3290 = vsel %vm1861, %v2737, %v3004
      %v3292 = vsel %vm1861, %v2738, %v3006
      %v3294 = vsel %vm1861, %v2739, %v3008
      %v3296 = vsel %vm1861, %v2740, %v3010
      %v3298 = vsel %vm1861, %v2741, %v3012
      %v3300 = vsel %vm1861, %v2742, %v3014
      %vm3301 = vcmask 523264
      %v3303 = vsel %vm3301, %v3270, %v3064
      %v3305 = vsel %vm3301, %v3272, %v3066
      %v3307 = vsel %vm3301, %v3274, %v3068
      %v3309 = vsel %vm3301, %v3276, %v3070
      %v3311 = vsel %vm3301, %v3278, %v3072
      %v3313 = vsel %vm3301, %v3280, %v3074
      %v3315 = vsel %vm3301, %v3282, %v3076
      %v3317 = vsel %vm3301, %v3284, %v3078
      %v3319 = vsel %vm3301, %v3286, %v3080
      %v3321 = vsel %vm3301, %v3288, %v3082
      %v3323 = vsel %vm3301, %v3290, %v3084
      %v3325 = vsel %vm3301, %v3292, %v3086
      %v3327 = vsel %vm3301, %v3294, %v3088
      %v3329 = vsel %vm3301, %v3296, %v3090
      %v3331 = vsel %vm3301, %v3298, %v3092
      %v3333 = vsel %vm3301, %v3300, %v3094
      %vm3334 = vcmask 785408
      %v3336 = vsel %vm3334, %v3303, %v3101
      %v3339 = vsel %vm3334, %v3305, %v3103
      %v3342 = vsel %vm3334, %v3307, %v3105
      %v3345 = vsel %vm3334, %v3309, %v3107
      %v3348 = vsel %vm3334, %v3311, %v3109
      %v3351 = vsel %vm3334, %v3313, %v3111
      %v3354 = vsel %vm3334, %v3315, %v3113
      %v3357 = vsel %vm3334, %v3317, %v3115
      %v3360 = vsel %vm3334, %v3319, %v3117
      %v3363 = vsel %vm3334, %v3321, %v3119
      %v3366 = vsel %vm3334, %v3323, %v3121
      %v3369 = vsel %vm3334, %v3325, %v3123
      %v3372 = vsel %vm3334, %v3327, %v3125
      %v3375 = vsel %vm3334, %v3329, %v3127
      %v3378 = vsel %vm3334, %v3331, %v3129
      %v3381 = vsel %vm3334, %v3333, %v3131
      %v3385 = vsel %vm1861, %v2814, %v3151
      %v3388 = vsel %vm1861, %v2826, %v3153
      %v3391 = vsel %vm1861, %v2838, %v3155
      %v3394 = vsel %vm1861, %v2850, %v3157
      %v3397 = vsel %vm1861, %v2862, %v3159
      %v3400 = vsel %vm1861, %v2874, %v3161
      %v3403 = vsel %vm1861, %v2886, %v3163
      %v3406 = vsel %vm1861, %v2898, %v3165
      %v3409 = vsel %vm1861, %v2910, %v3167
      %v3412 = vsel %vm1861, %v2922, %v3169
      %v3415 = vsel %vm1861, %v2934, %v3171
      %v3418 = vsel %vm1861, %v2946, %v3173
      %v3421 = vsel %vm1861, %v2958, %v3175
      %v3424 = vsel %vm1861, %v2970, %v3177
      %v3427 = vsel %vm1861, %v2982, %v3179
      %v3430 = vsel %vm1861, %v3146, %v3181
      %v3432 = vsel %vm3301, %v3385, %v3188
      %v3434 = vsel %vm3301, %v3388, %v3190
      %v3436 = vsel %vm3301, %v3391, %v3192
      %v3438 = vsel %vm3301, %v3394, %v3194
      %v3440 = vsel %vm3301, %v3397, %v3196
      %v3442 = vsel %vm3301, %v3400, %v3198
      %v3444 = vsel %vm3301, %v3403, %v3200
      %v3446 = vsel %vm3301, %v3406, %v3202
      %v3448 = vsel %vm3301, %v3409, %v3204
      %v3450 = vsel %vm3301, %v3412, %v3206
      %v3452 = vsel %vm3301, %v3415, %v3208
      %v3454 = vsel %vm3301, %v3418, %v3210
      %v3456 = vsel %vm3301, %v3421, %v3212
      %v3458 = vsel %vm3301, %v3424, %v3214
      %v3460 = vsel %vm3301, %v3427, %v3216
      %v3462 = vsel %vm3301, %v3430, %v3218
      %v3464 = vsel %vm3334, %v3432, %v3235
      %v3467 = vsel %vm3334, %v3434, %v3237
      %v3470 = vsel %vm3334, %v3436, %v3239
      %v3473 = vsel %vm3334, %v3438, %v3241
      %v3476 = vsel %vm3334, %v3440, %v3243
      %v3479 = vsel %vm3334, %v3442, %v3245
      %v3482 = vsel %vm3334, %v3444, %v3247
      %v3485 = vsel %vm3334, %v3446, %v3249
      %v3488 = vsel %vm3334, %v3448, %v3251
      %v3491 = vsel %vm3334, %v3450, %v3253
      %v3494 = vsel %vm3334, %v3452, %v3255
      %v3497 = vsel %vm3334, %v3454, %v3257
      %v3500 = vsel %vm3334, %v3456, %v3259
      %v3503 = vsel %vm3334, %v3458, %v3261
      %v3506 = vsel %vm3334, %v3460, %v3263
      %v3509 = vsel %vm3334, %v3462, %v3265
      %v3511 = vld [vmem:[%s3] sm:$0xf]
      %v3512 = vld [vmem:[%s3 + $0x4] sm:$0xf]
      %v3513 = vld [vmem:[%s3 + $0x8] sm:$0xf]
      %v3514 = vld [vmem:[%s3 + $0xc] sm:$0xf]
      %v3515 = vld [vmem:[%s3 + $0x10] sm:$0xf]
      %v3516 = vld [vmem:[%s3 + $0x14] sm:$0xf]
      %v3517 = vld [vmem:[%s3 + $0x18] sm:$0xf]
      %v3518 = vld [vmem:[%s3 + $0x1c] sm:$0xf]
      %v3519 = vld [vmem:[%s3 + $0x20] sm:$0xf]
      %v3520 = vld [vmem:[%s3 + $0x24] sm:$0xf]
      %v3521 = vld [vmem:[%s3 + $0x28] sm:$0xf]
      %v3522 = vld [vmem:[%s3 + $0x2c] sm:$0xf]
      %v3523 = vld [vmem:[%s3 + $0x30] sm:$0xf]
      %v3524 = vld [vmem:[%s3 + $0x34] sm:$0xf]
      %v3525 = vld [vmem:[%s3 + $0x38] sm:$0xf]
      %v3526 = vld [vmem:[%s3 + $0x3c] sm:$0xf]
      %v3527 = vld [vmem:[%s3 + $0x40] sm:$0xf]
      %v3528 = vld [vmem:[%s3 + $0x44] sm:$0xf]
      %v3529 = vld [vmem:[%s3 + $0x48] sm:$0xf]
      %v3530 = vld [vmem:[%s3 + $0x4c] sm:$0xf]
      %v3531 = vld [vmem:[%s3 + $0x50] sm:$0xf]
      %v3532 = vld [vmem:[%s3 + $0x54] sm:$0xf]
      %v3533 = vld [vmem:[%s3 + $0x58] sm:$0xf]
      %v3534 = vld [vmem:[%s3 + $0x5c] sm:$0xf]
      %v3535 = vld [vmem:[%s3 + $0x60] sm:$0xf]
      %v3536 = vld [vmem:[%s3 + $0x64] sm:$0xf]
      %v3537 = vld [vmem:[%s3 + $0x68] sm:$0xf]
      %v3538 = vld [vmem:[%s3 + $0x6c] sm:$0xf]
      %v3539 = vld [vmem:[%s3 + $0x70] sm:$0xf]
      %v3540 = vld [vmem:[%s3 + $0x74] sm:$0xf]
      %v3541 = vld [vmem:[%s3 + $0x78] sm:$0xf]
      %v3542 = vld [vmem:[%s3 + $0x7c] sm:$0xf]
      %v3543 = vld [vmem:[%s3 + $0x80] sm:$0xf]
      %v3544 = vld [vmem:[%s3 + $0x84] sm:$0xf]
      %v3545 = vld [vmem:[%s3 + $0x88] sm:$0xf]
      %v3546 = vld [vmem:[%s3 + $0x8c] sm:$0xf]
      %v3547 = vld [vmem:[%s4] sm:$0x1]
      %v3549 = vperm.slane %v3547, 0
      %v3587 = vunpack.c.l.b16 %v3511
      %v3588 = vunpack.c.l.b16 %v3512
      %v3589 = vunpack.c.l.b16 %v3513
      %v3590 = vunpack.c.l.b16 %v3514
      %v3591 = vunpack.c.l.b16 %v3515
      %v3592 = vunpack.c.l.b16 %v3516
      %v3593 = vunpack.c.l.b16 %v3517
      %v3594 = vunpack.c.l.b16 %v3518
      %v3595 = vunpack.c.l.b16 %v3519
      %v3596 = vunpack.c.l.b16 %v3520
      %v3597 = vunpack.c.l.b16 %v3521
      %v3598 = vunpack.c.l.b16 %v3522
      %v3599 = vunpack.c.l.b16 %v3523
      %v3600 = vunpack.c.l.b16 %v3524
      %v3601 = vunpack.c.l.b16 %v3525
      %v3602 = vunpack.c.l.b16 %v3526
      %v3603 = vunpack.c.l.b16 %v3527
      %v3604 = vunpack.c.l.b16 %v3528
      %v3605 = vunpack.c.l.b16 %v3529
      %v3606 = vunpack.c.l.b16 %v3530
      %v3607 = vunpack.c.l.b16 %v3531
      %v3608 = vunpack.c.l.b16 %v3532
      %v3609 = vunpack.c.l.b16 %v3533
      %v3610 = vunpack.c.l.b16 %v3534
      %v3611 = vunpack.c.l.b16 %v3535
      %v3612 = vunpack.c.l.b16 %v3536
      %v3613 = vunpack.c.l.b16 %v3537
      %v3614 = vunpack.c.l.b16 %v3538
      %v3615 = vunpack.c.l.b16 %v3539
      %v3616 = vunpack.c.l.b16 %v3540
      %v3617 = vunpack.c.l.b16 %v3541
      %v3618 = vunpack.c.l.b16 %v3542
      %v3619 = vunpack.c.l.b16 %v3543
      %v3620 = vunpack.c.l.b16 %v3544
      %v3621 = vunpack.c.l.b16 %v3545
      %v3622 = vunpack.c.l.b16 %v3546
      %v3623 = vpack.c.b16 %v3588, %v3587
      %v3624 = vpack.c.b16 %v3590, %v3589
      %v3625 = vpack.c.b16 %v3592, %v3591
      %v3626 = vpack.c.b16 %v3594, %v3593
      %v3627 = vpack.c.b16 %v3596, %v3595
      %v3628 = vpack.c.b16 %v3598, %v3597
      %v3629 = vpack.c.b16 %v3600, %v3599
      %v3630 = vpack.c.b16 %v3602, %v3601
      %v3631 = vpack.c.b16 %v3604, %v3603
      %v3632 = vpack.c.b16 %v3606, %v3605
      %v3633 = vpack.c.b16 %v3608, %v3607
      %v3634 = vpack.c.b16 %v3610, %v3609
      %v3635 = vpack.c.b16 %v3612, %v3611
      %v3636 = vpack.c.b16 %v3614, %v3613
      %v3637 = vpack.c.b16 %v3616, %v3615
      %v3638 = vpack.c.b16 %v3618, %v3617
      %v3639 = vpack.c.b16 %v3620, %v3619
      %v3640 = vpack.c.b16 %v3622, %v3621
      %v3660 = vsel %vm1861, %v3023, 0
      %v3663 = vsel %vm1861, %v3026, 0
      %v3666 = vsel %vm1861, %v3029, 0
      %v3669 = vsel %vm1861, %v3032, 0
      %v3672 = vsel %vm1861, %v3035, 0
      %v3675 = vsel %vm1861, %v3038, 0
      %v3678 = vsel %vm1861, %v3041, 0
      %v3681 = vsel %vm1861, %v3044, 0
      %v3684 = vsel %vm1861, %v3047, 0
      %v3687 = vsel %vm1861, %v3050, 0
      %v3690 = vsel %vm1861, %v3053, 0
      %v3693 = vsel %vm1861, %v3056, 0
      %v3696 = vsel %vm1861, %v3059, 0
      %v3699 = vsel %vm1861, %v3062, 0
      %v3702 = vsel %vm1861, %v3149, 0
      %v3705 = vsel %vm1861, %v3268, 0
      %3707 = vmatpush.bf16.msra.mxu0 %v3630
      %3708 = vmatpush.bf16.msra.mxu0 %v3629
      %3709 = vmatpush.bf16.msra.mxu0 %v3628
      %3710 = vmatpush.bf16.msra.mxu0 %v3627
      %3711 = vmatpush.bf16.msra.mxu0 %v3626
      %3712 = vmatpush.bf16.msra.mxu0 %v3625
      %3713 = vmatpush.bf16.msra.mxu0 %v3624
      %3714 = vmatpush.bf16.msra.mxu0 %v3623
      %3715 = vmatmul.bf16.gmra.mxu0 %v3336
      %v3716 = vpop.f32.mrf.mxu0
      %v3717 = vadd.f32 %v3549, %v3716
      %v3718 = vpop.f32.mrf.mxu0
      %v3719 = vadd.f32 %v3549, %v3718
      %3720 = vmatmul.bf16.gmra.mxu0 %v3339
      %v3721 = vpop.f32.mrf.mxu0
      %v3722 = vadd.f32 %v3549, %v3721
      %v3723 = vpop.f32.mrf.mxu0
      %v3724 = vadd.f32 %v3549, %v3723
      %3725 = vmatmul.bf16.gmra.mxu0 %v3342
      %v3726 = vpop.f32.mrf.mxu0
      %v3727 = vadd.f32 %v3549, %v3726
      %v3728 = vpop.f32.mrf.mxu0
      %v3729 = vadd.f32 %v3549, %v3728
      %3730 = vmatmul.bf16.gmra.mxu0 %v3345
      %v3731 = vpop.f32.mrf.mxu0
      %v3732 = vadd.f32 %v3549, %v3731
      %v3733 = vpop.f32.mrf.mxu0
      %v3734 = vadd.f32 %v3549, %v3733
      %3735 = vmatmul.bf16.gmra.mxu0 %v3348
      %v3736 = vpop.f32.mrf.mxu0
      %v3737 = vadd.f32 %v3549, %v3736
      %v3738 = vpop.f32.mrf.mxu0
      %v3739 = vadd.f32 %v3549, %v3738
      %3740 = vmatmul.bf16.gmra.mxu0 %v3351
      %v3741 = vpop.f32.mrf.mxu0
      %v3742 = vadd.f32 %v3549, %v3741
      %v3743 = vpop.f32.mrf.mxu0
      %v3744 = vadd.f32 %v3549, %v3743
      %3745 = vmatmul.bf16.gmra.mxu0 %v3354
      %v3746 = vpop.f32.mrf.mxu0
      %v3747 = vadd.f32 %v3549, %v3746
      %v3748 = vpop.f32.mrf.mxu0
      %v3749 = vadd.f32 %v3549, %v3748
      %3750 = vmatmul.bf16.gmra.mxu0 %v3357
      %v3751 = vpop.f32.mrf.mxu0
      %v3752 = vadd.f32 %v3549, %v3751
      %v3753 = vpop.f32.mrf.mxu0
      %v3754 = vadd.f32 %v3549, %v3753
      %3755 = vmatmul.bf16.gmra.mxu0 %v3360
      %v3756 = vpop.f32.mrf.mxu0
      %v3757 = vadd.f32 %v3549, %v3756
      %v3758 = vpop.f32.mrf.mxu0
      %v3759 = vadd.f32 %v3549, %v3758
      %3760 = vmatmul.bf16.gmra.mxu0 %v3363
      %v3761 = vpop.f32.mrf.mxu0
      %v3762 = vadd.f32 %v3549, %v3761
      %v3763 = vpop.f32.mrf.mxu0
      %v3764 = vadd.f32 %v3549, %v3763
      %3765 = vmatmul.bf16.gmra.mxu0 %v3366
      %v3766 = vpop.f32.mrf.mxu0
      %v3767 = vadd.f32 %v3549, %v3766
      %v3768 = vpop.f32.mrf.mxu0
      %v3769 = vadd.f32 %v3549, %v3768
      %3770 = vmatmul.bf16.gmra.mxu0 %v3369
      %v3771 = vpop.f32.mrf.mxu0
      %v3772 = vadd.f32 %v3549, %v3771
      %v3773 = vpop.f32.mrf.mxu0
      %v3774 = vadd.f32 %v3549, %v3773
      %3775 = vmatmul.bf16.gmra.mxu0 %v3372
      %v3776 = vpop.f32.mrf.mxu0
      %v3777 = vadd.f32 %v3549, %v3776
      %v3778 = vpop.f32.mrf.mxu0
      %v3779 = vadd.f32 %v3549, %v3778
      %3780 = vmatmul.bf16.gmra.mxu0 %v3375
      %v3781 = vpop.f32.mrf.mxu0
      %v3782 = vadd.f32 %v3549, %v3781
      %v3783 = vpop.f32.mrf.mxu0
      %v3784 = vadd.f32 %v3549, %v3783
      %3785 = vmatmul.bf16.gmra.mxu0 %v3378
      %v3786 = vpop.f32.mrf.mxu0
      %v3787 = vadd.f32 %v3549, %v3786
      %v3788 = vpop.f32.mrf.mxu0
      %v3789 = vadd.f32 %v3549, %v3788
      %3790 = vmatmul.bf16.gmra.mxu0 %v3381
      %v3791 = vpop.f32.mrf.mxu0
      %v3792 = vadd.f32 %v3549, %v3791
      %v3793 = vpop.f32.mrf.mxu0
      %v3794 = vadd.f32 %v3549, %v3793
      %3795 = vdwg.mxu0
      %3796 = vmatpush.bf16.msra.mxu0 %v3638
      %3797 = vmatpush.bf16.msra.mxu0 %v3637
      %3798 = vmatpush.bf16.msra.mxu0 %v3636
      %3799 = vmatpush.bf16.msra.mxu0 %v3635
      %3800 = vmatpush.bf16.msra.mxu0 %v3634
      %3801 = vmatpush.bf16.msra.mxu0 %v3633
      %3802 = vmatpush.bf16.msra.mxu0 %v3632
      %3803 = vmatpush.bf16.msra.mxu0 %v3631
      %3804 = vmatmul.bf16.gmra.mxu0 %v3464
      %v3805 = vpop.f32.mrf.mxu0
      %v3806 = vadd.f32 %v3717, %v3805
      %v3807 = vpop.f32.mrf.mxu0
      %v3808 = vadd.f32 %v3719, %v3807
      %3809 = vmatmul.bf16.gmra.mxu0 %v3467
      %v3810 = vpop.f32.mrf.mxu0
      %v3811 = vadd.f32 %v3722, %v3810
      %v3812 = vpop.f32.mrf.mxu0
      %v3813 = vadd.f32 %v3724, %v3812
      %3814 = vmatmul.bf16.gmra.mxu0 %v3470
      %v3815 = vpop.f32.mrf.mxu0
      %v3816 = vadd.f32 %v3727, %v3815
      %v3817 = vpop.f32.mrf.mxu0
      %v3818 = vadd.f32 %v3729, %v3817
      %3819 = vmatmul.bf16.gmra.mxu0 %v3473
      %v3820 = vpop.f32.mrf.mxu0
      %v3821 = vadd.f32 %v3732, %v3820
      %v3822 = vpop.f32.mrf.mxu0
      %v3823 = vadd.f32 %v3734, %v3822
      %3824 = vmatmul.bf16.gmra.mxu0 %v3476
      %v3825 = vpop.f32.mrf.mxu0
      %v3826 = vadd.f32 %v3737, %v3825
      %v3827 = vpop.f32.mrf.mxu0
      %v3828 = vadd.f32 %v3739, %v3827
      %3829 = vmatmul.bf16.gmra.mxu0 %v3479
      %v3830 = vpop.f32.mrf.mxu0
      %v3831 = vadd.f32 %v3742, %v3830
      %v3832 = vpop.f32.mrf.mxu0
      %v3833 = vadd.f32 %v3744, %v3832
      %3834 = vmatmul.bf16.gmra.mxu0 %v3482
      %v3835 = vpop.f32.mrf.mxu0
      %v3836 = vadd.f32 %v3747, %v3835
      %v3837 = vpop.f32.mrf.mxu0
      %v3838 = vadd.f32 %v3749, %v3837
      %3839 = vmatmul.bf16.gmra.mxu0 %v3485
      %v3840 = vpop.f32.mrf.mxu0
      %v3841 = vadd.f32 %v3752, %v3840
      %v3842 = vpop.f32.mrf.mxu0
      %v3843 = vadd.f32 %v3754, %v3842
      %3844 = vmatmul.bf16.gmra.mxu0 %v3488
      %v3845 = vpop.f32.mrf.mxu0
      %v3846 = vadd.f32 %v3757, %v3845
      %v3847 = vpop.f32.mrf.mxu0
      %v3848 = vadd.f32 %v3759, %v3847
      %3849 = vmatmul.bf16.gmra.mxu0 %v3491
      %v3850 = vpop.f32.mrf.mxu0
      %v3851 = vadd.f32 %v3762, %v3850
      %v3852 = vpop.f32.mrf.mxu0
      %v3853 = vadd.f32 %v3764, %v3852
      %3854 = vmatmul.bf16.gmra.mxu0 %v3494
      %v3855 = vpop.f32.mrf.mxu0
      %v3856 = vadd.f32 %v3767, %v3855
      %v3857 = vpop.f32.mrf.mxu0
      %v3858 = vadd.f32 %v3769, %v3857
      %3859 = vmatmul.bf16.gmra.mxu0 %v3497
      %v3860 = vpop.f32.mrf.mxu0
      %v3861 = vadd.f32 %v3772, %v3860
      %v3862 = vpop.f32.mrf.mxu0
      %v3863 = vadd.f32 %v3774, %v3862
      %3864 = vmatmul.bf16.gmra.mxu0 %v3500
      %v3865 = vpop.f32.mrf.mxu0
      %v3866 = vadd.f32 %v3777, %v3865
      %v3867 = vpop.f32.mrf.mxu0
      %v3868 = vadd.f32 %v3779, %v3867
      %3869 = vmatmul.bf16.gmra.mxu0 %v3503
      %v3870 = vpop.f32.mrf.mxu0
      %v3871 = vadd.f32 %v3782, %v3870
      %v3872 = vpop.f32.mrf.mxu0
      %v3873 = vadd.f32 %v3784, %v3872
      %3874 = vmatmul.bf16.gmra.mxu0 %v3506
      %v3875 = vpop.f32.mrf.mxu0
      %v3876 = vadd.f32 %v3787, %v3875
      %v3877 = vpop.f32.mrf.mxu0
      %v3878 = vadd.f32 %v3789, %v3877
      %3879 = vmatmul.bf16.gmra.mxu0 %v3509
      %v3880 = vpop.f32.mrf.mxu0
      %v3881 = vadd.f32 %v3792, %v3880
      %v3882 = vpop.f32.mrf.mxu0
      %v3883 = vadd.f32 %v3794, %v3882
      %3884 = vdwg.mxu0
      %3885 = vmatpush.bf16.msra.mxu0 0
      %3886 = vmatpush.bf16.msra.mxu0 0
      %3887 = vmatpush.bf16.msra.mxu0 0
      %3888 = vmatpush.bf16.msra.mxu0 0
      %3889 = vmatpush.bf16.msra.mxu0 0
      %3890 = vmatpush.bf16.msra.mxu0 0
      %3891 = vmatpush.bf16.msra.mxu0 %v3640
      %3892 = vmatpush.bf16.msra.mxu0 %v3639
      %3893 = vmatmul.bf16.gmra.mxu0 %v3660
      %v3894 = vpop.f32.mrf.mxu0
      %v3895 = vadd.f32 %v3806, %v3894
      %v3896 = vpop.f32.mrf.mxu0
      %v3897 = vadd.f32 %v3808, %v3896
      %3898 = vmatmul.bf16.gmra.mxu0 %v3663
      %v3899 = vpop.f32.mrf.mxu0
      %v3900 = vadd.f32 %v3811, %v3899
      %v3901 = vpop.f32.mrf.mxu0
      %v3902 = vadd.f32 %v3813, %v3901
      %3903 = vmatmul.bf16.gmra.mxu0 %v3666
      %v3904 = vpop.f32.mrf.mxu0
      %v3905 = vadd.f32 %v3816, %v3904
      %v3906 = vpop.f32.mrf.mxu0
      %v3907 = vadd.f32 %v3818, %v3906
      %3908 = vmatmul.bf16.gmra.mxu0 %v3669
      %v3909 = vpop.f32.mrf.mxu0
      %v3910 = vadd.f32 %v3821, %v3909
      %v3911 = vpop.f32.mrf.mxu0
      %v3912 = vadd.f32 %v3823, %v3911
      %3913 = vmatmul.bf16.gmra.mxu0 %v3672
      %v3914 = vpop.f32.mrf.mxu0
      %v3915 = vadd.f32 %v3826, %v3914
      %v3916 = vpop.f32.mrf.mxu0
      %v3917 = vadd.f32 %v3828, %v3916
      %3918 = vmatmul.bf16.gmra.mxu0 %v3675
      %v3919 = vpop.f32.mrf.mxu0
      %v3920 = vadd.f32 %v3831, %v3919
      %v3921 = vpop.f32.mrf.mxu0
      %v3922 = vadd.f32 %v3833, %v3921
      %3923 = vmatmul.bf16.gmra.mxu0 %v3678
      %v3924 = vpop.f32.mrf.mxu0
      %v3925 = vadd.f32 %v3836, %v3924
      %v3926 = vpop.f32.mrf.mxu0
      %v3927 = vadd.f32 %v3838, %v3926
      %3928 = vmatmul.bf16.gmra.mxu0 %v3681
      %v3929 = vpop.f32.mrf.mxu0
      %v3930 = vadd.f32 %v3841, %v3929
      %v3931 = vpop.f32.mrf.mxu0
      %v3932 = vadd.f32 %v3843, %v3931
      %3933 = vmatmul.bf16.gmra.mxu0 %v3684
      %v3934 = vpop.f32.mrf.mxu0
      %v3935 = vadd.f32 %v3846, %v3934
      %v3936 = vpop.f32.mrf.mxu0
      %v3937 = vadd.f32 %v3848, %v3936
      %3938 = vmatmul.bf16.gmra.mxu0 %v3687
      %v3939 = vpop.f32.mrf.mxu0
      %v3940 = vadd.f32 %v3851, %v3939
      %v3941 = vpop.f32.mrf.mxu0
      %v3942 = vadd.f32 %v3853, %v3941
      %3943 = vmatmul.bf16.gmra.mxu0 %v3690
      %v3944 = vpop.f32.mrf.mxu0
      %v3945 = vadd.f32 %v3856, %v3944
      %v3946 = vpop.f32.mrf.mxu0
      %v3947 = vadd.f32 %v3858, %v3946
      %3948 = vmatmul.bf16.gmra.mxu0 %v3693
      %v3949 = vpop.f32.mrf.mxu0
      %v3950 = vadd.f32 %v3861, %v3949
      %v3951 = vpop.f32.mrf.mxu0
      %v3952 = vadd.f32 %v3863, %v3951
      %3953 = vmatmul.bf16.gmra.mxu0 %v3696
      %v3954 = vpop.f32.mrf.mxu0
      %v3955 = vadd.f32 %v3866, %v3954
      %v3956 = vpop.f32.mrf.mxu0
      %v3957 = vadd.f32 %v3868, %v3956
      %3958 = vmatmul.bf16.gmra.mxu0 %v3699
      %v3959 = vpop.f32.mrf.mxu0
      %v3960 = vadd.f32 %v3871, %v3959
      %v3961 = vpop.f32.mrf.mxu0
      %v3962 = vadd.f32 %v3873, %v3961
      %3963 = vmatmul.bf16.gmra.mxu0 %v3702
      %v3964 = vpop.f32.mrf.mxu0
      %v3965 = vadd.f32 %v3876, %v3964
      %v3966 = vpop.f32.mrf.mxu0
      %v3967 = vadd.f32 %v3878, %v3966
      %3968 = vmatmul.bf16.gmra.mxu0 %v3705
      %v3969 = vpop.f32.mrf.mxu0
      %v3970 = vadd.f32 %v3881, %v3969
      %v3971 = vpop.f32.mrf.mxu0
      %v3972 = vadd.f32 %v3883, %v3971
      %3973 = vdwg.mxu0
      %vm3974 = vcmp.ge.f32.partialorder %v3895, 0.0
      %vm3975 = vcmp.ge.f32.partialorder %v3897, 0.0
      %vm3976 = vcmp.ge.f32.partialorder %v3900, 0.0
      %vm3977 = vcmp.ge.f32.partialorder %v3902, 0.0
      %vm3978 = vcmp.ge.f32.partialorder %v3905, 0.0
      %vm3979 = vcmp.ge.f32.partialorder %v3907, 0.0
      %vm3980 = vcmp.ge.f32.partialorder %v3910, 0.0
      %vm3981 = vcmp.ge.f32.partialorder %v3912, 0.0
      %vm3982 = vcmp.ge.f32.partialorder %v3915, 0.0
      %vm3983 = vcmp.ge.f32.partialorder %v3917, 0.0
      %vm3984 = vcmp.ge.f32.partialorder %v3920, 0.0
      %vm3985 = vcmp.ge.f32.partialorder %v3922, 0.0
      %vm3986 = vcmp.ge.f32.partialorder %v3925, 0.0
      %vm3987 = vcmp.ge.f32.partialorder %v3927, 0.0
      %vm3988 = vcmp.ge.f32.partialorder %v3930, 0.0
      %vm3989 = vcmp.ge.f32.partialorder %v3932, 0.0
      %vm3990 = vcmp.ge.f32.partialorder %v3935, 0.0
      %vm3991 = vcmp.ge.f32.partialorder %v3937, 0.0
      %vm3992 = vcmp.ge.f32.partialorder %v3940, 0.0
      %vm3993 = vcmp.ge.f32.partialorder %v3942, 0.0
      %vm3994 = vcmp.ge.f32.partialorder %v3945, 0.0
      %vm3995 = vcmp.ge.f32.partialorder %v3947, 0.0
      %vm3996 = vcmp.ge.f32.partialorder %v3950, 0.0
      %vm3997 = vcmp.ge.f32.partialorder %v3952, 0.0
      %vm3998 = vcmp.ge.f32.partialorder %v3955, 0.0
      %vm3999 = vcmp.ge.f32.partialorder %v3957, 0.0
      %vm4000 = vcmp.ge.f32.partialorder %v3960, 0.0
      %vm4001 = vcmp.ge.f32.partialorder %v3962, 0.0
      %vm4002 = vcmp.ge.f32.partialorder %v3965, 0.0
      %vm4003 = vcmp.ge.f32.partialorder %v3967, 0.0
      %vm4004 = vcmp.ge.f32.partialorder %v3970, 0.0
      %vm4005 = vcmp.ge.f32.partialorder %v3972, 0.0
      %v4006 = vmul.f32 %v3895, 0.2
      %v4007 = vmul.f32 %v3897, 0.2
      %v4008 = vmul.f32 %v3900, 0.2
      %v4009 = vmul.f32 %v3902, 0.2
      %v4010 = vmul.f32 %v3905, 0.2
      %v4011 = vmul.f32 %v3907, 0.2
      %v4012 = vmul.f32 %v3910, 0.2
      %v4013 = vmul.f32 %v3912, 0.2
      %v4014 = vmul.f32 %v3915, 0.2
      %v4015 = vmul.f32 %v3917, 0.2
      %v4016 = vmul.f32 %v3920, 0.2
      %v4017 = vmul.f32 %v3922, 0.2
      %v4018 = vmul.f32 %v3925, 0.2
      %v4019 = vmul.f32 %v3927, 0.2
      %v4020 = vmul.f32 %v3930, 0.2
      %v4021 = vmul.f32 %v3932, 0.2
      %v4022 = vmul.f32 %v3935, 0.2
      %v4023 = vmul.f32 %v3937, 0.2
      %v4024 = vmul.f32 %v3940, 0.2
      %v4025 = vmul.f32 %v3942, 0.2
      %v4026 = vmul.f32 %v3945, 0.2
      %v4027 = vmul.f32 %v3947, 0.2
      %v4028 = vmul.f32 %v3950, 0.2
      %v4029 = vmul.f32 %v3952, 0.2
      %v4030 = vmul.f32 %v3955, 0.2
      %v4031 = vmul.f32 %v3957, 0.2
      %v4032 = vmul.f32 %v3960, 0.2
      %v4033 = vmul.f32 %v3962, 0.2
      %v4034 = vmul.f32 %v3965, 0.2
      %v4035 = vmul.f32 %v3967, 0.2
      %v4036 = vmul.f32 %v3970, 0.2
      %v4037 = vmul.f32 %v3972, 0.2
      %v4038 = vsel %vm3974, %v3895, %v4006
      %v4039 = vsel %vm3975, %v3897, %v4007
      %v4040 = vsel %vm3976, %v3900, %v4008
      %v4041 = vsel %vm3977, %v3902, %v4009
      %v4042 = vsel %vm3978, %v3905, %v4010
      %v4043 = vsel %vm3979, %v3907, %v4011
      %v4044 = vsel %vm3980, %v3910, %v4012
      %v4045 = vsel %vm3981, %v3912, %v4013
      %v4046 = vsel %vm3982, %v3915, %v4014
      %v4047 = vsel %vm3983, %v3917, %v4015
      %v4048 = vsel %vm3984, %v3920, %v4016
      %v4049 = vsel %vm3985, %v3922, %v4017
      %v4050 = vsel %vm3986, %v3925, %v4018
      %v4051 = vsel %vm3987, %v3927, %v4019
      %v4052 = vsel %vm3988, %v3930, %v4020
      %v4053 = vsel %vm3989, %v3932, %v4021
      %v4054 = vsel %vm3990, %v3935, %v4022
      %v4055 = vsel %vm3991, %v3937, %v4023
      %v4056 = vsel %vm3992, %v3940, %v4024
      %v4057 = vsel %vm3993, %v3942, %v4025
      %v4058 = vsel %vm3994, %v3945, %v4026
      %v4059 = vsel %vm3995, %v3947, %v4027
      %v4060 = vsel %vm3996, %v3950, %v4028
      %v4061 = vsel %vm3997, %v3952, %v4029
      %v4062 = vsel %vm3998, %v3955, %v4030
      %v4063 = vsel %vm3999, %v3957, %v4031
      %v4064 = vsel %vm4000, %v3960, %v4032
      %v4065 = vsel %vm4001, %v3962, %v4033
      %v4066 = vsel %vm4002, %v3965, %v4034
      %v4067 = vsel %vm4003, %v3967, %v4035
      %v4068 = vsel %vm4004, %v3970, %v4036
      %v4069 = vsel %vm4005, %v3972, %v4037
      %v4070 = vsel %vm1861, %v4038, 0.0
      %v4071 = vsel %vm1861, %v4039, 0.0
      %v4072 = vadd.f32 %v4070, %v4071
      %v4073 = vsel %vm1861, %v4040, 0.0
      %v4074 = vadd.f32 %v4072, %v4073
      %v4075 = vsel %vm1861, %v4041, 0.0
      %v4076 = vadd.f32 %v4074, %v4075
      %v4077 = vsel %vm1861, %v4042, 0.0
      %v4078 = vadd.f32 %v4076, %v4077
      %v4079 = vsel %vm1861, %v4043, 0.0
      %v4080 = vadd.f32 %v4078, %v4079
      %v4081 = vsel %vm1861, %v4044, 0.0
      %v4082 = vadd.f32 %v4080, %v4081
      %v4083 = vsel %vm1861, %v4045, 0.0
      %v4084 = vadd.f32 %v4082, %v4083
      %v4085 = vsel %vm1861, %v4046, 0.0
      %v4086 = vadd.f32 %v4084, %v4085
      %v4087 = vsel %vm1861, %v4047, 0.0
      %v4088 = vadd.f32 %v4086, %v4087
      %v4089 = vsel %vm1861, %v4048, 0.0
      %v4090 = vadd.f32 %v4088, %v4089
      %v4091 = vsel %vm1861, %v4049, 0.0
      %v4092 = vadd.f32 %v4090, %v4091
      %v4093 = vsel %vm1861, %v4050, 0.0
      %v4094 = vadd.f32 %v4092, %v4093
      %v4095 = vsel %vm1861, %v4051, 0.0
      %v4096 = vadd.f32 %v4094, %v4095
      %v4097 = vsel %vm1861, %v4052, 0.0
      %v4098 = vadd.f32 %v4096, %v4097
      %v4099 = vsel %vm1861, %v4053, 0.0
      %v4100 = vadd.f32 %v4098, %v4099
      %v4101 = vsel %vm1861, %v4054, 0.0
      %v4102 = vadd.f32 %v4100, %v4101
      %v4103 = vsel %vm1861, %v4055, 0.0
      %v4104 = vadd.f32 %v4102, %v4103
      %v4105 = vsel %vm1861, %v4056, 0.0
      %v4106 = vadd.f32 %v4104, %v4105
      %v4107 = vsel %vm1861, %v4057, 0.0
      %v4108 = vadd.f32 %v4106, %v4107
      %v4109 = vsel %vm1861, %v4058, 0.0
      %v4110 = vadd.f32 %v4108, %v4109
      %v4111 = vsel %vm1861, %v4059, 0.0
      %v4112 = vadd.f32 %v4110, %v4111
      %v4113 = vsel %vm1861, %v4060, 0.0
      %v4114 = vadd.f32 %v4112, %v4113
      %v4115 = vsel %vm1861, %v4061, 0.0
      %v4116 = vadd.f32 %v4114, %v4115
      %v4117 = vsel %vm1861, %v4062, 0.0
      %v4118 = vadd.f32 %v4116, %v4117
      %v4119 = vsel %vm1861, %v4063, 0.0
      %v4120 = vadd.f32 %v4118, %v4119
      %v4121 = vsel %vm1861, %v4064, 0.0
      %v4122 = vadd.f32 %v4120, %v4121
      %v4123 = vsel %vm1861, %v4065, 0.0
      %v4124 = vadd.f32 %v4122, %v4123
      %v4125 = vsel %vm1861, %v4066, 0.0
      %v4126 = vadd.f32 %v4124, %v4125
      %v4127 = vsel %vm1861, %v4067, 0.0
      %v4128 = vadd.f32 %v4126, %v4127
      %v4129 = vsel %vm1861, %v4068, 0.0
      %v4130 = vadd.f32 %v4128, %v4129
      %v4131 = vsel %vm1861, %v4069, 0.0
      %v4132 = vadd.f32 %v4130, %v4131
      %v4133 = vrot.slane %v4132, 4
      %v4134 = vadd.f32 %v4132, %v4133
      %v4135 = vrot.slane %v4134, 2
      %v4136 = vadd.f32 %v4134, %v4135
      %v4137 = vrot.slane %v4136, 1
      %v4138 = vadd.f32 %v4136, %v4137
      %v4139 = vld [vmem:[%s5] sm:$0x1]
      %v4140 = vmul.f32 %v4138, %v4139
      %v4141 = vsel %vm378, %v4140, 0.0
      %4142 = vadd.xlane.f32.xlu0 %v4141
      %v4143 = vpop.xlane.xlu0 %4142
      %v4144 = vld [vmem:[#allocation4] sm:$0x1]
      %v4145 = vadd.f32 %v4143, %v4144
      %v4146 = vld [vmem:[%s314] sm:$0x1]
      %v4147 = vmul.f32 %v4138, %v4146
      %v4148 = vsel %vm378, %v4147, 0.0
      %4149 = vadd.xlane.f32.xlu0 %v4148
      %v4150 = vpop.xlane.xlu0 %4149
      %v4151 = vadd.f32 %v4145, %v4150
      %4153 = vset.pattern.permute.xlu0 0
      %4154 = vperm.xlu0 %4153, %v4151
      %v4155 = vpop.permute.xlu0 %4154
      %4157 = vst [vmem:[%s317] sm:$0x1] %v4155
      %p4158 = scmp.lt.s32.totalorder %s21, 1
      %s4159 = scalar_select %p4158, %s21, 1
      %s4160 = scalar_lea.vmem %s8, %s4159
      // Predicated region
      $region53: #{discriminator_wrapper_forward.1} parent=51 // pred_check
        %p4161 = pneg %p217
      $region54: #{discriminator_wrapper_forward.1} parent=51 // pred_check_branch
        %4163 = sbr.rel (%p4161) target = $region56
      $region55: #{discriminator_wrapper_forward.1} parent=51 // pred_region
        _
      $region56: #{discriminator_wrapper_forward.1} parent=51 // pred_fallthru
        _
    $region52: #{discriminator_wrapper_forward.1} parent=5 // pred_fallthru
      _
    %p4164 = scmp.le.s32.totalorder 2, %s16
    // Predicated region
    $region57: #{discriminator_wrapper_forward.1} parent=5 // pred_check
      %p4165 = pneg %p4164
    $region58: #{discriminator_wrapper_forward.1} parent=5 // pred_check_branch
      %4167 = sbr.rel (%p4165) target = $region60
    $region59: #{discriminator_wrapper_forward.1} parent=5 // pred_region
      %s4168 = ssub.s32 %s16, 2
      // Predicated region
      $region61: #{discriminator_wrapper_forward.1} parent=59 // pred_check
        %p4169 = pneg %p223
      $region62: #{discriminator_wrapper_forward.1} parent=59 // pred_check_branch
        %4171 = sbr.rel (%p4169) target = $region64
      $region63: #{discriminator_wrapper_forward.1} parent=59 // pred_region
        %p4172 = scmp.lt.s32.totalorder %s22, 1
        %s4173 = scalar_select %p4172, %s22, 1
        %s4174 = scalar_lea.vmem %s8, %s4173
      $region64: #{discriminator_wrapper_forward.1} parent=59 // pred_fallthru
        _
    $region60: #{discriminator_wrapper_forward.1} parent=5 // pred_fallthru
      _
  $region6: #{discriminator_wrapper_forward.1} parent=0 // loop_footer
    %s20 = sadd.s32 1, %s16
  $region7: #{discriminator_wrapper_forward.1} parent=0 // loop_footer_branch
    %15 = sbr.rel target = $region3
  $region8: #{discriminator_wrapper_forward.1} parent=0 // loop_exit
    _

</llo_original>
